<compile_context>
chip_gen: v5e
topology: v5e:2x2
jax: 0.10.0
libtpu: 0.0.40
codegen_flags: <defaults>
</compile_context>

<pallas_src>
import jax
import jax.numpy as jnp
from jax.experimental import pallas as pl
from jax.experimental.pallas import tpu as pltpu

LANE = 128
SUBLANE = 8
_VMEM_WORKSET_BUDGET = 20 << 20      # target per-step working set (bytes), v7x-safe
_VMEM_LIMIT_BYTES = 40 << 20         # scoped VMEM ceiling requested from Mosaic


def _round_up(x, m):
    return ((x + m - 1) // m) * m


def _choose_strip(H, W, dil, cin_p, c1, c2):
    """Pick (S, HB): strip height S | H and halo-block height HB | S with HB >= 2*dil+2."""
    halo = 2 * dil + 2
    if H < halo:
        raise NotImplementedError("image height smaller than the fused-conv halo")
    wp = W + 2 * dil
    per_row = (2 * 2 * wp * cin_p            # input strip block (bf16, double-buffered)
               + 2 * 4 * W * c2              # output block (f32 worst case, double-buffered)
               + 2 * wp * cin_p              # staged input window
               + 2 * W * 9 * cin_p           # conv1 im2col
               + 2 * (W + 16) * c1           # mid tile
               + 2 * W * 9 * c1              # conv2 im2col
               + 4 * W * (c1 + c2))          # f32 matmul results
    fixed = 2 * 2 * 9 * (cin_p * c1 + c1 * c2)   # weights (bf16, double-buffered)
    s_budget = max(1, (_VMEM_WORKSET_BUDGET - fixed) // per_row)
    cap = max(halo, min(s_budget, max(8, H // 2)))   # also force >=2 strips when H >= 16
    S = None
    for cand in range(1, H + 1):
        if H % cand == 0 and halo <= cand <= cap:
            S = cand
    if S is None:
        S = H                                        # fall back to one strip per image
    HB = S
    for cand in range(1, S + 1):
        if S % cand == 0 and cand >= halo:
            HB = cand
            break
    return S, HB


# ----------------------------- parameter prep --------------------------------
def _prep_weight(w, cin_pad, cout_pad):
    """PyTorch conv weight (O, I, 3, 3) -> (9*cin_pad, cout_pad) bf16, tap-major rows."""
    O, I, kh, kw = w.shape
    wk = jnp.transpose(w, (2, 3, 1, 0)).reshape(kh * kw, I, O)     # (9, I, O)
    wk = jnp.pad(wk, ((0, 0), (0, cin_pad - I), (0, cout_pad - O)))
    return wk.reshape(kh * kw * cin_pad, cout_pad).astype(jnp.bfloat16)


def _fold_bn(b, gamma, beta, mean, var, eps, cpad):
    """Fold conv bias + BatchNorm (eval) into per-channel scale/bias, zero-padded."""
    scale = gamma / jnp.sqrt(var + eps)
    bias = (b - mean) * scale + beta
    c = scale.shape[0]
    scale = jnp.pad(scale, (0, cpad - c)).reshape(1, cpad).astype(jnp.float32)
    bias = jnp.pad(bias, (0, cpad - c)).reshape(1, cpad).astype(jnp.float32)
    return scale, bias


# ------------------------------ fused forward --------------------------------
def double_conv_forward(x, params, stride=1, dilation=1, eps=1e-5,
                        out_dtype=jnp.float32, nchw_io=True):
    if stride != 1:
        raise NotImplementedError("fused double_conv Pallas kernel supports stride=1 only")
    dil = int(dilation)

    if nchw_io:
        x = jnp.transpose(x, (0, 2, 3, 1))           # NCHW -> NHWC once, at the API boundary
    N, H, W, Cin = x.shape
    out_chn = params["w1"].shape[0]

    Cin_p = _round_up(Cin, SUBLANE)
    C1 = _round_up(out_chn, LANE)                    # lane-dense mid channels
    C2 = _round_up(out_chn, LANE)                    # lane-dense out channels

    S, HB = _choose_strip(H, W, dil, Cin_p, C1, C2)  # strip rows, halo-block rows
    NS = H // S                                      # strips per image
    RB = S // HB
    HALO = 2 * dil + 2                               # extra input rows below each strip
    Wp = W + 2 * dil
    WM = W + 16                                      # mid width: 8-col left pad + W + right pad

    pad_top = dil + 1
    pad_bot = max(dil + 1, HB - (dil + 1))
    Hp = _round_up(H + pad_top + pad_bot, S)
    pad_bot = Hp - H - pad_top

    x = jnp.pad(x, ((0, 0), (pad_top, pad_bot), (dil, dil), (0, Cin_p - Cin)))
    x = x.astype(jnp.bfloat16)                       # MXU-native activation stream

    w1 = _prep_weight(params["w1"], Cin_p, C1)       # (9*Cin_p, C1) bf16
    w2 = _prep_weight(params["w2"], C1, C2)          # (9*C1,   C2) bf16
    s1, b1 = _fold_bn(params["b1"], params["g1"], params["bt1"],
                      params["m1"], params["v1"], eps, C1)
    s2, b2 = _fold_bn(params["b2"], params["g2"], params["bt2"],
                      params["m2"], params["v2"], eps, C2)

    M1 = (S + 2) * W                                 # conv1 rows per strip (incl. ±1 halo row)
    M2 = S * W

    def kernel(xa_ref, xb_ref, w1_ref, s1_ref, b1_ref, w2_ref, s2_ref, b2_ref,
               o_ref, xwin_ref, im1_ref, mid_ref, im2_ref):
        s = pl.program_id(1)

        # Stage the overlapping input row window (strip + bottom halo rows) in VMEM.
        xwin_ref[0:S, :, :] = xa_ref[...]
        xwin_ref[S:S + HALO, :, :] = xb_ref[0:HALO, :, :]

        # ---- conv1: im2col (K = 9*Cin_p) + ONE MXU matmul + folded BN + ReLU ----
        for kk in range(9):
            ki, kj = divmod(kk, 3)
            win = xwin_ref[ki * dil:ki * dil + S + 2, kj * dil:kj * dil + W, :]
            im1_ref[:, kk * Cin_p:(kk + 1) * Cin_p] = win.reshape(M1, Cin_p)
        y1 = jnp.dot(im1_ref[...], w1_ref[...], preferred_element_type=jnp.float32)
        y1 = jnp.maximum(y1 * s1_ref[...] + b1_ref[...], 0.0)     # f32 epilogue

        # mid holds S+2 conv1 rows (±1 halo row) in bf16; the interior store is
        # sublane-aligned at column 8; only the 1-px halo is (re)zeroed each step.
        mid_ref[:, 8:8 + W, :] = y1.reshape(S + 2, W, C1).astype(mid_ref.dtype)
        mid_ref[:, 7:8, :] = jnp.zeros((S + 2, 1, C1), mid_ref.dtype)
        mid_ref[:, 8 + W:9 + W, :] = jnp.zeros((S + 2, 1, C1), mid_ref.dtype)

        @pl.when(s == 0)                 # conv2 zero padding only at the true image top ...
        def _():
            mid_ref[0:1, :, :] = jnp.zeros((1, WM, C1), mid_ref.dtype)

        @pl.when(s == NS - 1)            # ... and true image bottom; interior strips use the
        def _():                         # recomputed real conv1 halo rows.
            mid_ref[S + 1:S + 2, :, :] = jnp.zeros((1, WM, C1), mid_ref.dtype)

        # ---- conv2: im2col (K = 9*C1, lane-aligned chunks) + ONE matmul + BN + ReLU ----
        for kk in range(9):
            ki, kj = divmod(kk, 3)
            win = mid_ref[ki:ki + S, 7 + kj:7 + kj + W, :]
            im2_ref[:, kk * C1:(kk + 1) * C1] = win.reshape(M2, C1)
        y2 = jnp.dot(im2_ref[...], w2_ref[...], preferred_element_type=jnp.float32)
        y2 = jnp.maximum(y2 * s2_ref[...] + b2_ref[...], 0.0)
        o_ref[...] = y2.reshape(S, W, C2).astype(o_ref.dtype)

    flops = 2 * N * H * W * 9 * (Cin_p * C1 + C1 * C2)
    bytes_accessed = (x.size * 2 + w1.size * 2 + w2.size * 2
                      + (s1.size + b1.size + s2.size + b2.size) * 4
                      + N * H * W * C2 * jnp.dtype(out_dtype).itemsize)

    out = pl.pallas_call(
        kernel,
        out_shape=jax.ShapeDtypeStruct((N, H, W, C2), out_dtype),
        grid_spec=pltpu.PrefetchScalarGridSpec(
            num_scalar_prefetch=0,
            grid=(N, NS),
            in_specs=[
                # S-row input strip (padded coords) ...
                pl.BlockSpec((None, S, Wp, Cin_p), lambda n, s: (n, s, 0, 0)),
                # ... plus the next HB rows supplying the overlapping bottom halo.
                pl.BlockSpec((None, HB, Wp, Cin_p),
                             lambda n, s: (n, (s + 1) * RB, 0, 0)),
                pl.BlockSpec((9 * Cin_p, C1), lambda n, s: (0, 0)),
                pl.BlockSpec((1, C1), lambda n, s: (0, 0)),
                pl.BlockSpec((1, C1), lambda n, s: (0, 0)),
                pl.BlockSpec((9 * C1, C2), lambda n, s: (0, 0)),
                pl.BlockSpec((1, C2), lambda n, s: (0, 0)),
                pl.BlockSpec((1, C2), lambda n, s: (0, 0)),
            ],
            out_specs=pl.BlockSpec((None, S, W, C2), lambda n, s: (n, s, 0, 0)),
            scratch_shapes=[
                pltpu.VMEM((S + HALO, Wp, Cin_p), jnp.bfloat16),   # staged input window
                pltpu.VMEM((M1, 9 * Cin_p), jnp.bfloat16),         # conv1 im2col
                pltpu.VMEM((S + 2, WM, C1), jnp.bfloat16),         # conv1 out (+1-px halo)
                pltpu.VMEM((M2, 9 * C1), jnp.bfloat16),            # conv2 im2col
            ],
        ),
        compiler_params=pltpu.CompilerParams(
            dimension_semantics=("parallel", "parallel"),
            vmem_limit_bytes=_VMEM_LIMIT_BYTES),
        cost_estimate=pl.CostEstimate(flops=flops, transcendentals=0,
                                      bytes_accessed=bytes_accessed),
    )(x, x, w1, s1, b1, w2, s2, b2)

    out = out[..., :out_chn]                         # drop channel padding
    if nchw_io:
        out = jnp.transpose(out, (0, 3, 1, 2))       # NCHW only at the API boundary
    return out


# ------------------------------ params / reference ---------------------------
def init_params(key, in_chn, out_chn):
    ks = jax.random.split(key, 4)
    return {
        "w1": 0.1 * jax.random.normal(ks[0], (out_chn, in_chn, 3, 3), jnp.float32),
        "b1": 0.1 * jax.random.normal(ks[1], (out_chn,), jnp.float32),
        "g1": jnp.ones((out_chn,), jnp.float32),
        "bt1": jnp.zeros((out_chn,), jnp.float32),
        "m1": jnp.zeros((out_chn,), jnp.float32),
        "v1": jnp.ones((out_chn,), jnp.float32),
        "w2": 0.1 * jax.random.normal(ks[2], (out_chn, out_chn, 3, 3), jnp.float32),
        "b2": 0.1 * jax.random.normal(ks[3], (out_chn,), jnp.float32),
        "g2": jnp.ones((out_chn,), jnp.float32),
        "bt2": jnp.zeros((out_chn,), jnp.float32),
        "m2": jnp.zeros((out_chn,), jnp.float32),
        "v2": jnp.ones((out_chn,), jnp.float32),
    }


def _reference(x, params, stride=1, dilation=1, eps=1e-5):
    def block(x, w, b, g, bt, m, v, stride, dilation, padding):
        y = jax.lax.conv_general_dilated(
            x, w, window_strides=(stride, stride),
            padding=[(padding, padding), (padding, padding)],
            rhs_dilation=(dilation, dilation),
            dimension_numbers=("NCHW", "OIHW", "NCHW"))
        y = y + b[None, :, None, None]
        y = (y - m[None, :, None, None]) / jnp.sqrt(v[None, :, None, None] + eps)
        y = y * g[None, :, None, None] + bt[None, :, None, None]
        return jnp.maximum(y, 0.0)

    x = block(x, params["w1"], params["b1"], params["g1"], params["bt1"],
              params["m1"], params["v1"], stride, dilation, dilation)
    x = block(x, params["w2"], params["b2"], params["g2"], params["bt2"],
              params["m2"], params["v2"], 1, 1, 1)
    return x


if __name__ == "__main__":
    key = jax.random.PRNGKey(0)
    kx, kp = jax.random.split(key)

    in_chn, out_chn = 4, 8
    x = jax.random.normal(kx, (2, in_chn, 16, 16), jnp.float32)   # NCHW like PyTorch
    params = init_params(kp, in_chn, out_chn)

    fwd = jax.jit(double_conv_forward)
    out = jax.block_until_ready(fwd(x, params))

    ref = jax.block_until_ready(_reference(x, params))
    assert out.shape == ref.shape == (2, out_chn, 16, 16)
    err = float(jnp.max(jnp.abs(out - ref)))
    # bf16 activation/weight streams (f32 accumulate/epilogue) -> ~1e-2 worst case.
    assert err < 3e-2, f"mismatch vs reference conv: max|err|={err:.4f}"

    print("KERNEL_OK")
</pallas_src>

<mosaic_0001>
module attributes {stable_mosaic.version = 11 : i64} {
  func.func @kernel(%arg0: i32, %arg1: i32, %arg2: memref<1x8x18x8xbf16, #tpu.memory_space<vmem>>, %arg3: memref<1x4x18x8xbf16, #tpu.memory_space<vmem>>, %arg4: memref<72x128xbf16, #tpu.memory_space<vmem>>, %arg5: memref<1x128xf32, #tpu.memory_space<vmem>>, %arg6: memref<1x128xf32, #tpu.memory_space<vmem>>, %arg7: memref<1152x128xbf16, #tpu.memory_space<vmem>>, %arg8: memref<1x128xf32, #tpu.memory_space<vmem>>, %arg9: memref<1x128xf32, #tpu.memory_space<vmem>>, %arg10: memref<1x8x16x128xf32, #tpu.memory_space<vmem>>, %arg11: memref<12x18x8xbf16, #tpu.memory_space<vmem>>, %arg12: memref<160x72xbf16, #tpu.memory_space<vmem>>, %arg13: memref<10x32x128xbf16, #tpu.memory_space<vmem>>, %arg14: memref<128x1152xbf16, #tpu.memory_space<vmem>>) attributes {dimension_semantics = [#tpu.dimension_semantics<parallel>, #tpu.dimension_semantics<parallel>], iteration_bounds = array<i64: 2, 2>, scalar_prefetch = 0 : i64, scratch_operands = 4 : i64, tpu.core_type = #tpu.core_type<tc>, window_params = [{transform_indices = @transform_0, window_bounds = array<i64: 1, 8, 18, 8>}, {transform_indices = @transform_1, window_bounds = array<i64: 1, 4, 18, 8>}, {pipeline_mode = #tpu.pipeline_mode<synchronous>, transform_indices = @transform_2, window_bounds = array<i64: 72, 128>}, {pipeline_mode = #tpu.pipeline_mode<synchronous>, transform_indices = @transform_3, window_bounds = array<i64: 1, 128>}, {pipeline_mode = #tpu.pipeline_mode<synchronous>, transform_indices = @transform_4, window_bounds = array<i64: 1, 128>}, {pipeline_mode = #tpu.pipeline_mode<synchronous>, transform_indices = @transform_5, window_bounds = array<i64: 1152, 128>}, {pipeline_mode = #tpu.pipeline_mode<synchronous>, transform_indices = @transform_6, window_bounds = array<i64: 1, 128>}, {pipeline_mode = #tpu.pipeline_mode<synchronous>, transform_indices = @transform_7, window_bounds = array<i64: 1, 128>}, {transform_indices = @transform_8, window_bounds = array<i64: 1, 8, 16, 128>}]} {
    %c0 = arith.constant 0 : index
    %c0_0 = arith.constant 0 : index
    %c0_1 = arith.constant 0 : index
    %c0_2 = arith.constant 0 : index
    %0 = vector.load %arg2[%c0, %c0_0, %c0_1, %c0_2] : memref<1x8x18x8xbf16, #tpu.memory_space<vmem>>, vector<1x8x18x8xbf16>
    %1 = vector.shape_cast %0 : vector<1x8x18x8xbf16> to vector<8x18x8xbf16>
    %c0_3 = arith.constant 0 : index
    %c0_4 = arith.constant 0 : index
    %c0_5 = arith.constant 0 : index
    %2 = vector.load %arg11[%c0_3, %c0_4, %c0_5] : memref<12x18x8xbf16, #tpu.memory_space<vmem>>, vector<8x18x8xbf16>
    tpu.vector_store %arg11[%c0_3, %c0_4, %c0_5], %1 {strides = array<i32>} : memref<12x18x8xbf16, #tpu.memory_space<vmem>>, vector<8x18x8xbf16>,
    %c0_6 = arith.constant 0 : index
    %c0_7 = arith.constant 0 : index
    %c0_8 = arith.constant 0 : index
    %c0_9 = arith.constant 0 : index
    %3 = vector.load %arg3[%c0_6, %c0_7, %c0_8, %c0_9] : memref<1x4x18x8xbf16, #tpu.memory_space<vmem>>, vector<1x4x18x8xbf16>
    %4 = vector.shape_cast %3 : vector<1x4x18x8xbf16> to vector<4x18x8xbf16>
    %c8 = arith.constant 8 : index
    %c0_10 = arith.constant 0 : index
    %c0_11 = arith.constant 0 : index
    %5 = vector.load %arg11[%c8, %c0_10, %c0_11] : memref<12x18x8xbf16, #tpu.memory_space<vmem>>, vector<4x18x8xbf16>
    tpu.vector_store %arg11[%c8, %c0_10, %c0_11], %4 {strides = array<i32>} : memref<12x18x8xbf16, #tpu.memory_space<vmem>>, vector<4x18x8xbf16>,
    %c0_12 = arith.constant 0 : index
    %c0_13 = arith.constant 0 : index
    %c0_14 = arith.constant 0 : index
    %6 = vector.load %arg11[%c0_12, %c0_13, %c0_14] : memref<12x18x8xbf16, #tpu.memory_space<vmem>>, vector<10x16x8xbf16>
    %7 = vector.shape_cast %6 : vector<10x16x8xbf16> to vector<160x8xbf16>
    %c0_15 = arith.constant 0 : index
    %c0_16 = arith.constant 0 : index
    %8 = vector.load %arg12[%c0_15, %c0_16] : memref<160x72xbf16, #tpu.memory_space<vmem>>, vector<160x8xbf16>
    tpu.vector_store %arg12[%c0_15, %c0_16], %7 {strides = array<i32>} : memref<160x72xbf16, #tpu.memory_space<vmem>>, vector<160x8xbf16>,
    %c0_17 = arith.constant 0 : index
    %c1 = arith.constant 1 : index
    %c0_18 = arith.constant 0 : index
    %9 = vector.load %arg11[%c0_17, %c1, %c0_18] : memref<12x18x8xbf16, #tpu.memory_space<vmem>>, vector<10x16x8xbf16>
    %10 = vector.shape_cast %9 : vector<10x16x8xbf16> to vector<160x8xbf16>
    %c0_19 = arith.constant 0 : index
    %c8_20 = arith.constant 8 : index
    %11 = vector.load %arg12[%c0_19, %c8_20] : memref<160x72xbf16, #tpu.memory_space<vmem>>, vector<160x8xbf16>
    tpu.vector_store %arg12[%c0_19, %c8_20], %10 {strides = array<i32>} : memref<160x72xbf16, #tpu.memory_space<vmem>>, vector<160x8xbf16>,
    %c0_21 = arith.constant 0 : index
    %c2 = arith.constant 2 : index
    %c0_22 = arith.constant 0 : index
    %12 = vector.load %arg11[%c0_21, %c2, %c0_22] : memref<12x18x8xbf16, #tpu.memory_space<vmem>>, vector<10x16x8xbf16>
    %13 = vector.shape_cast %12 : vector<10x16x8xbf16> to vector<160x8xbf16>
    %c0_23 = arith.constant 0 : index
    %c16 = arith.constant 16 : index
    %14 = vector.load %arg12[%c0_23, %c16] : memref<160x72xbf16, #tpu.memory_space<vmem>>, vector<160x8xbf16>
    tpu.vector_store %arg12[%c0_23, %c16], %13 {strides = array<i32>} : memref<160x72xbf16, #tpu.memory_space<vmem>>, vector<160x8xbf16>,
    %c1_24 = arith.constant 1 : index
    %c0_25 = arith.constant 0 : index
    %c0_26 = arith.constant 0 : index
    %15 = vector.load %arg11[%c1_24, %c0_25, %c0_26] : memref<12x18x8xbf16, #tpu.memory_space<vmem>>, vector<10x16x8xbf16>
    %16 = vector.shape_cast %15 : vector<10x16x8xbf16> to vector<160x8xbf16>
    %c0_27 = arith.constant 0 : index
    %c24 = arith.constant 24 : index
    %17 = vector.load %arg12[%c0_27, %c24] : memref<160x72xbf16, #tpu.memory_space<vmem>>, vector<160x8xbf16>
    tpu.vector_store %arg12[%c0_27, %c24], %16 {strides = array<i32>} : memref<160x72xbf16, #tpu.memory_space<vmem>>, vector<160x8xbf16>,
    %c1_28 = arith.constant 1 : index
    %c1_29 = arith.constant 1 : index
    %c0_30 = arith.constant 0 : index
    %18 = vector.load %arg11[%c1_28, %c1_29, %c0_30] : memref<12x18x8xbf16, #tpu.memory_space<vmem>>, vector<10x16x8xbf16>
    %19 = vector.shape_cast %18 : vector<10x16x8xbf16> to vector<160x8xbf16>
    %c0_31 = arith.constant 0 : index
    %c32 = arith.constant 32 : index
    %20 = vector.load %arg12[%c0_31, %c32] : memref<160x72xbf16, #tpu.memory_space<vmem>>, vector<160x8xbf16>
    tpu.vector_store %arg12[%c0_31, %c32], %19 {strides = array<i32>} : memref<160x72xbf16, #tpu.memory_space<vmem>>, vector<160x8xbf16>,
    %c1_32 = arith.constant 1 : index
    %c2_33 = arith.constant 2 : index
    %c0_34 = arith.constant 0 : index
    %21 = vector.load %arg11[%c1_32, %c2_33, %c0_34] : memref<12x18x8xbf16, #tpu.memory_space<vmem>>, vector<10x16x8xbf16>
    %22 = vector.shape_cast %21 : vector<10x16x8xbf16> to vector<160x8xbf16>
    %c0_35 = arith.constant 0 : index
    %c40 = arith.constant 40 : index
    %23 = vector.load %arg12[%c0_35, %c40] : memref<160x72xbf16, #tpu.memory_space<vmem>>, vector<160x8xbf16>
    tpu.vector_store %arg12[%c0_35, %c40], %22 {strides = array<i32>} : memref<160x72xbf16, #tpu.memory_space<vmem>>, vector<160x8xbf16>,
    %c2_36 = arith.constant 2 : index
    %c0_37 = arith.constant 0 : index
    %c0_38 = arith.constant 0 : index
    %24 = vector.load %arg11[%c2_36, %c0_37, %c0_38] : memref<12x18x8xbf16, #tpu.memory_space<vmem>>, vector<10x16x8xbf16>
    %25 = vector.shape_cast %24 : vector<10x16x8xbf16> to vector<160x8xbf16>
    %c0_39 = arith.constant 0 : index
    %c48 = arith.constant 48 : index
    %26 = vector.load %arg12[%c0_39, %c48] : memref<160x72xbf16, #tpu.memory_space<vmem>>, vector<160x8xbf16>
    tpu.vector_store %arg12[%c0_39, %c48], %25 {strides = array<i32>} : memref<160x72xbf16, #tpu.memory_space<vmem>>, vector<160x8xbf16>,
    %c2_40 = arith.constant 2 : index
    %c1_41 = arith.constant 1 : index
    %c0_42 = arith.constant 0 : index
    %27 = vector.load %arg11[%c2_40, %c1_41, %c0_42] : memref<12x18x8xbf16, #tpu.memory_space<vmem>>, vector<10x16x8xbf16>
    %28 = vector.shape_cast %27 : vector<10x16x8xbf16> to vector<160x8xbf16>
    %c0_43 = arith.constant 0 : index
    %c56 = arith.constant 56 : index
    %29 = vector.load %arg12[%c0_43, %c56] : memref<160x72xbf16, #tpu.memory_space<vmem>>, vector<160x8xbf16>
    tpu.vector_store %arg12[%c0_43, %c56], %28 {strides = array<i32>} : memref<160x72xbf16, #tpu.memory_space<vmem>>, vector<160x8xbf16>,
    %c2_44 = arith.constant 2 : index
    %c2_45 = arith.constant 2 : index
    %c0_46 = arith.constant 0 : index
    %30 = vector.load %arg11[%c2_44, %c2_45, %c0_46] : memref<12x18x8xbf16, #tpu.memory_space<vmem>>, vector<10x16x8xbf16>
    %31 = vector.shape_cast %30 : vector<10x16x8xbf16> to vector<160x8xbf16>
    %c0_47 = arith.constant 0 : index
    %c64 = arith.constant 64 : index
    %32 = vector.load %arg12[%c0_47, %c64] : memref<160x72xbf16, #tpu.memory_space<vmem>>, vector<160x8xbf16>
    tpu.vector_store %arg12[%c0_47, %c64], %31 {strides = array<i32>} : memref<160x72xbf16, #tpu.memory_space<vmem>>, vector<160x8xbf16>,
    %c0_48 = arith.constant 0 : index
    %c0_49 = arith.constant 0 : index
    %33 = vector.load %arg12[%c0_48, %c0_49] : memref<160x72xbf16, #tpu.memory_space<vmem>>, vector<160x72xbf16>
    %c0_50 = arith.constant 0 : index
    %c0_51 = arith.constant 0 : index
    %34 = vector.load %arg4[%c0_50, %c0_51] : memref<72x128xbf16, #tpu.memory_space<vmem>>, vector<72x128xbf16>
    %cst = arith.constant dense<0.000000e+00> : vector<160x128xf32>
    %35 = tpu.matmul %33, %34, %cst {dimension_numbers = #tpu.dot_dimension_numbers<[1], [0], [0], [1], [0, 0, 1, 1], [], []>} : vector<160x72xbf16>, vector<72x128xbf16>, vector<160x128xf32> -> vector<160x128xf32>
    %c0_52 = arith.constant 0 : index
    %c0_53 = arith.constant 0 : index
    %36 = vector.load %arg5[%c0_52, %c0_53] : memref<1x128xf32, #tpu.memory_space<vmem>>, vector<1x128xf32>
    %37 = vector.broadcast %36 : vector<1x128xf32> to vector<160x128xf32>
    %38 = arith.mulf %35, %37 : vector<160x128xf32>
    %c0_54 = arith.constant 0 : index
    %c0_55 = arith.constant 0 : index
    %39 = vector.load %arg6[%c0_54, %c0_55] : memref<1x128xf32, #tpu.memory_space<vmem>>, vector<1x128xf32>
    %40 = vector.broadcast %39 : vector<1x128xf32> to vector<160x128xf32>
    %41 = arith.addf %38, %40 : vector<160x128xf32>
    %cst_56 = arith.constant 0.000000e+00 : f32
    %42 = vector.broadcast %cst_56 : f32 to vector<160x128xf32>
    %43 = arith.maximumf %41, %42 : vector<160x128xf32>
    %44 = vector.shape_cast %43 : vector<160x128xf32> to vector<10x16x128xf32>
    %45 = arith.truncf %44 : vector<10x16x128xf32> to vector<10x16x128xbf16>
    %c0_57 = arith.constant 0 : index
    %c8_58 = arith.constant 8 : index
    %c0_59 = arith.constant 0 : index
    %46 = vector.load %arg13[%c0_57, %c8_58, %c0_59] : memref<10x32x128xbf16, #tpu.memory_space<vmem>>, vector<10x16x128xbf16>
    tpu.vector_store %arg13[%c0_57, %c8_58, %c0_59], %45 {strides = array<i32>} : memref<10x32x128xbf16, #tpu.memory_space<vmem>>, vector<10x16x128xbf16>,
    %cst_60 = arith.constant 0.000000e+00 : bf16
    %47 = vector.broadcast %cst_60 : bf16 to vector<10x1x128xbf16>
    %c0_61 = arith.constant 0 : index
    %c7 = arith.constant 7 : index
    %c0_62 = arith.constant 0 : index
    %48 = vector.load %arg13[%c0_61, %c7, %c0_62] : memref<10x32x128xbf16, #tpu.memory_space<vmem>>, vector<10x1x128xbf16>
    tpu.vector_store %arg13[%c0_61, %c7, %c0_62], %47 {strides = array<i32>} : memref<10x32x128xbf16, #tpu.memory_space<vmem>>, vector<10x1x128xbf16>,
    %cst_63 = arith.constant 0.000000e+00 : bf16
    %49 = vector.broadcast %cst_63 : bf16 to vector<10x1x128xbf16>
    %c0_64 = arith.constant 0 : index
    %c24_65 = arith.constant 24 : index
    %c0_66 = arith.constant 0 : index
    %50 = vector.load %arg13[%c0_64, %c24_65, %c0_66] : memref<10x32x128xbf16, #tpu.memory_space<vmem>>, vector<10x1x128xbf16>
    tpu.vector_store %arg13[%c0_64, %c24_65, %c0_66], %49 {strides = array<i32>} : memref<10x32x128xbf16, #tpu.memory_space<vmem>>, vector<10x1x128xbf16>,
    %c0_i32 = arith.constant 0 : i32
    %51 = arith.cmpi eq, %arg1, %c0_i32 : i32
    %52 = arith.extui %51 : i1 to i32
    %c0_i32_67 = arith.constant 0 : i32
    %53 = arith.cmpi ne, %52, %c0_i32_67 : i32
    scf.if %53 {
      %cst_119 = arith.constant 0.000000e+00 : bf16
      %99 = vector.broadcast %cst_119 : bf16 to vector<1x32x128xbf16>
      %c0_120 = arith.constant 0 : index
      %c0_121 = arith.constant 0 : index
      %c0_122 = arith.constant 0 : index
      %100 = vector.load %arg13[%c0_120, %c0_121, %c0_122] : memref<10x32x128xbf16, #tpu.memory_space<vmem>>, vector<1x32x128xbf16>
      tpu.vector_store %arg13[%c0_120, %c0_121, %c0_122], %99 {strides = array<i32>} : memref<10x32x128xbf16, #tpu.memory_space<vmem>>, vector<1x32x128xbf16>,
    } else {
    }
    %c1_i32 = arith.constant 1 : i32
    %54 = arith.cmpi eq, %arg1, %c1_i32 : i32
    %55 = arith.extui %54 : i1 to i32
    %c0_i32_68 = arith.constant 0 : i32
    %56 = arith.cmpi ne, %55, %c0_i32_68 : i32
    scf.if %56 {
      %cst_119 = arith.constant 0.000000e+00 : bf16
      %99 = vector.broadcast %cst_119 : bf16 to vector<1x32x128xbf16>
      %c9_120 = arith.constant 9 : index
      %c0_121 = arith.constant 0 : index
      %c0_122 = arith.constant 0 : index
      %100 = vector.load %arg13[%c9_120, %c0_121, %c0_122] : memref<10x32x128xbf16, #tpu.memory_space<vmem>>, vector<1x32x128xbf16>
      tpu.vector_store %arg13[%c9_120, %c0_121, %c0_122], %99 {strides = array<i32>} : memref<10x32x128xbf16, #tpu.memory_space<vmem>>, vector<1x32x128xbf16>,
    } else {
    }
    %c0_69 = arith.constant 0 : index
    %c7_70 = arith.constant 7 : index
    %c0_71 = arith.constant 0 : index
    %57 = vector.load %arg13[%c0_69, %c7_70, %c0_71] : memref<10x32x128xbf16, #tpu.memory_space<vmem>>, vector<8x16x128xbf16>
    %58 = vector.shape_cast %57 : vector<8x16x128xbf16> to vector<128x128xbf16>
    %c0_72 = arith.constant 0 : index
    %c0_73 = arith.constant 0 : index
    %59 = vector.load %arg14[%c0_72, %c0_73] : memref<128x1152xbf16, #tpu.memory_space<vmem>>, vector<128x128xbf16>
    tpu.vector_store %arg14[%c0_72, %c0_73], %58 {strides = array<i32>} : memref<128x1152xbf16, #tpu.memory_space<vmem>>, vector<128x128xbf16>,
    %c0_74 = arith.constant 0 : index
    %c8_75 = arith.constant 8 : index
    %c0_76 = arith.constant 0 : index
    %60 = vector.load %arg13[%c0_74, %c8_75, %c0_76] : memref<10x32x128xbf16, #tpu.memory_space<vmem>>, vector<8x16x128xbf16>
    %61 = vector.shape_cast %60 : vector<8x16x128xbf16> to vector<128x128xbf16>
    %c0_77 = arith.constant 0 : index
    %c128 = arith.constant 128 : index
    %62 = vector.load %arg14[%c0_77, %c128] : memref<128x1152xbf16, #tpu.memory_space<vmem>>, vector<128x128xbf16>
    tpu.vector_store %arg14[%c0_77, %c128], %61 {strides = array<i32>} : memref<128x1152xbf16, #tpu.memory_space<vmem>>, vector<128x128xbf16>,
    %c0_78 = arith.constant 0 : index
    %c9 = arith.constant 9 : index
    %c0_79 = arith.constant 0 : index
    %63 = vector.load %arg13[%c0_78, %c9, %c0_79] : memref<10x32x128xbf16, #tpu.memory_space<vmem>>, vector<8x16x128xbf16>
    %64 = vector.shape_cast %63 : vector<8x16x128xbf16> to vector<128x128xbf16>
    %c0_80 = arith.constant 0 : index
    %c256 = arith.constant 256 : index
    %65 = vector.load %arg14[%c0_80, %c256] : memref<128x1152xbf16, #tpu.memory_space<vmem>>, vector<128x128xbf16>
    tpu.vector_store %arg14[%c0_80, %c256], %64 {strides = array<i32>} : memref<128x1152xbf16, #tpu.memory_space<vmem>>, vector<128x128xbf16>,
    %c1_81 = arith.constant 1 : index
    %c7_82 = arith.constant 7 : index
    %c0_83 = arith.constant 0 : index
    %66 = vector.load %arg13[%c1_81, %c7_82, %c0_83] : memref<10x32x128xbf16, #tpu.memory_space<vmem>>, vector<8x16x128xbf16>
    %67 = vector.shape_cast %66 : vector<8x16x128xbf16> to vector<128x128xbf16>
    %c0_84 = arith.constant 0 : index
    %c384 = arith.constant 384 : index
    %68 = vector.load %arg14[%c0_84, %c384] : memref<128x1152xbf16, #tpu.memory_space<vmem>>, vector<128x128xbf16>
    tpu.vector_store %arg14[%c0_84, %c384], %67 {strides = array<i32>} : memref<128x1152xbf16, #tpu.memory_space<vmem>>, vector<128x128xbf16>,
    %c1_85 = arith.constant 1 : index
    %c8_86 = arith.constant 8 : index
    %c0_87 = arith.constant 0 : index
    %69 = vector.load %arg13[%c1_85, %c8_86, %c0_87] : memref<10x32x128xbf16, #tpu.memory_space<vmem>>, vector<8x16x128xbf16>
    %70 = vector.shape_cast %69 : vector<8x16x128xbf16> to vector<128x128xbf16>
    %c0_88 = arith.constant 0 : index
    %c512 = arith.constant 512 : index
    %71 = vector.load %arg14[%c0_88, %c512] : memref<128x1152xbf16, #tpu.memory_space<vmem>>, vector<128x128xbf16>
    tpu.vector_store %arg14[%c0_88, %c512], %70 {strides = array<i32>} : memref<128x1152xbf16, #tpu.memory_space<vmem>>, vector<128x128xbf16>,
    %c1_89 = arith.constant 1 : index
    %c9_90 = arith.constant 9 : index
    %c0_91 = arith.constant 0 : index
    %72 = vector.load %arg13[%c1_89, %c9_90, %c0_91] : memref<10x32x128xbf16, #tpu.memory_space<vmem>>, vector<8x16x128xbf16>
    %73 = vector.shape_cast %72 : vector<8x16x128xbf16> to vector<128x128xbf16>
    %c0_92 = arith.constant 0 : index
    %c640 = arith.constant 640 : index
    %74 = vector.load %arg14[%c0_92, %c640] : memref<128x1152xbf16, #tpu.memory_space<vmem>>, vector<128x128xbf16>
    tpu.vector_store %arg14[%c0_92, %c640], %73 {strides = array<i32>} : memref<128x1152xbf16, #tpu.memory_space<vmem>>, vector<128x128xbf16>,
    %c2_93 = arith.constant 2 : index
    %c7_94 = arith.constant 7 : index
    %c0_95 = arith.constant 0 : index
    %75 = vector.load %arg13[%c2_93, %c7_94, %c0_95] : memref<10x32x128xbf16, #tpu.memory_space<vmem>>, vector<8x16x128xbf16>
    %76 = vector.shape_cast %75 : vector<8x16x128xbf16> to vector<128x128xbf16>
    %c0_96 = arith.constant 0 : index
    %c768 = arith.constant 768 : index
    %77 = vector.load %arg14[%c0_96, %c768] : memref<128x1152xbf16, #tpu.memory_space<vmem>>, vector<128x128xbf16>
    tpu.vector_store %arg14[%c0_96, %c768], %76 {strides = array<i32>} : memref<128x1152xbf16, #tpu.memory_space<vmem>>, vector<128x128xbf16>,
    %c2_97 = arith.constant 2 : index
    %c8_98 = arith.constant 8 : index
    %c0_99 = arith.constant 0 : index
    %78 = vector.load %arg13[%c2_97, %c8_98, %c0_99] : memref<10x32x128xbf16, #tpu.memory_space<vmem>>, vector<8x16x128xbf16>
    %79 = vector.shape_cast %78 : vector<8x16x128xbf16> to vector<128x128xbf16>
    %c0_100 = arith.constant 0 : index
    %c896 = arith.constant 896 : index
    %80 = vector.load %arg14[%c0_100, %c896] : memref<128x1152xbf16, #tpu.memory_space<vmem>>, vector<128x128xbf16>
    tpu.vector_store %arg14[%c0_100, %c896], %79 {strides = array<i32>} : memref<128x1152xbf16, #tpu.memory_space<vmem>>, vector<128x128xbf16>,
    %c2_101 = arith.constant 2 : index
    %c9_102 = arith.constant 9 : index
    %c0_103 = arith.constant 0 : index
    %81 = vector.load %arg13[%c2_101, %c9_102, %c0_103] : memref<10x32x128xbf16, #tpu.memory_space<vmem>>, vector<8x16x128xbf16>
    %82 = vector.shape_cast %81 : vector<8x16x128xbf16> to vector<128x128xbf16>
    %c0_104 = arith.constant 0 : index
    %c1024 = arith.constant 1024 : index
    %83 = vector.load %arg14[%c0_104, %c1024] : memref<128x1152xbf16, #tpu.memory_space<vmem>>, vector<128x128xbf16>
    tpu.vector_store %arg14[%c0_104, %c1024], %82 {strides = array<i32>} : memref<128x1152xbf16, #tpu.memory_space<vmem>>, vector<128x128xbf16>,
    %c0_105 = arith.constant 0 : index
    %c0_106 = arith.constant 0 : index
    %84 = vector.load %arg14[%c0_105, %c0_106] : memref<128x1152xbf16, #tpu.memory_space<vmem>>, vector<128x1152xbf16>
    %c0_107 = arith.constant 0 : index
    %c0_108 = arith.constant 0 : index
    %85 = vector.load %arg7[%c0_107, %c0_108] : memref<1152x128xbf16, #tpu.memory_space<vmem>>, vector<1152x128xbf16>
    %cst_109 = arith.constant dense<0.000000e+00> : vector<128x128xf32>
    %86 = tpu.matmul %84, %85, %cst_109 {dimension_numbers = #tpu.dot_dimension_numbers<[1], [0], [0], [1], [0, 0, 1, 1], [], []>} : vector<128x1152xbf16>, vector<1152x128xbf16>, vector<128x128xf32> -> vector<128x128xf32>
    %c0_110 = arith.constant 0 : index
    %c0_111 = arith.constant 0 : index
    %87 = vector.load %arg8[%c0_110, %c0_111] : memref<1x128xf32, #tpu.memory_space<vmem>>, vector<1x128xf32>
    %88 = vector.broadcast %87 : vector<1x128xf32> to vector<128x128xf32>
    %89 = arith.mulf %86, %88 : vector<128x128xf32>
    %c0_112 = arith.constant 0 : index
    %c0_113 = arith.constant 0 : index
    %90 = vector.load %arg9[%c0_112, %c0_113] : memref<1x128xf32, #tpu.memory_space<vmem>>, vector<1x128xf32>
    %91 = vector.broadcast %90 : vector<1x128xf32> to vector<128x128xf32>
    %92 = arith.addf %89, %91 : vector<128x128xf32>
    %cst_114 = arith.constant 0.000000e+00 : f32
    %93 = vector.broadcast %cst_114 : f32 to vector<128x128xf32>
    %94 = arith.maximumf %92, %93 : vector<128x128xf32>
    %95 = vector.shape_cast %94 : vector<128x128xf32> to vector<8x16x128xf32>
    %c0_115 = arith.constant 0 : index
    %c0_116 = arith.constant 0 : index
    %c0_117 = arith.constant 0 : index
    %c0_118 = arith.constant 0 : index
    %96 = vector.load %arg10[%c0_115, %c0_116, %c0_117, %c0_118] : memref<1x8x16x128xf32, #tpu.memory_space<vmem>>, vector<1x8x16x128xf32>
    %97 = vector.shape_cast %96 : vector<1x8x16x128xf32> to vector<8x16x128xf32>
    %98 = vector.shape_cast %95 : vector<8x16x128xf32> to vector<1x8x16x128xf32>
    tpu.vector_store %arg10[%c0_115, %c0_116, %c0_117, %c0_118], %98 {strides = array<i32>} : memref<1x8x16x128xf32, #tpu.memory_space<vmem>>, vector<1x8x16x128xf32>,
    return
  }
  func.func @transform_0(%arg0: i32, %arg1: i32) -> (i32, i32, i32, i32) {
    %c0_i32 = arith.constant 0 : i32
    %c0_i32_0 = arith.constant 0 : i32
    %c0_i32_1 = arith.constant 0 : i32
    return %arg0, %arg1, %c0_i32, %c0_i32_0 : i32, i32, i32, i32
  }
  func.func @transform_1(%arg0: i32, %arg1: i32) -> (i32, i32, i32, i32) {
    %c1_i32 = arith.constant 1 : i32
    %0 = arith.addi %arg1, %c1_i32 : i32
    %c2_i32 = arith.constant 2 : i32
    %1 = arith.muli %0, %c2_i32 : i32
    %c0_i32 = arith.constant 0 : i32
    %c0_i32_0 = arith.constant 0 : i32
    %c0_i32_1 = arith.constant 0 : i32
    return %arg0, %1, %c0_i32, %c0_i32_0 : i32, i32, i32, i32
  }
  func.func @transform_2(%arg0: i32, %arg1: i32) -> (i32, i32) {
    %c0_i32 = arith.constant 0 : i32
    %c0_i32_0 = arith.constant 0 : i32
    %c0_i32_1 = arith.constant 0 : i32
    return %c0_i32, %c0_i32_0 : i32, i32
  }
  func.func @transform_3(%arg0: i32, %arg1: i32) -> (i32, i32) {
    %c0_i32 = arith.constant 0 : i32
    %c0_i32_0 = arith.constant 0 : i32
    %c0_i32_1 = arith.constant 0 : i32
    return %c0_i32, %c0_i32_0 : i32, i32
  }
  func.func @transform_4(%arg0: i32, %arg1: i32) -> (i32, i32) {
    %c0_i32 = arith.constant 0 : i32
    %c0_i32_0 = arith.constant 0 : i32
    %c0_i32_1 = arith.constant 0 : i32
    return %c0_i32, %c0_i32_0 : i32, i32
  }
  func.func @transform_5(%arg0: i32, %arg1: i32) -> (i32, i32) {
    %c0_i32 = arith.constant 0 : i32
    %c0_i32_0 = arith.constant 0 : i32
    %c0_i32_1 = arith.constant 0 : i32
    return %c0_i32, %c0_i32_0 : i32, i32
  }
  func.func @transform_6(%arg0: i32, %arg1: i32) -> (i32, i32) {
    %c0_i32 = arith.constant 0 : i32
    %c0_i32_0 = arith.constant 0 : i32
    %c0_i32_1 = arith.constant 0 : i32
    return %c0_i32, %c0_i32_0 : i32, i32
  }
  func.func @transform_7(%arg0: i32, %arg1: i32) -> (i32, i32) {
    %c0_i32 = arith.constant 0 : i32
    %c0_i32_0 = arith.constant 0 : i32
    %c0_i32_1 = arith.constant 0 : i32
    return %c0_i32, %c0_i32_0 : i32, i32
  }
  func.func @transform_8(%arg0: i32, %arg1: i32) -> (i32, i32, i32, i32) {
    %c0_i32 = arith.constant 0 : i32
    %c0_i32_0 = arith.constant 0 : i32
    %c0_i32_1 = arith.constant 0 : i32
    return %arg0, %arg1, %c0_i32, %c0_i32_0 : i32, i32, i32, i32
  }
}

</mosaic_0001>

<llo_original>
// kernel: double_conv_forward.1
$region0: #{double_conv_forward.1}
  #allocation0 [shape = 'u32[]', space=smem, size = 0x4, offset = 0x4, fixed_abs, tag = 'smem constant byte address 0x4 - core index']
  #allocation1 [shape = 'u32[72,128]{1,0:T(1,128)}', space=vmem, size = 0x9000, scoped, tag = 'internal scratch']
  #allocation2 [shape = 'bf16[12,18,8]{2,1,0:T(8,128)(2,1)}', space=vmem, size = 0x12000, scoped, tag = 'scratch operand']
  #allocation3 [shape = 'bf16[160,72]{1,0:T(8,128)(2,1)}', space=vmem, size = 0xa000, scoped, tag = 'scratch operand']
  #allocation4 [shape = 'bf16[10,32,128]{2,1,0:T(8,128)(2,1)}', space=vmem, size = 0x14000, scoped, tag = 'scratch operand']
  #allocation5 [shape = 'bf16[128,1152]{1,0:T(8,128)(2,1)}', space=vmem, size = 0x48000, scoped, tag = 'scratch operand']
  %s0 = inlined_call_operand.vmem [shape: bf16[2,24,18,8], index: 0, kind: input, shape index: {}, may-alias: {0,1}]
  %s1 = inlined_call_operand.vmem [shape: bf16[2,24,18,8], index: 1, kind: input, shape index: {}, may-alias: {0,1}]
  %s2 = inlined_call_operand.vmem [shape: bf16[72,128], index: 2, kind: input, shape index: {}]
  %s3 = inlined_call_operand.vmem [shape: f32[1,128], index: 3, kind: input, shape index: {}]
  %s4 = inlined_call_operand.vmem [shape: f32[1,128], index: 4, kind: input, shape index: {}]
  %s5 = inlined_call_operand.vmem [shape: bf16[1152,128], index: 5, kind: input, shape index: {}]
  %s6 = inlined_call_operand.vmem [shape: f32[1,128], index: 6, kind: input, shape index: {}]
  %s7 = inlined_call_operand.vmem [shape: f32[1,128], index: 7, kind: input, shape index: {}]
  %s8 = inlined_call_operand.vmem [shape: f32[2,16,16,128], index: 8, kind: output, shape index: {}]
  %s9 = sld [smem:[#allocation0]]
  $region73: #{double_conv_forward.1} parent=0
    _
  %s11 = ssub.s32 1, %s9
  %s12 = scalar_select 0, %s11, %s9
  loop: start=0, step=1, limit=6
  $region2: #{double_conv_forward.1} parent=0 // loop_pre_header
    _
  $region3: #{double_conv_forward.1} parent=0 // loop_header
    %s14 = sphi 0, %s18
    %p15 = scmp.ge.s32.totalorder %s14, 6
    %s21 = sphi 0, %s33
    %s22 = sphi 0, %s29
    %s23 = sphi 0, %s21
    %s24 = sphi 0, %s22
    %s25 = sphi 0, %s23
    %s26 = sphi 0, %s24
    %s38 = sphi 0, %s40
    %s41 = sphi 0, %s38
    %s42 = sphi 0, %s41
    %s58 = sphi 0, %s42
    %s70 = sphi 0, %s72
    %s73 = sphi 0, %s70
    %s74 = sphi 0, %s73
    %s90 = sphi 0, %s74
    %s94 = sphi 0, %s94
    %s96 = sphi 0, %s94
    %s97 = sphi 0, %s96
    %s111 = sphi 0, %s97
    %s115 = sphi 0, %s115
    %s117 = sphi 0, %s115
    %s118 = sphi 0, %s117
    %s132 = sphi 0, %s118
    %s136 = sphi 0, %s136
    %s138 = sphi 0, %s136
    %s139 = sphi 0, %s138
    %s153 = sphi 0, %s139
    %s157 = sphi 0, %s157
    %s159 = sphi 0, %s157
    %s160 = sphi 0, %s159
    %s174 = sphi 0, %s160
    %s178 = sphi 0, %s178
    %s180 = sphi 0, %s178
    %s181 = sphi 0, %s180
    %s195 = sphi 0, %s181
    %s199 = sphi 0, %s199
    %s201 = sphi 0, %s199
    %s202 = sphi 0, %s201
    %s216 = sphi 0, %s202
    %s224 = sphi 0, %s226
    %s227 = sphi 0, %s224
    %s228 = sphi 0, %s227
    %s244 = sphi 0, %s228
  $region4: #{double_conv_forward.1} parent=0 // loop_header_branch
    %17 = sbr.rel (%p15) target = $region8
  $region5: #{double_conv_forward.1} parent=0 // loop_body
    %s19 = ssub.s32 %s14, 1
    %s20 = ssub.s32 %s14, 2
    %s27 = sadd.s32 1, %s22
    %p28 = scmp.ge.s32.totalorder %s27, 2
    %s29 = scalar_select %p28, 0, %s27
    %s30 = sadd.s32 1, %s21
    %s31 = scalar_select %p28, %s30, %s21
    %p32 = scmp.ge.s32.totalorder %s31, 2
    %s33 = scalar_select %p32, 0, %s31
    %s34 = ssub.s32 %s21, %s33
    %s35 = ssub.s32 %s22, %s29
    %s36 = sor.u32 %s34, %s35
    %p37 = scmp.eq.s32.totalorder %s36, 0
    %s39 = sadd.s32 %s38, 1
    %s40 = scalar_select %p37, %s38, %s39
    %p43 = pneg %p37
    %p44 = scmp.eq.s32.totalorder %s14, 3
    %p45 = por %p43, %p44
    %p46 = scmp.ne.s32.totalorder %s38, %s41
    %p47 = scmp.eq.s32.totalorder %s14, 0
    %p48 = por %p46, %p47
    %p49 = scmp.ne.s32.totalorder %s38, %s41
    %p50 = scmp.eq.s32.totalorder %s19, 3
    %p51 = por %p49, %p50
    %p52 = scmp.ne.s32.totalorder %s41, %s42
    %p53 = scmp.eq.s32.totalorder %s19, 0
    %p54 = por %p52, %p53
    %p55 = scmp.ne.s32.totalorder %s41, %s42
    %p56 = scmp.eq.s32.totalorder %s20, 3
    %p57 = por %p55, %p56
    %p59 = scmp.ne.s32.totalorder %s42, %s58
    %p60 = scmp.eq.s32.totalorder %s20, 0
    %p61 = por %p59, %p60
    %s62 = sadd.s32 %s22, 1
    %s63 = smul.u32 %s62, 2
    %s64 = sadd.s32 %s29, 1
    %s65 = smul.u32 %s64, 2
    %s66 = ssub.s32 %s21, %s33
    %s67 = ssub.s32 %s63, %s65
    %s68 = sor.u32 %s66, %s67
    %p69 = scmp.eq.s32.totalorder %s68, 0
    %s71 = sadd.s32 %s70, 1
    %s72 = scalar_select %p69, %s70, %s71
    %p75 = pneg %p69
    %p76 = scmp.eq.s32.totalorder %s14, 3
    %p77 = por %p75, %p76
    %p78 = scmp.ne.s32.totalorder %s70, %s73
    %p79 = scmp.eq.s32.totalorder %s14, 0
    %p80 = por %p78, %p79
    %p81 = scmp.ne.s32.totalorder %s70, %s73
    %p82 = scmp.eq.s32.totalorder %s19, 3
    %p83 = por %p81, %p82
    %p84 = scmp.ne.s32.totalorder %s73, %s74
    %p85 = scmp.eq.s32.totalorder %s19, 0
    %p86 = por %p84, %p85
    %p87 = scmp.ne.s32.totalorder %s73, %s74
    %p88 = scmp.eq.s32.totalorder %s20, 3
    %p89 = por %p87, %p88
    %p91 = scmp.ne.s32.totalorder %s74, %s90
    %p92 = scmp.eq.s32.totalorder %s20, 0
    %p93 = por %p91, %p92
    %s95 = sadd.s32 %s94, 1
    %p98 = scmp.eq.s32.totalorder %s14, 3
    %p99 = scmp.ne.s32.totalorder %s94, %s96
    %p100 = scmp.eq.s32.totalorder %s14, 0
    %p101 = por %p99, %p100
    %p102 = scmp.ne.s32.totalorder %s94, %s96
    %p103 = scmp.eq.s32.totalorder %s19, 3
    %p104 = por %p102, %p103
    %p105 = scmp.ne.s32.totalorder %s96, %s97
    %p106 = scmp.eq.s32.totalorder %s19, 0
    %p107 = por %p105, %p106
    %p108 = scmp.ne.s32.totalorder %s96, %s97
    %p109 = scmp.eq.s32.totalorder %s20, 3
    %p110 = por %p108, %p109
    %p112 = scmp.ne.s32.totalorder %s97, %s111
    %p113 = scmp.eq.s32.totalorder %s20, 0
    %p114 = por %p112, %p113
    %s116 = sadd.s32 %s115, 1
    %p119 = scmp.eq.s32.totalorder %s14, 3
    %p120 = scmp.ne.s32.totalorder %s115, %s117
    %p121 = scmp.eq.s32.totalorder %s14, 0
    %p122 = por %p120, %p121
    %p123 = scmp.ne.s32.totalorder %s115, %s117
    %p124 = scmp.eq.s32.totalorder %s19, 3
    %p125 = por %p123, %p124
    %p126 = scmp.ne.s32.totalorder %s117, %s118
    %p127 = scmp.eq.s32.totalorder %s19, 0
    %p128 = por %p126, %p127
    %p129 = scmp.ne.s32.totalorder %s117, %s118
    %p130 = scmp.eq.s32.totalorder %s20, 3
    %p131 = por %p129, %p130
    %p133 = scmp.ne.s32.totalorder %s118, %s132
    %p134 = scmp.eq.s32.totalorder %s20, 0
    %p135 = por %p133, %p134
    %s137 = sadd.s32 %s136, 1
    %p140 = scmp.eq.s32.totalorder %s14, 3
    %p141 = scmp.ne.s32.totalorder %s136, %s138
    %p142 = scmp.eq.s32.totalorder %s14, 0
    %p143 = por %p141, %p142
    %p144 = scmp.ne.s32.totalorder %s136, %s138
    %p145 = scmp.eq.s32.totalorder %s19, 3
    %p146 = por %p144, %p145
    %p147 = scmp.ne.s32.totalorder %s138, %s139
    %p148 = scmp.eq.s32.totalorder %s19, 0
    %p149 = por %p147, %p148
    %p150 = scmp.ne.s32.totalorder %s138, %s139
    %p151 = scmp.eq.s32.totalorder %s20, 3
    %p152 = por %p150, %p151
    %p154 = scmp.ne.s32.totalorder %s139, %s153
    %p155 = scmp.eq.s32.totalorder %s20, 0
    %p156 = por %p154, %p155
    %s158 = sadd.s32 %s157, 1
    %p161 = scmp.eq.s32.totalorder %s14, 3
    %p162 = scmp.ne.s32.totalorder %s157, %s159
    %p163 = scmp.eq.s32.totalorder %s14, 0
    %p164 = por %p162, %p163
    %p165 = scmp.ne.s32.totalorder %s157, %s159
    %p166 = scmp.eq.s32.totalorder %s19, 3
    %p167 = por %p165, %p166
    %p168 = scmp.ne.s32.totalorder %s159, %s160
    %p169 = scmp.eq.s32.totalorder %s19, 0
    %p170 = por %p168, %p169
    %p171 = scmp.ne.s32.totalorder %s159, %s160
    %p172 = scmp.eq.s32.totalorder %s20, 3
    %p173 = por %p171, %p172
    %p175 = scmp.ne.s32.totalorder %s160, %s174
    %p176 = scmp.eq.s32.totalorder %s20, 0
    %p177 = por %p175, %p176
    %s179 = sadd.s32 %s178, 1
    %p182 = scmp.eq.s32.totalorder %s14, 3
    %p183 = scmp.ne.s32.totalorder %s178, %s180
    %p184 = scmp.eq.s32.totalorder %s14, 0
    %p185 = por %p183, %p184
    %p186 = scmp.ne.s32.totalorder %s178, %s180
    %p187 = scmp.eq.s32.totalorder %s19, 3
    %p188 = por %p186, %p187
    %p189 = scmp.ne.s32.totalorder %s180, %s181
    %p190 = scmp.eq.s32.totalorder %s19, 0
    %p191 = por %p189, %p190
    %p192 = scmp.ne.s32.totalorder %s180, %s181
    %p193 = scmp.eq.s32.totalorder %s20, 3
    %p194 = por %p192, %p193
    %p196 = scmp.ne.s32.totalorder %s181, %s195
    %p197 = scmp.eq.s32.totalorder %s20, 0
    %p198 = por %p196, %p197
    %s200 = sadd.s32 %s199, 1
    %p203 = scmp.eq.s32.totalorder %s14, 3
    %p204 = scmp.ne.s32.totalorder %s199, %s201
    %p205 = scmp.eq.s32.totalorder %s14, 0
    %p206 = por %p204, %p205
    %p207 = scmp.ne.s32.totalorder %s199, %s201
    %p208 = scmp.eq.s32.totalorder %s19, 3
    %p209 = por %p207, %p208
    %p210 = scmp.ne.s32.totalorder %s201, %s202
    %p211 = scmp.eq.s32.totalorder %s19, 0
    %p212 = por %p210, %p211
    %p213 = scmp.ne.s32.totalorder %s201, %s202
    %p214 = scmp.eq.s32.totalorder %s20, 3
    %p215 = por %p213, %p214
    %p217 = scmp.ne.s32.totalorder %s202, %s216
    %p218 = scmp.eq.s32.totalorder %s20, 0
    %p219 = por %p217, %p218
    %s220 = ssub.s32 %s21, %s33
    %s221 = ssub.s32 %s22, %s29
    %s222 = sor.u32 %s220, %s221
    %p223 = scmp.eq.s32.totalorder %s222, 0
    %s225 = sadd.s32 %s224, 1
    %s226 = scalar_select %p223, %s224, %s225
    %p229 = pneg %p223
    %p230 = scmp.eq.s32.totalorder %s14, 3
    %p231 = por %p229, %p230
    %p232 = scmp.ne.s32.totalorder %s224, %s227
    %p233 = scmp.eq.s32.totalorder %s14, 0
    %p234 = por %p232, %p233
    %p235 = scmp.ne.s32.totalorder %s224, %s227
    %p236 = scmp.eq.s32.totalorder %s19, 3
    %p237 = por %p235, %p236
    %p238 = scmp.ne.s32.totalorder %s227, %s228
    %p239 = scmp.eq.s32.totalorder %s19, 0
    %p240 = por %p238, %p239
    %p241 = scmp.ne.s32.totalorder %s227, %s228
    %p242 = scmp.eq.s32.totalorder %s20, 3
    %p243 = por %p241, %p242
    %p245 = scmp.ne.s32.totalorder %s228, %s244
    %p246 = scmp.eq.s32.totalorder %s20, 0
    %p247 = por %p245, %p246
    %p248 = scmp.le.s32.totalorder 1, %s14
    %p249 = scmp.lt.s32.totalorder %s14, 5
    %p250 = pnand %p248, %p249
    %p251 = pneg %p250
    // Predicated region
    $region9: #{double_conv_forward.1} parent=5 // pred_check
      _
    $region10: #{double_conv_forward.1} parent=5 // pred_check_branch
      %253 = sbr.rel (%p250) target = $region12
    $region11: #{double_conv_forward.1} parent=5 // pred_region
      %s254 = ssub.s32 %s14, 1
      // Predicated region
      $region13: #{double_conv_forward.1} parent=11 // pred_check
        %p255 = pneg %p107
      $region14: #{double_conv_forward.1} parent=11 // pred_check_branch
        %257 = sbr.rel (%p255) target = $region16
      $region15: #{double_conv_forward.1} parent=11 // pred_region
        _
      $region16: #{double_conv_forward.1} parent=11 // pred_fallthru
        _
      // Predicated region
      $region17: #{double_conv_forward.1} parent=11 // pred_check
        %p258 = pneg %p128
      $region18: #{double_conv_forward.1} parent=11 // pred_check_branch
        %260 = sbr.rel (%p258) target = $region20
      $region19: #{double_conv_forward.1} parent=11 // pred_region
        _
      $region20: #{double_conv_forward.1} parent=11 // pred_fallthru
        _
      // Predicated region
      $region21: #{double_conv_forward.1} parent=11 // pred_check
        %p261 = pneg %p149
      $region22: #{double_conv_forward.1} parent=11 // pred_check_branch
        %263 = sbr.rel (%p261) target = $region24
      $region23: #{double_conv_forward.1} parent=11 // pred_region
        _
      $region24: #{double_conv_forward.1} parent=11 // pred_fallthru
        _
      // Predicated region
      $region25: #{double_conv_forward.1} parent=11 // pred_check
        %p264 = pneg %p170
      $region26: #{double_conv_forward.1} parent=11 // pred_check_branch
        %266 = sbr.rel (%p264) target = $region28
      $region27: #{double_conv_forward.1} parent=11 // pred_region
        _
      $region28: #{double_conv_forward.1} parent=11 // pred_fallthru
        _
      // Predicated region
      $region29: #{double_conv_forward.1} parent=11 // pred_check
        %p267 = pneg %p191
      $region30: #{double_conv_forward.1} parent=11 // pred_check_branch
        %269 = sbr.rel (%p267) target = $region32
      $region31: #{double_conv_forward.1} parent=11 // pred_region
        _
      $region32: #{double_conv_forward.1} parent=11 // pred_fallthru
        _
      // Predicated region
      $region33: #{double_conv_forward.1} parent=11 // pred_check
        %p270 = pneg %p212
      $region34: #{double_conv_forward.1} parent=11 // pred_check_branch
        %272 = sbr.rel (%p270) target = $region36
      $region35: #{double_conv_forward.1} parent=11 // pred_region
        _
      $region36: #{double_conv_forward.1} parent=11 // pred_fallthru
        _
    $region12: #{double_conv_forward.1} parent=5 // pred_fallthru
      _
    %p273 = scmp.lt.s32.totalorder %s14, 4
    // Predicated region
    $region37: #{double_conv_forward.1} parent=5 // pred_check
      %p274 = pneg %p273
    $region38: #{double_conv_forward.1} parent=5 // pred_check_branch
      %276 = sbr.rel (%p274) target = $region40
    $region39: #{double_conv_forward.1} parent=5 // pred_region
      // Predicated region
      $region41: #{double_conv_forward.1} parent=39 // pred_check
        %p277 = pneg %p48
      $region42: #{double_conv_forward.1} parent=39 // pred_check_branch
        %279 = sbr.rel (%p277) target = $region44
      $region43: #{double_conv_forward.1} parent=39 // pred_region
        %s280 = smul.u32 8, %s22
        %p281 = scmp.lt.s32.totalorder %s21, 1
        %s282 = scalar_select %p281, %s21, 1
        %p283 = scmp.lt.s32.totalorder %s280, 23
        %s284 = scalar_select %p283, %s280, 23
        %s285 = smul.addr %s284, 3
        %s286 = smul.addr %s282, 72
        %s287 = sadd.s32 %s285, %s286
        %s288 = smul.addr %s287, 4
        %s289 = scalar_lea.vmem %s0, %s288
        %s290 = smul.u32 8, %s22
      $region44: #{double_conv_forward.1} parent=39 // pred_fallthru
        _
      // Predicated region
      $region45: #{double_conv_forward.1} parent=39 // pred_check
        %p291 = pneg %p80
      $region46: #{double_conv_forward.1} parent=39 // pred_check_branch
        %293 = sbr.rel (%p291) target = $region48
      $region47: #{double_conv_forward.1} parent=39 // pred_region
        %s294 = sadd.s32 %s22, 1
        %s295 = smul.u32 %s294, 2
        %s296 = smul.u32 4, %s295
        %p297 = scmp.lt.s32.totalorder %s21, 1
        %s298 = scalar_select %p297, %s21, 1
        %p299 = scmp.lt.s32.totalorder %s296, 23
        %s300 = scalar_select %p299, %s296, 23
        %s301 = smul.addr %s300, 3
        %s302 = smul.addr %s298, 72
        %s303 = sadd.s32 %s301, %s302
        %s304 = smul.addr %s303, 4
        %s305 = scalar_lea.vmem %s1, %s304
        %s306 = sadd.s32 %s22, 1
        %s307 = smul.u32 %s306, 2
        %s308 = smul.u32 4, %s307
      $region48: #{double_conv_forward.1} parent=39 // pred_fallthru
        _
    $region40: #{double_conv_forward.1} parent=5 // pred_fallthru
      _
    %p309 = scmp.le.s32.totalorder 1, %s14
    %p310 = scmp.lt.s32.totalorder %s14, 5
    %p311 = pnand %p309, %p310
    %p312 = pneg %p311
    // Predicated region
    $region49: #{double_conv_forward.1} parent=5 // pred_check
      _
    $region50: #{double_conv_forward.1} parent=5 // pred_check_branch
      %314 = sbr.rel (%p311) target = $region52
    $region51: #{double_conv_forward.1} parent=5 // pred_region
      %s315 = ssub.s32 %s14, 1
      %s316 = smul.u32 8, %s24
      %p317 = scmp.lt.s32.totalorder %s23, 1
      %s318 = scalar_select %p317, %s23, 1
      %p319 = scmp.lt.s32.totalorder %s316, 23
      %s320 = scalar_select %p319, %s316, 23
      %s321 = smul.addr %s320, 3
      %s322 = smul.addr %s318, 72
      %s323 = sadd.s32 %s321, %s322
      %s324 = smul.addr %s323, 4
      %s325 = scalar_lea.vmem %s0, %s324
      %p326 = pneg %p54
      %p327 = pneg %p51
      %s328 = sadd.s32 %s24, 1
      %s329 = smul.u32 %s328, 2
      %s330 = smul.u32 4, %s329
      %p331 = scmp.lt.s32.totalorder %s23, 1
      %s332 = scalar_select %p331, %s23, 1
      %p333 = scmp.lt.s32.totalorder %s330, 23
      %s334 = scalar_select %p333, %s330, 23
      %s335 = smul.addr %s334, 3
      %s336 = smul.addr %s332, 72
      %s337 = sadd.s32 %s335, %s336
      %s338 = smul.addr %s337, 4
      %s339 = scalar_lea.vmem %s1, %s338
      %p340 = pneg %p86
      %p341 = pneg %p83
      %p342 = pneg %p107
      %p343 = pneg %p104
      %p344 = pneg %p128
      %p345 = pneg %p125
      %p346 = pneg %p149
      %p347 = pneg %p146
      %p348 = pneg %p170
      %p349 = pneg %p167
      %p350 = pneg %p191
      %p351 = pneg %p188
      %p352 = pneg %p212
      %p353 = pneg %p209
      %p354 = pneg %p240
      %p355 = pneg %p237
      %s356 = smul.u32 8, %s24
      %p357 = scmp.lt.s32.totalorder %s23, 1
      %s358 = scalar_select %p357, %s23, 1
      %p359 = scmp.lt.s32.totalorder %s356, 15
      %s360 = scalar_select %p359, %s356, 15
      %s361 = smul.addr %s360, 2
      %s362 = smul.addr %s358, 32
      %s363 = sadd.s32 %s361, %s362
      %s364 = smul.addr %s363, 8
      %s365 = scalar_lea.vmem %s8, %s364
      %s366 = smul.u32 8, %s24
      %p367 = scmp.lt.s32.totalorder %s23, 1
      %s368 = scalar_select %p367, %s23, 1
      %p369 = scmp.lt.s32.totalorder %s366, 23
      %s370 = scalar_select %p369, %s366, 23
      %s371 = smul.addr %s370, 3
      %s372 = smul.addr %s368, 72
      %s373 = sadd.s32 %s371, %s372
      %s374 = smul.addr %s373, 4
      %s375 = scalar_lea.vmem %s0, %s374
      %s376 = smul.u32 8, %s24
      %s377 = sadd.s32 %s24, 1
      %s378 = smul.u32 %s377, 2
      %s379 = smul.u32 4, %s378
      %p380 = scmp.lt.s32.totalorder %s23, 1
      %s381 = scalar_select %p380, %s23, 1
      %p382 = scmp.lt.s32.totalorder %s379, 23
      %s383 = scalar_select %p382, %s379, 23
      %s384 = smul.addr %s383, 3
      %s385 = smul.addr %s381, 72
      %s386 = sadd.s32 %s384, %s385
      %s387 = smul.addr %s386, 4
      %s388 = scalar_lea.vmem %s1, %s387
      %s389 = sadd.s32 %s24, 1
      %s390 = smul.u32 %s389, 2
      %s391 = smul.u32 4, %s390
      %s392 = smul.u32 8, %s24
      %p393 = scmp.lt.s32.totalorder %s23, 1
      %s394 = scalar_select %p393, %s23, 1
      %p395 = scmp.lt.s32.totalorder %s392, 15
      %s396 = scalar_select %p395, %s392, 15
      %s397 = smul.addr %s396, 2
      %s398 = smul.addr %s394, 32
      %s399 = sadd.s32 %s397, %s398
      %s400 = smul.addr %s399, 8
      %s401 = scalar_lea.vmem %s8, %s400
      %s402 = smul.u32 8, %s24
      %v404 = vld [vmem:[%s375] sm:$0xf]
      %v405 = vld [vmem:[%s375 + $0x4] sm:$0xf]
      %v406 = vld [vmem:[%s375 + $0x8] sm:$0x1]
      %v407 = vld [vmem:[%s375 + $0xc] sm:$0xf]
      %v408 = vld [vmem:[%s375 + $0x10] sm:$0xf]
      %v409 = vld [vmem:[%s375 + $0x14] sm:$0x1]
      %v410 = vld [vmem:[%s375 + $0x18] sm:$0xf]
      %v411 = vld [vmem:[%s375 + $0x1c] sm:$0xf]
      %v412 = vld [vmem:[%s375 + $0x20] sm:$0x1]
      %v413 = vld [vmem:[%s375 + $0x24] sm:$0xf]
      %v414 = vld [vmem:[%s375 + $0x28] sm:$0xf]
      %v415 = vld [vmem:[%s375 + $0x2c] sm:$0x1]
      %v416 = vld [vmem:[%s375 + $0x30] sm:$0xf]
      %v417 = vld [vmem:[%s375 + $0x34] sm:$0xf]
      %v418 = vld [vmem:[%s375 + $0x38] sm:$0x1]
      %v419 = vld [vmem:[%s375 + $0x3c] sm:$0xf]
      %v420 = vld [vmem:[%s375 + $0x40] sm:$0xf]
      %v421 = vld [vmem:[%s375 + $0x44] sm:$0x1]
      %v422 = vld [vmem:[%s375 + $0x48] sm:$0xf]
      %v423 = vld [vmem:[%s375 + $0x4c] sm:$0xf]
      %v424 = vld [vmem:[%s375 + $0x50] sm:$0x1]
      %v425 = vld [vmem:[%s375 + $0x54] sm:$0xf]
      %v426 = vld [vmem:[%s375 + $0x58] sm:$0xf]
      %v427 = vld [vmem:[%s375 + $0x5c] sm:$0x1]
      %vm428 = vcmask 60416
      %429 = vst.msk [vmem:[#allocation2] sm:$0xf] %vm428, %v404
      %430 = vst.msk [vmem:[#allocation2 + $0x4] sm:$0xf] %vm428, %v405
      %vm431 = vcmask 57344
      %432 = vst.msk [vmem:[#allocation2 + $0x8] sm:$0x1] %vm431, %v406
      %433 = vst.msk [vmem:[#allocation2 + $0xc] sm:$0xf] %vm428, %v407
      %434 = vst.msk [vmem:[#allocation2 + $0x10] sm:$0xf] %vm428, %v408
      %435 = vst.msk [vmem:[#allocation2 + $0x14] sm:$0x1] %vm431, %v409
      %436 = vst.msk [vmem:[#allocation2 + $0x18] sm:$0xf] %vm428, %v410
      %437 = vst.msk [vmem:[#allocation2 + $0x1c] sm:$0xf] %vm428, %v411
      %438 = vst.msk [vmem:[#allocation2 + $0x20] sm:$0x1] %vm431, %v412
      %439 = vst.msk [vmem:[#allocation2 + $0x24] sm:$0xf] %vm428, %v413
      %440 = vst.msk [vmem:[#allocation2 + $0x28] sm:$0xf] %vm428, %v414
      %441 = vst.msk [vmem:[#allocation2 + $0x2c] sm:$0x1] %vm431, %v415
      %442 = vst.msk [vmem:[#allocation2 + $0x30] sm:$0xf] %vm428, %v416
      %443 = vst.msk [vmem:[#allocation2 + $0x34] sm:$0xf] %vm428, %v417
      %444 = vst.msk [vmem:[#allocation2 + $0x38] sm:$0x1] %vm431, %v418
      %445 = vst.msk [vmem:[#allocation2 + $0x3c] sm:$0xf] %vm428, %v419
      %446 = vst.msk [vmem:[#allocation2 + $0x40] sm:$0xf] %vm428, %v420
      %447 = vst.msk [vmem:[#allocation2 + $0x44] sm:$0x1] %vm431, %v421
      %448 = vst.msk [vmem:[#allocation2 + $0x48] sm:$0xf] %vm428, %v422
      %449 = vst.msk [vmem:[#allocation2 + $0x4c] sm:$0xf] %vm428, %v423
      %450 = vst.msk [vmem:[#allocation2 + $0x50] sm:$0x1] %vm431, %v424
      %451 = vst.msk [vmem:[#allocation2 + $0x54] sm:$0xf] %vm428, %v425
      %452 = vst.msk [vmem:[#allocation2 + $0x58] sm:$0xf] %vm428, %v426
      %453 = vst.msk [vmem:[#allocation2 + $0x5c] sm:$0x1] %vm431, %v427
      %v454 = vld [vmem:[%s388] sm:$0xf]
      %v455 = vld [vmem:[%s388 + $0x4] sm:$0xf]
      %v456 = vld [vmem:[%s388 + $0x8] sm:$0x1]
      %v457 = vld [vmem:[%s388 + $0xc] sm:$0xf]
      %v458 = vld [vmem:[%s388 + $0x10] sm:$0xf]
      %v459 = vld [vmem:[%s388 + $0x14] sm:$0x1]
      %v460 = vld [vmem:[%s388 + $0x18] sm:$0xf]
      %v461 = vld [vmem:[%s388 + $0x1c] sm:$0xf]
      %v462 = vld [vmem:[%s388 + $0x20] sm:$0x1]
      %v463 = vld [vmem:[%s388 + $0x24] sm:$0xf]
      %v464 = vld [vmem:[%s388 + $0x28] sm:$0xf]
      %v465 = vld [vmem:[%s388 + $0x2c] sm:$0x1]
      %s466 = scalar_lea.vmem [#allocation2], 96
      %467 = vst.msk [vmem:[%s466] sm:$0xf] %vm428, %v454
      %468 = vst.msk [vmem:[%s466 + $0x4] sm:$0xf] %vm428, %v455
      %469 = vst.msk [vmem:[%s466 + $0x8] sm:$0x1] %vm431, %v456
      %470 = vst.msk [vmem:[%s466 + $0xc] sm:$0xf] %vm428, %v457
      %471 = vst.msk [vmem:[%s466 + $0x10] sm:$0xf] %vm428, %v458
      %472 = vst.msk [vmem:[%s466 + $0x14] sm:$0x1] %vm431, %v459
      %473 = vst.msk [vmem:[%s466 + $0x18] sm:$0xf] %vm428, %v460
      %474 = vst.msk [vmem:[%s466 + $0x1c] sm:$0xf] %vm428, %v461
      %475 = vst.msk [vmem:[%s466 + $0x20] sm:$0x1] %vm431, %v462
      %476 = vst.msk [vmem:[%s466 + $0x24] sm:$0xf] %vm428, %v463
      %477 = vst.msk [vmem:[%s466 + $0x28] sm:$0xf] %vm428, %v464
      %478 = vst.msk [vmem:[%s466 + $0x2c] sm:$0x1] %vm431, %v465
      %v479 = vld [vmem:[#allocation2] sm:$0xf]
      %v480 = vld [vmem:[#allocation2 + $0x4] sm:$0xf]
      %v481 = vld [vmem:[#allocation2 + $0xc] sm:$0xf]
      %v482 = vld [vmem:[#allocation2 + $0x10] sm:$0xf]
      %v483 = vld [vmem:[#allocation2 + $0x18] sm:$0xf]
      %v484 = vld [vmem:[#allocation2 + $0x1c] sm:$0xf]
      %v485 = vld [vmem:[#allocation2 + $0x24] sm:$0xf]
      %v486 = vld [vmem:[#allocation2 + $0x28] sm:$0xf]
      %v487 = vld [vmem:[#allocation2 + $0x30] sm:$0xf]
      %v488 = vld [vmem:[#allocation2 + $0x34] sm:$0xf]
      %v489 = vld [vmem:[#allocation2 + $0x3c] sm:$0xf]
      %v490 = vld [vmem:[#allocation2 + $0x40] sm:$0xf]
      %v491 = vld [vmem:[#allocation2 + $0x48] sm:$0xf]
      %v492 = vld [vmem:[#allocation2 + $0x4c] sm:$0xf]
      %v493 = vld [vmem:[#allocation2 + $0x54] sm:$0xf]
      %v494 = vld [vmem:[#allocation2 + $0x58] sm:$0xf]
      %v495 = vld [vmem:[#allocation2 + $0x60] sm:$0xf]
      %v496 = vld [vmem:[#allocation2 + $0x64] sm:$0xf]
      %v497 = vld [vmem:[#allocation2 + $0x6c] sm:$0xf]
      %v498 = vld [vmem:[#allocation2 + $0x70] sm:$0xf]
      %499 = vst.msk [vmem:[#allocation3] sm:$0xf] %vm428, %v479
      %500 = vst.msk [vmem:[#allocation3 + $0x4] sm:$0xf] %vm428, %v480
      %501 = vst.msk [vmem:[#allocation3 + $0x8] sm:$0xf] %vm428, %v481
      %502 = vst.msk [vmem:[#allocation3 + $0xc] sm:$0xf] %vm428, %v482
      %503 = vst.msk [vmem:[#allocation3 + $0x10] sm:$0xf] %vm428, %v483
      %504 = vst.msk [vmem:[#allocation3 + $0x14] sm:$0xf] %vm428, %v484
      %505 = vst.msk [vmem:[#allocation3 + $0x18] sm:$0xf] %vm428, %v485
      %506 = vst.msk [vmem:[#allocation3 + $0x1c] sm:$0xf] %vm428, %v486
      %507 = vst.msk [vmem:[#allocation3 + $0x20] sm:$0xf] %vm428, %v487
      %508 = vst.msk [vmem:[#allocation3 + $0x24] sm:$0xf] %vm428, %v488
      %509 = vst.msk [vmem:[#allocation3 + $0x28] sm:$0xf] %vm428, %v489
      %510 = vst.msk [vmem:[#allocation3 + $0x2c] sm:$0xf] %vm428, %v490
      %511 = vst.msk [vmem:[#allocation3 + $0x30] sm:$0xf] %vm428, %v491
      %512 = vst.msk [vmem:[#allocation3 + $0x34] sm:$0xf] %vm428, %v492
      %513 = vst.msk [vmem:[#allocation3 + $0x38] sm:$0xf] %vm428, %v493
      %514 = vst.msk [vmem:[#allocation3 + $0x3c] sm:$0xf] %vm428, %v494
      %515 = vst.msk [vmem:[#allocation3 + $0x40] sm:$0xf] %vm428, %v495
      %516 = vst.msk [vmem:[#allocation3 + $0x44] sm:$0xf] %vm428, %v496
      %517 = vst.msk [vmem:[#allocation3 + $0x48] sm:$0xf] %vm428, %v497
      %518 = vst.msk [vmem:[#allocation3 + $0x4c] sm:$0xf] %vm428, %v498
      %v519 = vld [vmem:[#allocation2] sm:$0xf]
      %v520 = vld [vmem:[#allocation2 + $0x4] sm:$0xf]
      %v521 = vld [vmem:[#allocation2 + $0x8] sm:$0x1]
      %v522 = vld [vmem:[#allocation2 + $0xc] sm:$0xf]
      %v523 = vld [vmem:[#allocation2 + $0x10] sm:$0xf]
      %v524 = vld [vmem:[#allocation2 + $0x14] sm:$0x1]
      %v525 = vld [vmem:[#allocation2 + $0x18] sm:$0xf]
      %v526 = vld [vmem:[#allocation2 + $0x1c] sm:$0xf]
      %v527 = vld [vmem:[#allocation2 + $0x20] sm:$0x1]
      %v528 = vld [vmem:[#allocation2 + $0x24] sm:$0xf]
      %v529 = vld [vmem:[#allocation2 + $0x28] sm:$0xf]
      %v530 = vld [vmem:[#allocation2 + $0x2c] sm:$0x1]
      %v531 = vld [vmem:[#allocation2 + $0x30] sm:$0xf]
      %v532 = vld [vmem:[#allocation2 + $0x34] sm:$0xf]
      %v533 = vld [vmem:[#allocation2 + $0x38] sm:$0x1]
      %v534 = vld [vmem:[#allocation2 + $0x3c] sm:$0xf]
      %v535 = vld [vmem:[#allocation2 + $0x40] sm:$0xf]
      %v536 = vld [vmem:[#allocation2 + $0x44] sm:$0x1]
      %v537 = vld [vmem:[#allocation2 + $0x48] sm:$0xf]
      %v538 = vld [vmem:[#allocation2 + $0x4c] sm:$0xf]
      %v539 = vld [vmem:[#allocation2 + $0x50] sm:$0x1]
      %v540 = vld [vmem:[#allocation2 + $0x54] sm:$0xf]
      %v541 = vld [vmem:[#allocation2 + $0x58] sm:$0xf]
      %v542 = vld [vmem:[#allocation2 + $0x5c] sm:$0x1]
      %v543 = vld [vmem:[#allocation2 + $0x60] sm:$0xf]
      %v544 = vld [vmem:[#allocation2 + $0x64] sm:$0xf]
      %v545 = vld [vmem:[#allocation2 + $0x68] sm:$0x1]
      %v546 = vld [vmem:[#allocation2 + $0x6c] sm:$0xf]
      %v547 = vld [vmem:[#allocation2 + $0x70] sm:$0xf]
      %v548 = vld [vmem:[#allocation2 + $0x74] sm:$0x1]
      %vm549 = vsmask.f32 3328
      %vm550 = vsmask.f32 7440
      %vm551 = vmor %vm549, %vm550
      %v553 = vshrl.u32 %v519, 16
      %v555 = vrot.slane %v553, 4
      %v556 = vshll.u32 %v519, 16
      %v558 = vrot.slane %v556, 5
      %v559 = vor.u32 %v555, %v558
      %v560 = vrot.slane %v559, 4
      %v562 = vshll.u32 %v520, 16
      %v564 = vrot.slane %v562, 5
      %v565 = vsel %vm551, %v560, %v564
      %v566 = vshrl.u32 %v520, 16
      %v568 = vrot.slane %v566, 4
      %v569 = vor.u32 %v568, %v564
      %v570 = vrot.slane %v569, 4
      %v572 = vshll.u32 %v521, 16
      %v574 = vrot.slane %v572, 5
      %v575 = vsel %vm551, %v570, %v574
      %v577 = vshrl.u32 %v522, 16
      %v579 = vrot.slane %v577, 4
      %v580 = vshll.u32 %v522, 16
      %v582 = vrot.slane %v580, 5
      %v583 = vor.u32 %v579, %v582
      %v584 = vrot.slane %v583, 4
      %v586 = vshll.u32 %v523, 16
      %v588 = vrot.slane %v586, 5
      %v589 = vsel %vm551, %v584, %v588
      %v590 = vshrl.u32 %v523, 16
      %v592 = vrot.slane %v590, 4
      %v593 = vor.u32 %v592, %v588
      %v594 = vrot.slane %v593, 4
      %v596 = vshll.u32 %v524, 16
      %v598 = vrot.slane %v596, 5
      %v599 = vsel %vm551, %v594, %v598
      %v601 = vshrl.u32 %v525, 16
      %v603 = vrot.slane %v601, 4
      %v604 = vshll.u32 %v525, 16
      %v606 = vrot.slane %v604, 5
      %v607 = vor.u32 %v603, %v606
      %v608 = vrot.slane %v607, 4
      %v610 = vshll.u32 %v526, 16
      %v612 = vrot.slane %v610, 5
      %v613 = vsel %vm551, %v608, %v612
      %v614 = vshrl.u32 %v526, 16
      %v616 = vrot.slane %v614, 4
      %v617 = vor.u32 %v616, %v612
      %v618 = vrot.slane %v617, 4
      %v620 = vshll.u32 %v527, 16
      %v622 = vrot.slane %v620, 5
      %v623 = vsel %vm551, %v618, %v622
      %v625 = vshrl.u32 %v528, 16
      %v627 = vrot.slane %v625, 4
      %v628 = vshll.u32 %v528, 16
      %v630 = vrot.slane %v628, 5
      %v631 = vor.u32 %v627, %v630
      %v632 = vrot.slane %v631, 4
      %v634 = vshll.u32 %v529, 16
      %v636 = vrot.slane %v634, 5
      %v637 = vsel %vm551, %v632, %v636
      %v638 = vshrl.u32 %v529, 16
      %v640 = vrot.slane %v638, 4
      %v641 = vor.u32 %v640, %v636
      %v642 = vrot.slane %v641, 4
      %v644 = vshll.u32 %v530, 16
      %v646 = vrot.slane %v644, 5
      %v647 = vsel %vm551, %v642, %v646
      %v649 = vshrl.u32 %v531, 16
      %v651 = vrot.slane %v649, 4
      %v652 = vshll.u32 %v531, 16
      %v654 = vrot.slane %v652, 5
      %v655 = vor.u32 %v651, %v654
      %v656 = vrot.slane %v655, 4
      %v658 = vshll.u32 %v532, 16
      %v660 = vrot.slane %v658, 5
      %v661 = vsel %vm551, %v656, %v660
      %v662 = vshrl.u32 %v532, 16
      %v664 = vrot.slane %v662, 4
      %v665 = vor.u32 %v664, %v660
      %v666 = vrot.slane %v665, 4
      %v668 = vshll.u32 %v533, 16
      %v670 = vrot.slane %v668, 5
      %v671 = vsel %vm551, %v666, %v670
      %v673 = vshrl.u32 %v534, 16
      %v675 = vrot.slane %v673, 4
      %v676 = vshll.u32 %v534, 16
      %v678 = vrot.slane %v676, 5
      %v679 = vor.u32 %v675, %v678
      %v680 = vrot.slane %v679, 4
      %v682 = vshll.u32 %v535, 16
      %v684 = vrot.slane %v682, 5
      %v685 = vsel %vm551, %v680, %v684
      %v686 = vshrl.u32 %v535, 16
      %v688 = vrot.slane %v686, 4
      %v689 = vor.u32 %v688, %v684
      %v690 = vrot.slane %v689, 4
      %v692 = vshll.u32 %v536, 16
      %v694 = vrot.slane %v692, 5
      %v695 = vsel %vm551, %v690, %v694
      %v697 = vshrl.u32 %v537, 16
      %v699 = vrot.slane %v697, 4
      %v700 = vshll.u32 %v537, 16
      %v702 = vrot.slane %v700, 5
      %v703 = vor.u32 %v699, %v702
      %v704 = vrot.slane %v703, 4
      %v706 = vshll.u32 %v538, 16
      %v708 = vrot.slane %v706, 5
      %v709 = vsel %vm551, %v704, %v708
      %v710 = vshrl.u32 %v538, 16
      %v712 = vrot.slane %v710, 4
      %v713 = vor.u32 %v712, %v708
      %v714 = vrot.slane %v713, 4
      %v716 = vshll.u32 %v539, 16
      %v718 = vrot.slane %v716, 5
      %v719 = vsel %vm551, %v714, %v718
      %v721 = vshrl.u32 %v540, 16
      %v723 = vrot.slane %v721, 4
      %v724 = vshll.u32 %v540, 16
      %v726 = vrot.slane %v724, 5
      %v727 = vor.u32 %v723, %v726
      %v728 = vrot.slane %v727, 4
      %v730 = vshll.u32 %v541, 16
      %v732 = vrot.slane %v730, 5
      %v733 = vsel %vm551, %v728, %v732
      %v734 = vshrl.u32 %v541, 16
      %v736 = vrot.slane %v734, 4
      %v737 = vor.u32 %v736, %v732
      %v738 = vrot.slane %v737, 4
      %v740 = vshll.u32 %v542, 16
      %v742 = vrot.slane %v740, 5
      %v743 = vsel %vm551, %v738, %v742
      %v745 = vshrl.u32 %v543, 16
      %v747 = vrot.slane %v745, 4
      %v748 = vshll.u32 %v543, 16
      %v750 = vrot.slane %v748, 5
      %v751 = vor.u32 %v747, %v750
      %v752 = vrot.slane %v751, 4
      %v754 = vshll.u32 %v544, 16
      %v756 = vrot.slane %v754, 5
      %v757 = vsel %vm551, %v752, %v756
      %v758 = vshrl.u32 %v544, 16
      %v760 = vrot.slane %v758, 4
      %v761 = vor.u32 %v760, %v756
      %v762 = vrot.slane %v761, 4
      %v764 = vshll.u32 %v545, 16
      %v766 = vrot.slane %v764, 5
      %v767 = vsel %vm551, %v762, %v766
      %v769 = vshrl.u32 %v546, 16
      %v771 = vrot.slane %v769, 4
      %v772 = vshll.u32 %v546, 16
      %v774 = vrot.slane %v772, 5
      %v775 = vor.u32 %v771, %v774
      %v776 = vrot.slane %v775, 4
      %v778 = vshll.u32 %v547, 16
      %v780 = vrot.slane %v778, 5
      %v781 = vsel %vm551, %v776, %v780
      %v782 = vshrl.u32 %v547, 16
      %v784 = vrot.slane %v782, 4
      %v785 = vor.u32 %v784, %v780
      %v786 = vrot.slane %v785, 4
      %v788 = vshll.u32 %v548, 16
      %v790 = vrot.slane %v788, 5
      %v791 = vsel %vm551, %v786, %v790
      %792 = vrot.lane.b32.xlu0 %v565, 8
      %v793 = vpop.permute.xlu0 %792
      %794 = vrot.lane.b32.xlu0 %v575, 8
      %v795 = vpop.permute.xlu0 %794
      %796 = vrot.lane.b32.xlu0 %v589, 8
      %v797 = vpop.permute.xlu0 %796
      %798 = vrot.lane.b32.xlu0 %v599, 8
      %v799 = vpop.permute.xlu0 %798
      %800 = vrot.lane.b32.xlu0 %v613, 8
      %v801 = vpop.permute.xlu0 %800
      %802 = vrot.lane.b32.xlu0 %v623, 8
      %v803 = vpop.permute.xlu0 %802
      %804 = vrot.lane.b32.xlu0 %v637, 8
      %v805 = vpop.permute.xlu0 %804
      %806 = vrot.lane.b32.xlu0 %v647, 8
      %v807 = vpop.permute.xlu0 %806
      %808 = vrot.lane.b32.xlu0 %v661, 8
      %v809 = vpop.permute.xlu0 %808
      %810 = vrot.lane.b32.xlu0 %v671, 8
      %v811 = vpop.permute.xlu0 %810
      %812 = vrot.lane.b32.xlu0 %v685, 8
      %v813 = vpop.permute.xlu0 %812
      %814 = vrot.lane.b32.xlu0 %v695, 8
      %v815 = vpop.permute.xlu0 %814
      %816 = vrot.lane.b32.xlu0 %v709, 8
      %v817 = vpop.permute.xlu0 %816
      %818 = vrot.lane.b32.xlu0 %v719, 8
      %v819 = vpop.permute.xlu0 %818
      %820 = vrot.lane.b32.xlu0 %v733, 8
      %v821 = vpop.permute.xlu0 %820
      %822 = vrot.lane.b32.xlu0 %v743, 8
      %v823 = vpop.permute.xlu0 %822
      %824 = vrot.lane.b32.xlu0 %v757, 8
      %v825 = vpop.permute.xlu0 %824
      %826 = vrot.lane.b32.xlu0 %v767, 8
      %v827 = vpop.permute.xlu0 %826
      %828 = vrot.lane.b32.xlu0 %v781, 8
      %v829 = vpop.permute.xlu0 %828
      %830 = vrot.lane.b32.xlu0 %v791, 8
      %v831 = vpop.permute.xlu0 %830
      %vm852 = vcmask 126016
      %853 = vst.msk [vmem:[#allocation3] sm:$0xf] %vm852, %v793
      %854 = vst.msk [vmem:[#allocation3 + $0x4] sm:$0xf] %vm852, %v795
      %855 = vst.msk [vmem:[#allocation3 + $0x8] sm:$0xf] %vm852, %v797
      %856 = vst.msk [vmem:[#allocation3 + $0xc] sm:$0xf] %vm852, %v799
      %857 = vst.msk [vmem:[#allocation3 + $0x10] sm:$0xf] %vm852, %v801
      %858 = vst.msk [vmem:[#allocation3 + $0x14] sm:$0xf] %vm852, %v803
      %859 = vst.msk [vmem:[#allocation3 + $0x18] sm:$0xf] %vm852, %v805
      %860 = vst.msk [vmem:[#allocation3 + $0x1c] sm:$0xf] %vm852, %v807
      %861 = vst.msk [vmem:[#allocation3 + $0x20] sm:$0xf] %vm852, %v809
      %862 = vst.msk [vmem:[#allocation3 + $0x24] sm:$0xf] %vm852, %v811
      %863 = vst.msk [vmem:[#allocation3 + $0x28] sm:$0xf] %vm852, %v813
      %864 = vst.msk [vmem:[#allocation3 + $0x2c] sm:$0xf] %vm852, %v815
      %865 = vst.msk [vmem:[#allocation3 + $0x30] sm:$0xf] %vm852, %v817
      %866 = vst.msk [vmem:[#allocation3 + $0x34] sm:$0xf] %vm852, %v819
      %867 = vst.msk [vmem:[#allocation3 + $0x38] sm:$0xf] %vm852, %v821
      %868 = vst.msk [vmem:[#allocation3 + $0x3c] sm:$0xf] %vm852, %v823
      %869 = vst.msk [vmem:[#allocation3 + $0x40] sm:$0xf] %vm852, %v825
      %870 = vst.msk [vmem:[#allocation3 + $0x44] sm:$0xf] %vm852, %v827
      %871 = vst.msk [vmem:[#allocation3 + $0x48] sm:$0xf] %vm852, %v829
      %872 = vst.msk [vmem:[#allocation3 + $0x4c] sm:$0xf] %vm852, %v831
      %v873 = vld [vmem:[#allocation2] sm:$0xe]
      %v874 = vld [vmem:[#allocation2 + $0x4] sm:$0xf]
      %v875 = vld [vmem:[#allocation2 + $0x8] sm:$0x1]
      %v876 = vld [vmem:[#allocation2 + $0xc] sm:$0xe]
      %v877 = vld [vmem:[#allocation2 + $0x10] sm:$0xf]
      %v878 = vld [vmem:[#allocation2 + $0x14] sm:$0x1]
      %v879 = vld [vmem:[#allocation2 + $0x18] sm:$0xe]
      %v880 = vld [vmem:[#allocation2 + $0x1c] sm:$0xf]
      %v881 = vld [vmem:[#allocation2 + $0x20] sm:$0x1]
      %v882 = vld [vmem:[#allocation2 + $0x24] sm:$0xe]
      %v883 = vld [vmem:[#allocation2 + $0x28] sm:$0xf]
      %v884 = vld [vmem:[#allocation2 + $0x2c] sm:$0x1]
      %v885 = vld [vmem:[#allocation2 + $0x30] sm:$0xe]
      %v886 = vld [vmem:[#allocation2 + $0x34] sm:$0xf]
      %v887 = vld [vmem:[#allocation2 + $0x38] sm:$0x1]
      %v888 = vld [vmem:[#allocation2 + $0x3c] sm:$0xe]
      %v889 = vld [vmem:[#allocation2 + $0x40] sm:$0xf]
      %v890 = vld [vmem:[#allocation2 + $0x44] sm:$0x1]
      %v891 = vld [vmem:[#allocation2 + $0x48] sm:$0xe]
      %v892 = vld [vmem:[#allocation2 + $0x4c] sm:$0xf]
      %v893 = vld [vmem:[#allocation2 + $0x50] sm:$0x1]
      %v894 = vld [vmem:[#allocation2 + $0x54] sm:$0xe]
      %v895 = vld [vmem:[#allocation2 + $0x58] sm:$0xf]
      %v896 = vld [vmem:[#allocation2 + $0x5c] sm:$0x1]
      %v897 = vld [vmem:[#allocation2 + $0x60] sm:$0xe]
      %v898 = vld [vmem:[#allocation2 + $0x64] sm:$0xf]
      %v899 = vld [vmem:[#allocation2 + $0x68] sm:$0x1]
      %v900 = vld [vmem:[#allocation2 + $0x6c] sm:$0xe]
      %v901 = vld [vmem:[#allocation2 + $0x70] sm:$0xf]
      %v902 = vld [vmem:[#allocation2 + $0x74] sm:$0x1]
      %vm933 = vcmask 1042432
      %vm934 = vcmask 1046532
      %vm935 = vmor %vm933, %vm934
      %v936 = vrot.slane %v873, 5
      %v937 = vrot.slane %v936, 4
      %v938 = vrot.slane %v874, 5
      %v939 = vsel %vm935, %v937, %v938
      %v940 = vrot.slane %v938, 4
      %v941 = vrot.slane %v875, 5
      %v942 = vsel %vm935, %v940, %v941
      %v943 = vrot.slane %v876, 5
      %v944 = vrot.slane %v943, 4
      %v945 = vrot.slane %v877, 5
      %v946 = vsel %vm935, %v944, %v945
      %v947 = vrot.slane %v945, 4
      %v948 = vrot.slane %v878, 5
      %v949 = vsel %vm935, %v947, %v948
      %v950 = vrot.slane %v879, 5
      %v951 = vrot.slane %v950, 4
      %v952 = vrot.slane %v880, 5
      %v953 = vsel %vm935, %v951, %v952
      %v954 = vrot.slane %v952, 4
      %v955 = vrot.slane %v881, 5
      %v956 = vsel %vm935, %v954, %v955
      %v957 = vrot.slane %v882, 5
      %v958 = vrot.slane %v957, 4
      %v959 = vrot.slane %v883, 5
      %v960 = vsel %vm935, %v958, %v959
      %v961 = vrot.slane %v959, 4
      %v962 = vrot.slane %v884, 5
      %v963 = vsel %vm935, %v961, %v962
      %v964 = vrot.slane %v885, 5
      %v965 = vrot.slane %v964, 4
      %v966 = vrot.slane %v886, 5
      %v967 = vsel %vm935, %v965, %v966
      %v968 = vrot.slane %v966, 4
      %v969 = vrot.slane %v887, 5
      %v970 = vsel %vm935, %v968, %v969
      %v971 = vrot.slane %v888, 5
      %v972 = vrot.slane %v971, 4
      %v973 = vrot.slane %v889, 5
      %v974 = vsel %vm935, %v972, %v973
      %v975 = vrot.slane %v973, 4
      %v976 = vrot.slane %v890, 5
      %v977 = vsel %vm935, %v975, %v976
      %v978 = vrot.slane %v891, 5
      %v979 = vrot.slane %v978, 4
      %v980 = vrot.slane %v892, 5
      %v981 = vsel %vm935, %v979, %v980
      %v982 = vrot.slane %v980, 4
      %v983 = vrot.slane %v893, 5
      %v984 = vsel %vm935, %v982, %v983
      %v985 = vrot.slane %v894, 5
      %v986 = vrot.slane %v985, 4
      %v987 = vrot.slane %v895, 5
      %v988 = vsel %vm935, %v986, %v987
      %v989 = vrot.slane %v987, 4
      %v990 = vrot.slane %v896, 5
      %v991 = vsel %vm935, %v989, %v990
      %v992 = vrot.slane %v897, 5
      %v993 = vrot.slane %v992, 4
      %v994 = vrot.slane %v898, 5
      %v995 = vsel %vm935, %v993, %v994
      %v996 = vrot.slane %v994, 4
      %v997 = vrot.slane %v899, 5
      %v998 = vsel %vm935, %v996, %v997
      %v999 = vrot.slane %v900, 5
      %v1000 = vrot.slane %v999, 4
      %v1001 = vrot.slane %v901, 5
      %v1002 = vsel %vm935, %v1000, %v1001
      %v1003 = vrot.slane %v1001, 4
      %v1004 = vrot.slane %v902, 5
      %v1005 = vsel %vm935, %v1003, %v1004
      %1006 = vrot.lane.b32.xlu0 %v939, 16
      %v1007 = vpop.permute.xlu0 %1006
      %1008 = vrot.lane.b32.xlu0 %v942, 16
      %v1009 = vpop.permute.xlu0 %1008
      %1010 = vrot.lane.b32.xlu0 %v946, 16
      %v1011 = vpop.permute.xlu0 %1010
      %1012 = vrot.lane.b32.xlu0 %v949, 16
      %v1013 = vpop.permute.xlu0 %1012
      %1014 = vrot.lane.b32.xlu0 %v953, 16
      %v1015 = vpop.permute.xlu0 %1014
      %1016 = vrot.lane.b32.xlu0 %v956, 16
      %v1017 = vpop.permute.xlu0 %1016
      %1018 = vrot.lane.b32.xlu0 %v960, 16
      %v1019 = vpop.permute.xlu0 %1018
      %1020 = vrot.lane.b32.xlu0 %v963, 16
      %v1021 = vpop.permute.xlu0 %1020
      %1022 = vrot.lane.b32.xlu0 %v967, 16
      %v1023 = vpop.permute.xlu0 %1022
      %1024 = vrot.lane.b32.xlu0 %v970, 16
      %v1025 = vpop.permute.xlu0 %1024
      %1026 = vrot.lane.b32.xlu0 %v974, 16
      %v1027 = vpop.permute.xlu0 %1026
      %1028 = vrot.lane.b32.xlu0 %v977, 16
      %v1029 = vpop.permute.xlu0 %1028
      %1030 = vrot.lane.b32.xlu0 %v981, 16
      %v1031 = vpop.permute.xlu0 %1030
      %1032 = vrot.lane.b32.xlu0 %v984, 16
      %v1033 = vpop.permute.xlu0 %1032
      %1034 = vrot.lane.b32.xlu0 %v988, 16
      %v1035 = vpop.permute.xlu0 %1034
      %1036 = vrot.lane.b32.xlu0 %v991, 16
      %v1037 = vpop.permute.xlu0 %1036
      %1038 = vrot.lane.b32.xlu0 %v995, 16
      %v1039 = vpop.permute.xlu0 %1038
      %1040 = vrot.lane.b32.xlu0 %v998, 16
      %v1041 = vpop.permute.xlu0 %1040
      %1042 = vrot.lane.b32.xlu0 %v1002, 16
      %v1043 = vpop.permute.xlu0 %1042
      %1044 = vrot.lane.b32.xlu0 %v1005, 16
      %v1045 = vpop.permute.xlu0 %1044
      %vm1066 = vcmask 191616
      %1067 = vst.msk [vmem:[#allocation3] sm:$0xf] %vm1066, %v1007
      %1068 = vst.msk [vmem:[#allocation3 + $0x4] sm:$0xf] %vm1066, %v1009
      %1069 = vst.msk [vmem:[#allocation3 + $0x8] sm:$0xf] %vm1066, %v1011
      %1070 = vst.msk [vmem:[#allocation3 + $0xc] sm:$0xf] %vm1066, %v1013
      %1071 = vst.msk [vmem:[#allocation3 + $0x10] sm:$0xf] %vm1066, %v1015
      %1072 = vst.msk [vmem:[#allocation3 + $0x14] sm:$0xf] %vm1066, %v1017
      %1073 = vst.msk [vmem:[#allocation3 + $0x18] sm:$0xf] %vm1066, %v1019
      %1074 = vst.msk [vmem:[#allocation3 + $0x1c] sm:$0xf] %vm1066, %v1021
      %1075 = vst.msk [vmem:[#allocation3 + $0x20] sm:$0xf] %vm1066, %v1023
      %1076 = vst.msk [vmem:[#allocation3 + $0x24] sm:$0xf] %vm1066, %v1025
      %1077 = vst.msk [vmem:[#allocation3 + $0x28] sm:$0xf] %vm1066, %v1027
      %1078 = vst.msk [vmem:[#allocation3 + $0x2c] sm:$0xf] %vm1066, %v1029
      %1079 = vst.msk [vmem:[#allocation3 + $0x30] sm:$0xf] %vm1066, %v1031
      %1080 = vst.msk [vmem:[#allocation3 + $0x34] sm:$0xf] %vm1066, %v1033
      %1081 = vst.msk [vmem:[#allocation3 + $0x38] sm:$0xf] %vm1066, %v1035
      %1082 = vst.msk [vmem:[#allocation3 + $0x3c] sm:$0xf] %vm1066, %v1037
      %1083 = vst.msk [vmem:[#allocation3 + $0x40] sm:$0xf] %vm1066, %v1039
      %1084 = vst.msk [vmem:[#allocation3 + $0x44] sm:$0xf] %vm1066, %v1041
      %1085 = vst.msk [vmem:[#allocation3 + $0x48] sm:$0xf] %vm1066, %v1043
      %1086 = vst.msk [vmem:[#allocation3 + $0x4c] sm:$0xf] %vm1066, %v1045
      %s1087 = scalar_lea.vmem [#allocation2], 12
      %v1088 = vld [vmem:[%s1087] sm:$0xf]
      %v1089 = vld [vmem:[%s1087 + $0x4] sm:$0xf]
      %v1090 = vld [vmem:[%s1087 + $0xc] sm:$0xf]
      %v1091 = vld [vmem:[%s1087 + $0x10] sm:$0xf]
      %v1092 = vld [vmem:[%s1087 + $0x18] sm:$0xf]
      %v1093 = vld [vmem:[%s1087 + $0x1c] sm:$0xf]
      %v1094 = vld [vmem:[%s1087 + $0x24] sm:$0xf]
      %v1095 = vld [vmem:[%s1087 + $0x28] sm:$0xf]
      %v1096 = vld [vmem:[%s1087 + $0x30] sm:$0xf]
      %v1097 = vld [vmem:[%s1087 + $0x34] sm:$0xf]
      %v1098 = vld [vmem:[%s1087 + $0x3c] sm:$0xf]
      %v1099 = vld [vmem:[%s1087 + $0x40] sm:$0xf]
      %v1100 = vld [vmem:[%s1087 + $0x48] sm:$0xf]
      %v1101 = vld [vmem:[%s1087 + $0x4c] sm:$0xf]
      %v1102 = vld [vmem:[%s1087 + $0x54] sm:$0xf]
      %v1103 = vld [vmem:[%s1087 + $0x58] sm:$0xf]
      %v1104 = vld [vmem:[%s1087 + $0x60] sm:$0xf]
      %v1105 = vld [vmem:[%s1087 + $0x64] sm:$0xf]
      %v1106 = vld [vmem:[%s1087 + $0x6c] sm:$0xf]
      %v1107 = vld [vmem:[%s1087 + $0x70] sm:$0xf]
      %1128 = vrot.lane.b32.xlu0 %v1088, 24
      %v1129 = vpop.permute.xlu0 %1128
      %1130 = vrot.lane.b32.xlu0 %v1089, 24
      %v1131 = vpop.permute.xlu0 %1130
      %1132 = vrot.lane.b32.xlu0 %v1090, 24
      %v1133 = vpop.permute.xlu0 %1132
      %1134 = vrot.lane.b32.xlu0 %v1091, 24
      %v1135 = vpop.permute.xlu0 %1134
      %1136 = vrot.lane.b32.xlu0 %v1092, 24
      %v1137 = vpop.permute.xlu0 %1136
      %1138 = vrot.lane.b32.xlu0 %v1093, 24
      %v1139 = vpop.permute.xlu0 %1138
      %1140 = vrot.lane.b32.xlu0 %v1094, 24
      %v1141 = vpop.permute.xlu0 %1140
      %1142 = vrot.lane.b32.xlu0 %v1095, 24
      %v1143 = vpop.permute.xlu0 %1142
      %1144 = vrot.lane.b32.xlu0 %v1096, 24
      %v1145 = vpop.permute.xlu0 %1144
      %1146 = vrot.lane.b32.xlu0 %v1097, 24
      %v1147 = vpop.permute.xlu0 %1146
      %1148 = vrot.lane.b32.xlu0 %v1098, 24
      %v1149 = vpop.permute.xlu0 %1148
      %1150 = vrot.lane.b32.xlu0 %v1099, 24
      %v1151 = vpop.permute.xlu0 %1150
      %1152 = vrot.lane.b32.xlu0 %v1100, 24
      %v1153 = vpop.permute.xlu0 %1152
      %1154 = vrot.lane.b32.xlu0 %v1101, 24
      %v1155 = vpop.permute.xlu0 %1154
      %1156 = vrot.lane.b32.xlu0 %v1102, 24
      %v1157 = vpop.permute.xlu0 %1156
      %1158 = vrot.lane.b32.xlu0 %v1103, 24
      %v1159 = vpop.permute.xlu0 %1158
      %1160 = vrot.lane.b32.xlu0 %v1104, 24
      %v1161 = vpop.permute.xlu0 %1160
      %1162 = vrot.lane.b32.xlu0 %v1105, 24
      %v1163 = vpop.permute.xlu0 %1162
      %1164 = vrot.lane.b32.xlu0 %v1106, 24
      %v1165 = vpop.permute.xlu0 %1164
      %1166 = vrot.lane.b32.xlu0 %v1107, 24
      %v1167 = vpop.permute.xlu0 %1166
      %vm1188 = vcmask 257216
      %1189 = vst.msk [vmem:[#allocation3] sm:$0xf] %vm1188, %v1129
      %1190 = vst.msk [vmem:[#allocation3 + $0x4] sm:$0xf] %vm1188, %v1131
      %1191 = vst.msk [vmem:[#allocation3 + $0x8] sm:$0xf] %vm1188, %v1133
      %1192 = vst.msk [vmem:[#allocation3 + $0xc] sm:$0xf] %vm1188, %v1135
      %1193 = vst.msk [vmem:[#allocation3 + $0x10] sm:$0xf] %vm1188, %v1137
      %1194 = vst.msk [vmem:[#allocation3 + $0x14] sm:$0xf] %vm1188, %v1139
      %1195 = vst.msk [vmem:[#allocation3 + $0x18] sm:$0xf] %vm1188, %v1141
      %1196 = vst.msk [vmem:[#allocation3 + $0x1c] sm:$0xf] %vm1188, %v1143
      %1197 = vst.msk [vmem:[#allocation3 + $0x20] sm:$0xf] %vm1188, %v1145
      %1198 = vst.msk [vmem:[#allocation3 + $0x24] sm:$0xf] %vm1188, %v1147
      %1199 = vst.msk [vmem:[#allocation3 + $0x28] sm:$0xf] %vm1188, %v1149
      %1200 = vst.msk [vmem:[#allocation3 + $0x2c] sm:$0xf] %vm1188, %v1151
      %1201 = vst.msk [vmem:[#allocation3 + $0x30] sm:$0xf] %vm1188, %v1153
      %1202 = vst.msk [vmem:[#allocation3 + $0x34] sm:$0xf] %vm1188, %v1155
      %1203 = vst.msk [vmem:[#allocation3 + $0x38] sm:$0xf] %vm1188, %v1157
      %1204 = vst.msk [vmem:[#allocation3 + $0x3c] sm:$0xf] %vm1188, %v1159
      %1205 = vst.msk [vmem:[#allocation3 + $0x40] sm:$0xf] %vm1188, %v1161
      %1206 = vst.msk [vmem:[#allocation3 + $0x44] sm:$0xf] %vm1188, %v1163
      %1207 = vst.msk [vmem:[#allocation3 + $0x48] sm:$0xf] %vm1188, %v1165
      %1208 = vst.msk [vmem:[#allocation3 + $0x4c] sm:$0xf] %vm1188, %v1167
      %v1209 = vld [vmem:[%s1087] sm:$0xf]
      %v1210 = vld [vmem:[%s1087 + $0x4] sm:$0xf]
      %v1211 = vld [vmem:[%s1087 + $0x8] sm:$0x1]
      %v1212 = vld [vmem:[%s1087 + $0xc] sm:$0xf]
      %v1213 = vld [vmem:[%s1087 + $0x10] sm:$0xf]
      %v1214 = vld [vmem:[%s1087 + $0x14] sm:$0x1]
      %v1215 = vld [vmem:[%s1087 + $0x18] sm:$0xf]
      %v1216 = vld [vmem:[%s1087 + $0x1c] sm:$0xf]
      %v1217 = vld [vmem:[%s1087 + $0x20] sm:$0x1]
      %v1218 = vld [vmem:[%s1087 + $0x24] sm:$0xf]
      %v1219 = vld [vmem:[%s1087 + $0x28] sm:$0xf]
      %v1220 = vld [vmem:[%s1087 + $0x2c] sm:$0x1]
      %v1221 = vld [vmem:[%s1087 + $0x30] sm:$0xf]
      %v1222 = vld [vmem:[%s1087 + $0x34] sm:$0xf]
      %v1223 = vld [vmem:[%s1087 + $0x38] sm:$0x1]
      %v1224 = vld [vmem:[%s1087 + $0x3c] sm:$0xf]
      %v1225 = vld [vmem:[%s1087 + $0x40] sm:$0xf]
      %v1226 = vld [vmem:[%s1087 + $0x44] sm:$0x1]
      %v1227 = vld [vmem:[%s1087 + $0x48] sm:$0xf]
      %v1228 = vld [vmem:[%s1087 + $0x4c] sm:$0xf]
      %v1229 = vld [vmem:[%s1087 + $0x50] sm:$0x1]
      %v1230 = vld [vmem:[%s1087 + $0x54] sm:$0xf]
      %v1231 = vld [vmem:[%s1087 + $0x58] sm:$0xf]
      %v1232 = vld [vmem:[%s1087 + $0x5c] sm:$0x1]
      %v1233 = vld [vmem:[%s1087 + $0x60] sm:$0xf]
      %v1234 = vld [vmem:[%s1087 + $0x64] sm:$0xf]
      %v1235 = vld [vmem:[%s1087 + $0x68] sm:$0x1]
      %v1236 = vld [vmem:[%s1087 + $0x6c] sm:$0xf]
      %v1237 = vld [vmem:[%s1087 + $0x70] sm:$0xf]
      %v1238 = vld [vmem:[%s1087 + $0x74] sm:$0x1]
      %v1240 = vshrl.u32 %v1209, 16
      %v1242 = vrot.slane %v1240, 4
      %v1243 = vshll.u32 %v1209, 16
      %v1245 = vrot.slane %v1243, 5
      %v1246 = vor.u32 %v1242, %v1245
      %v1247 = vrot.slane %v1246, 4
      %v1249 = vshll.u32 %v1210, 16
      %v1251 = vrot.slane %v1249, 5
      %v1252 = vsel %vm551, %v1247, %v1251
      %v1253 = vshrl.u32 %v1210, 16
      %v1255 = vrot.slane %v1253, 4
      %v1256 = vor.u32 %v1255, %v1251
      %v1257 = vrot.slane %v1256, 4
      %v1259 = vshll.u32 %v1211, 16
      %v1261 = vrot.slane %v1259, 5
      %v1262 = vsel %vm551, %v1257, %v1261
      %v1264 = vshrl.u32 %v1212, 16
      %v1266 = vrot.slane %v1264, 4
      %v1267 = vshll.u32 %v1212, 16
      %v1269 = vrot.slane %v1267, 5
      %v1270 = vor.u32 %v1266, %v1269
      %v1271 = vrot.slane %v1270, 4
      %v1273 = vshll.u32 %v1213, 16
      %v1275 = vrot.slane %v1273, 5
      %v1276 = vsel %vm551, %v1271, %v1275
      %v1277 = vshrl.u32 %v1213, 16
      %v1279 = vrot.slane %v1277, 4
      %v1280 = vor.u32 %v1279, %v1275
      %v1281 = vrot.slane %v1280, 4
      %v1283 = vshll.u32 %v1214, 16
      %v1285 = vrot.slane %v1283, 5
      %v1286 = vsel %vm551, %v1281, %v1285
      %v1288 = vshrl.u32 %v1215, 16
      %v1290 = vrot.slane %v1288, 4
      %v1291 = vshll.u32 %v1215, 16
      %v1293 = vrot.slane %v1291, 5
      %v1294 = vor.u32 %v1290, %v1293
      %v1295 = vrot.slane %v1294, 4
      %v1297 = vshll.u32 %v1216, 16
      %v1299 = vrot.slane %v1297, 5
      %v1300 = vsel %vm551, %v1295, %v1299
      %v1301 = vshrl.u32 %v1216, 16
      %v1303 = vrot.slane %v1301, 4
      %v1304 = vor.u32 %v1303, %v1299
      %v1305 = vrot.slane %v1304, 4
      %v1307 = vshll.u32 %v1217, 16
      %v1309 = vrot.slane %v1307, 5
      %v1310 = vsel %vm551, %v1305, %v1309
      %v1312 = vshrl.u32 %v1218, 16
      %v1314 = vrot.slane %v1312, 4
      %v1315 = vshll.u32 %v1218, 16
      %v1317 = vrot.slane %v1315, 5
      %v1318 = vor.u32 %v1314, %v1317
      %v1319 = vrot.slane %v1318, 4
      %v1321 = vshll.u32 %v1219, 16
      %v1323 = vrot.slane %v1321, 5
      %v1324 = vsel %vm551, %v1319, %v1323
      %v1325 = vshrl.u32 %v1219, 16
      %v1327 = vrot.slane %v1325, 4
      %v1328 = vor.u32 %v1327, %v1323
      %v1329 = vrot.slane %v1328, 4
      %v1331 = vshll.u32 %v1220, 16
      %v1333 = vrot.slane %v1331, 5
      %v1334 = vsel %vm551, %v1329, %v1333
      %v1336 = vshrl.u32 %v1221, 16
      %v1338 = vrot.slane %v1336, 4
      %v1339 = vshll.u32 %v1221, 16
      %v1341 = vrot.slane %v1339, 5
      %v1342 = vor.u32 %v1338, %v1341
      %v1343 = vrot.slane %v1342, 4
      %v1345 = vshll.u32 %v1222, 16
      %v1347 = vrot.slane %v1345, 5
      %v1348 = vsel %vm551, %v1343, %v1347
      %v1349 = vshrl.u32 %v1222, 16
      %v1351 = vrot.slane %v1349, 4
      %v1352 = vor.u32 %v1351, %v1347
      %v1353 = vrot.slane %v1352, 4
      %v1355 = vshll.u32 %v1223, 16
      %v1357 = vrot.slane %v1355, 5
      %v1358 = vsel %vm551, %v1353, %v1357
      %v1360 = vshrl.u32 %v1224, 16
      %v1362 = vrot.slane %v1360, 4
      %v1363 = vshll.u32 %v1224, 16
      %v1365 = vrot.slane %v1363, 5
      %v1366 = vor.u32 %v1362, %v1365
      %v1367 = vrot.slane %v1366, 4
      %v1369 = vshll.u32 %v1225, 16
      %v1371 = vrot.slane %v1369, 5
      %v1372 = vsel %vm551, %v1367, %v1371
      %v1373 = vshrl.u32 %v1225, 16
      %v1375 = vrot.slane %v1373, 4
      %v1376 = vor.u32 %v1375, %v1371
      %v1377 = vrot.slane %v1376, 4
      %v1379 = vshll.u32 %v1226, 16
      %v1381 = vrot.slane %v1379, 5
      %v1382 = vsel %vm551, %v1377, %v1381
      %v1384 = vshrl.u32 %v1227, 16
      %v1386 = vrot.slane %v1384, 4
      %v1387 = vshll.u32 %v1227, 16
      %v1389 = vrot.slane %v1387, 5
      %v1390 = vor.u32 %v1386, %v1389
      %v1391 = vrot.slane %v1390, 4
      %v1393 = vshll.u32 %v1228, 16
      %v1395 = vrot.slane %v1393, 5
      %v1396 = vsel %vm551, %v1391, %v1395
      %v1397 = vshrl.u32 %v1228, 16
      %v1399 = vrot.slane %v1397, 4
      %v1400 = vor.u32 %v1399, %v1395
      %v1401 = vrot.slane %v1400, 4
      %v1403 = vshll.u32 %v1229, 16
      %v1405 = vrot.slane %v1403, 5
      %v1406 = vsel %vm551, %v1401, %v1405
      %v1408 = vshrl.u32 %v1230, 16
      %v1410 = vrot.slane %v1408, 4
      %v1411 = vshll.u32 %v1230, 16
      %v1413 = vrot.slane %v1411, 5
      %v1414 = vor.u32 %v1410, %v1413
      %v1415 = vrot.slane %v1414, 4
      %v1417 = vshll.u32 %v1231, 16
      %v1419 = vrot.slane %v1417, 5
      %v1420 = vsel %vm551, %v1415, %v1419
      %v1421 = vshrl.u32 %v1231, 16
      %v1423 = vrot.slane %v1421, 4
      %v1424 = vor.u32 %v1423, %v1419
      %v1425 = vrot.slane %v1424, 4
      %v1427 = vshll.u32 %v1232, 16
      %v1429 = vrot.slane %v1427, 5
      %v1430 = vsel %vm551, %v1425, %v1429
      %v1432 = vshrl.u32 %v1233, 16
      %v1434 = vrot.slane %v1432, 4
      %v1435 = vshll.u32 %v1233, 16
      %v1437 = vrot.slane %v1435, 5
      %v1438 = vor.u32 %v1434, %v1437
      %v1439 = vrot.slane %v1438, 4
      %v1441 = vshll.u32 %v1234, 16
      %v1443 = vrot.slane %v1441, 5
      %v1444 = vsel %vm551, %v1439, %v1443
      %v1445 = vshrl.u32 %v1234, 16
      %v1447 = vrot.slane %v1445, 4
      %v1448 = vor.u32 %v1447, %v1443
      %v1449 = vrot.slane %v1448, 4
      %v1451 = vshll.u32 %v1235, 16
      %v1453 = vrot.slane %v1451, 5
      %v1454 = vsel %vm551, %v1449, %v1453
      %v1456 = vshrl.u32 %v1236, 16
      %v1458 = vrot.slane %v1456, 4
      %v1459 = vshll.u32 %v1236, 16
      %v1461 = vrot.slane %v1459, 5
      %v1462 = vor.u32 %v1458, %v1461
      %v1463 = vrot.slane %v1462, 4
      %v1465 = vshll.u32 %v1237, 16
      %v1467 = vrot.slane %v1465, 5
      %v1468 = vsel %vm551, %v1463, %v1467
      %v1469 = vshrl.u32 %v1237, 16
      %v1471 = vrot.slane %v1469, 4
      %v1472 = vor.u32 %v1471, %v1467
      %v1473 = vrot.slane %v1472, 4
      %v1475 = vshll.u32 %v1238, 16
      %v1477 = vrot.slane %v1475, 5
      %v1478 = vsel %vm551, %v1473, %v1477
      %1479 = vrot.lane.b32.xlu0 %v1252, 32
      %v1480 = vpop.permute.xlu0 %1479
      %1481 = vrot.lane.b32.xlu0 %v1262, 32
      %v1482 = vpop.permute.xlu0 %1481
      %1483 = vrot.lane.b32.xlu0 %v1276, 32
      %v1484 = vpop.permute.xlu0 %1483
      %1485 = vrot.lane.b32.xlu0 %v1286, 32
      %v1486 = vpop.permute.xlu0 %1485
      %1487 = vrot.lane.b32.xlu0 %v1300, 32
      %v1488 = vpop.permute.xlu0 %1487
      %1489 = vrot.lane.b32.xlu0 %v1310, 32
      %v1490 = vpop.permute.xlu0 %1489
      %1491 = vrot.lane.b32.xlu0 %v1324, 32
      %v1492 = vpop.permute.xlu0 %1491
      %1493 = vrot.lane.b32.xlu0 %v1334, 32
      %v1494 = vpop.permute.xlu0 %1493
      %1495 = vrot.lane.b32.xlu0 %v1348, 32
      %v1496 = vpop.permute.xlu0 %1495
      %1497 = vrot.lane.b32.xlu0 %v1358, 32
      %v1498 = vpop.permute.xlu0 %1497
      %1499 = vrot.lane.b32.xlu0 %v1372, 32
      %v1500 = vpop.permute.xlu0 %1499
      %1501 = vrot.lane.b32.xlu0 %v1382, 32
      %v1502 = vpop.permute.xlu0 %1501
      %1503 = vrot.lane.b32.xlu0 %v1396, 32
      %v1504 = vpop.permute.xlu0 %1503
      %1505 = vrot.lane.b32.xlu0 %v1406, 32
      %v1506 = vpop.permute.xlu0 %1505
      %1507 = vrot.lane.b32.xlu0 %v1420, 32
      %v1508 = vpop.permute.xlu0 %1507
      %1509 = vrot.lane.b32.xlu0 %v1430, 32
      %v1510 = vpop.permute.xlu0 %1509
      %1511 = vrot.lane.b32.xlu0 %v1444, 32
      %v1512 = vpop.permute.xlu0 %1511
      %1513 = vrot.lane.b32.xlu0 %v1454, 32
      %v1514 = vpop.permute.xlu0 %1513
      %1515 = vrot.lane.b32.xlu0 %v1468, 32
      %v1516 = vpop.permute.xlu0 %1515
      %1517 = vrot.lane.b32.xlu0 %v1478, 32
      %v1518 = vpop.permute.xlu0 %1517
      %vm1539 = vcmask 322816
      %1540 = vst.msk [vmem:[#allocation3] sm:$0xf] %vm1539, %v1480
      %1541 = vst.msk [vmem:[#allocation3 + $0x4] sm:$0xf] %vm1539, %v1482
      %1542 = vst.msk [vmem:[#allocation3 + $0x8] sm:$0xf] %vm1539, %v1484
      %1543 = vst.msk [vmem:[#allocation3 + $0xc] sm:$0xf] %vm1539, %v1486
      %1544 = vst.msk [vmem:[#allocation3 + $0x10] sm:$0xf] %vm1539, %v1488
      %1545 = vst.msk [vmem:[#allocation3 + $0x14] sm:$0xf] %vm1539, %v1490
      %1546 = vst.msk [vmem:[#allocation3 + $0x18] sm:$0xf] %vm1539, %v1492
      %1547 = vst.msk [vmem:[#allocation3 + $0x1c] sm:$0xf] %vm1539, %v1494
      %1548 = vst.msk [vmem:[#allocation3 + $0x20] sm:$0xf] %vm1539, %v1496
      %1549 = vst.msk [vmem:[#allocation3 + $0x24] sm:$0xf] %vm1539, %v1498
      %1550 = vst.msk [vmem:[#allocation3 + $0x28] sm:$0xf] %vm1539, %v1500
      %1551 = vst.msk [vmem:[#allocation3 + $0x2c] sm:$0xf] %vm1539, %v1502
      %1552 = vst.msk [vmem:[#allocation3 + $0x30] sm:$0xf] %vm1539, %v1504
      %1553 = vst.msk [vmem:[#allocation3 + $0x34] sm:$0xf] %vm1539, %v1506
      %1554 = vst.msk [vmem:[#allocation3 + $0x38] sm:$0xf] %vm1539, %v1508
      %1555 = vst.msk [vmem:[#allocation3 + $0x3c] sm:$0xf] %vm1539, %v1510
      %1556 = vst.msk [vmem:[#allocation3 + $0x40] sm:$0xf] %vm1539, %v1512
      %1557 = vst.msk [vmem:[#allocation3 + $0x44] sm:$0xf] %vm1539, %v1514
      %1558 = vst.msk [vmem:[#allocation3 + $0x48] sm:$0xf] %vm1539, %v1516
      %1559 = vst.msk [vmem:[#allocation3 + $0x4c] sm:$0xf] %vm1539, %v1518
      %v1560 = vld [vmem:[%s1087] sm:$0xe]
      %v1561 = vld [vmem:[%s1087 + $0x4] sm:$0xf]
      %v1562 = vld [vmem:[%s1087 + $0x8] sm:$0x1]
      %v1563 = vld [vmem:[%s1087 + $0xc] sm:$0xe]
      %v1564 = vld [vmem:[%s1087 + $0x10] sm:$0xf]
      %v1565 = vld [vmem:[%s1087 + $0x14] sm:$0x1]
      %v1566 = vld [vmem:[%s1087 + $0x18] sm:$0xe]
      %v1567 = vld [vmem:[%s1087 + $0x1c] sm:$0xf]
      %v1568 = vld [vmem:[%s1087 + $0x20] sm:$0x1]
      %v1569 = vld [vmem:[%s1087 + $0x24] sm:$0xe]
      %v1570 = vld [vmem:[%s1087 + $0x28] sm:$0xf]
      %v1571 = vld [vmem:[%s1087 + $0x2c] sm:$0x1]
      %v1572 = vld [vmem:[%s1087 + $0x30] sm:$0xe]
      %v1573 = vld [vmem:[%s1087 + $0x34] sm:$0xf]
      %v1574 = vld [vmem:[%s1087 + $0x38] sm:$0x1]
      %v1575 = vld [vmem:[%s1087 + $0x3c] sm:$0xe]
      %v1576 = vld [vmem:[%s1087 + $0x40] sm:$0xf]
      %v1577 = vld [vmem:[%s1087 + $0x44] sm:$0x1]
      %v1578 = vld [vmem:[%s1087 + $0x48] sm:$0xe]
      %v1579 = vld [vmem:[%s1087 + $0x4c] sm:$0xf]
      %v1580 = vld [vmem:[%s1087 + $0x50] sm:$0x1]
      %v1581 = vld [vmem:[%s1087 + $0x54] sm:$0xe]
      %v1582 = vld [vmem:[%s1087 + $0x58] sm:$0xf]
      %v1583 = vld [vmem:[%s1087 + $0x5c] sm:$0x1]
      %v1584 = vld [vmem:[%s1087 + $0x60] sm:$0xe]
      %v1585 = vld [vmem:[%s1087 + $0x64] sm:$0xf]
      %v1586 = vld [vmem:[%s1087 + $0x68] sm:$0x1]
      %v1587 = vld [vmem:[%s1087 + $0x6c] sm:$0xe]
      %v1588 = vld [vmem:[%s1087 + $0x70] sm:$0xf]
      %v1589 = vld [vmem:[%s1087 + $0x74] sm:$0x1]
      %v1620 = vrot.slane %v1560, 5
      %v1621 = vrot.slane %v1620, 4
      %v1622 = vrot.slane %v1561, 5
      %v1623 = vsel %vm935, %v1621, %v1622
      %v1624 = vrot.slane %v1622, 4
      %v1625 = vrot.slane %v1562, 5
      %v1626 = vsel %vm935, %v1624, %v1625
      %v1627 = vrot.slane %v1563, 5
      %v1628 = vrot.slane %v1627, 4
      %v1629 = vrot.slane %v1564, 5
      %v1630 = vsel %vm935, %v1628, %v1629
      %v1631 = vrot.slane %v1629, 4
      %v1632 = vrot.slane %v1565, 5
      %v1633 = vsel %vm935, %v1631, %v1632
      %v1634 = vrot.slane %v1566, 5
      %v1635 = vrot.slane %v1634, 4
      %v1636 = vrot.slane %v1567, 5
      %v1637 = vsel %vm935, %v1635, %v1636
      %v1638 = vrot.slane %v1636, 4
      %v1639 = vrot.slane %v1568, 5
      %v1640 = vsel %vm935, %v1638, %v1639
      %v1641 = vrot.slane %v1569, 5
      %v1642 = vrot.slane %v1641, 4
      %v1643 = vrot.slane %v1570, 5
      %v1644 = vsel %vm935, %v1642, %v1643
      %v1645 = vrot.slane %v1643, 4
      %v1646 = vrot.slane %v1571, 5
      %v1647 = vsel %vm935, %v1645, %v1646
      %v1648 = vrot.slane %v1572, 5
      %v1649 = vrot.slane %v1648, 4
      %v1650 = vrot.slane %v1573, 5
      %v1651 = vsel %vm935, %v1649, %v1650
      %v1652 = vrot.slane %v1650, 4
      %v1653 = vrot.slane %v1574, 5
      %v1654 = vsel %vm935, %v1652, %v1653
      %v1655 = vrot.slane %v1575, 5
      %v1656 = vrot.slane %v1655, 4
      %v1657 = vrot.slane %v1576, 5
      %v1658 = vsel %vm935, %v1656, %v1657
      %v1659 = vrot.slane %v1657, 4
      %v1660 = vrot.slane %v1577, 5
      %v1661 = vsel %vm935, %v1659, %v1660
      %v1662 = vrot.slane %v1578, 5
      %v1663 = vrot.slane %v1662, 4
      %v1664 = vrot.slane %v1579, 5
      %v1665 = vsel %vm935, %v1663, %v1664
      %v1666 = vrot.slane %v1664, 4
      %v1667 = vrot.slane %v1580, 5
      %v1668 = vsel %vm935, %v1666, %v1667
      %v1669 = vrot.slane %v1581, 5
      %v1670 = vrot.slane %v1669, 4
      %v1671 = vrot.slane %v1582, 5
      %v1672 = vsel %vm935, %v1670, %v1671
      %v1673 = vrot.slane %v1671, 4
      %v1674 = vrot.slane %v1583, 5
      %v1675 = vsel %vm935, %v1673, %v1674
      %v1676 = vrot.slane %v1584, 5
      %v1677 = vrot.slane %v1676, 4
      %v1678 = vrot.slane %v1585, 5
      %v1679 = vsel %vm935, %v1677, %v1678
      %v1680 = vrot.slane %v1678, 4
      %v1681 = vrot.slane %v1586, 5
      %v1682 = vsel %vm935, %v1680, %v1681
      %v1683 = vrot.slane %v1587, 5
      %v1684 = vrot.slane %v1683, 4
      %v1685 = vrot.slane %v1588, 5
      %v1686 = vsel %vm935, %v1684, %v1685
      %v1687 = vrot.slane %v1685, 4
      %v1688 = vrot.slane %v1589, 5
      %v1689 = vsel %vm935, %v1687, %v1688
      %1690 = vrot.lane.b32.xlu0 %v1623, 40
      %v1691 = vpop.permute.xlu0 %1690
      %1692 = vrot.lane.b32.xlu0 %v1626, 40
      %v1693 = vpop.permute.xlu0 %1692
      %1694 = vrot.lane.b32.xlu0 %v1630, 40
      %v1695 = vpop.permute.xlu0 %1694
      %1696 = vrot.lane.b32.xlu0 %v1633, 40
      %v1697 = vpop.permute.xlu0 %1696
      %1698 = vrot.lane.b32.xlu0 %v1637, 40
      %v1699 = vpop.permute.xlu0 %1698
      %1700 = vrot.lane.b32.xlu0 %v1640, 40
      %v1701 = vpop.permute.xlu0 %1700
      %1702 = vrot.lane.b32.xlu0 %v1644, 40
      %v1703 = vpop.permute.xlu0 %1702
      %1704 = vrot.lane.b32.xlu0 %v1647, 40
      %v1705 = vpop.permute.xlu0 %1704
      %1706 = vrot.lane.b32.xlu0 %v1651, 40
      %v1707 = vpop.permute.xlu0 %1706
      %1708 = vrot.lane.b32.xlu0 %v1654, 40
      %v1709 = vpop.permute.xlu0 %1708
      %1710 = vrot.lane.b32.xlu0 %v1658, 40
      %v1711 = vpop.permute.xlu0 %1710
      %1712 = vrot.lane.b32.xlu0 %v1661, 40
      %v1713 = vpop.permute.xlu0 %1712
      %1714 = vrot.lane.b32.xlu0 %v1665, 40
      %v1715 = vpop.permute.xlu0 %1714
      %1716 = vrot.lane.b32.xlu0 %v1668, 40
      %v1717 = vpop.permute.xlu0 %1716
      %1718 = vrot.lane.b32.xlu0 %v1672, 40
      %v1719 = vpop.permute.xlu0 %1718
      %1720 = vrot.lane.b32.xlu0 %v1675, 40
      %v1721 = vpop.permute.xlu0 %1720
      %1722 = vrot.lane.b32.xlu0 %v1679, 40
      %v1723 = vpop.permute.xlu0 %1722
      %1724 = vrot.lane.b32.xlu0 %v1682, 40
      %v1725 = vpop.permute.xlu0 %1724
      %1726 = vrot.lane.b32.xlu0 %v1686, 40
      %v1727 = vpop.permute.xlu0 %1726
      %1728 = vrot.lane.b32.xlu0 %v1689, 40
      %v1729 = vpop.permute.xlu0 %1728
      %vm1750 = vcmask 388416
      %1751 = vst.msk [vmem:[#allocation3] sm:$0xf] %vm1750, %v1691
      %1752 = vst.msk [vmem:[#allocation3 + $0x4] sm:$0xf] %vm1750, %v1693
      %1753 = vst.msk [vmem:[#allocation3 + $0x8] sm:$0xf] %vm1750, %v1695
      %1754 = vst.msk [vmem:[#allocation3 + $0xc] sm:$0xf] %vm1750, %v1697
      %1755 = vst.msk [vmem:[#allocation3 + $0x10] sm:$0xf] %vm1750, %v1699
      %1756 = vst.msk [vmem:[#allocation3 + $0x14] sm:$0xf] %vm1750, %v1701
      %1757 = vst.msk [vmem:[#allocation3 + $0x18] sm:$0xf] %vm1750, %v1703
      %1758 = vst.msk [vmem:[#allocation3 + $0x1c] sm:$0xf] %vm1750, %v1705
      %1759 = vst.msk [vmem:[#allocation3 + $0x20] sm:$0xf] %vm1750, %v1707
      %1760 = vst.msk [vmem:[#allocation3 + $0x24] sm:$0xf] %vm1750, %v1709
      %1761 = vst.msk [vmem:[#allocation3 + $0x28] sm:$0xf] %vm1750, %v1711
      %1762 = vst.msk [vmem:[#allocation3 + $0x2c] sm:$0xf] %vm1750, %v1713
      %1763 = vst.msk [vmem:[#allocation3 + $0x30] sm:$0xf] %vm1750, %v1715
      %1764 = vst.msk [vmem:[#allocation3 + $0x34] sm:$0xf] %vm1750, %v1717
      %1765 = vst.msk [vmem:[#allocation3 + $0x38] sm:$0xf] %vm1750, %v1719
      %1766 = vst.msk [vmem:[#allocation3 + $0x3c] sm:$0xf] %vm1750, %v1721
      %1767 = vst.msk [vmem:[#allocation3 + $0x40] sm:$0xf] %vm1750, %v1723
      %1768 = vst.msk [vmem:[#allocation3 + $0x44] sm:$0xf] %vm1750, %v1725
      %1769 = vst.msk [vmem:[#allocation3 + $0x48] sm:$0xf] %vm1750, %v1727
      %1770 = vst.msk [vmem:[#allocation3 + $0x4c] sm:$0xf] %vm1750, %v1729
      %s1771 = scalar_lea.vmem [#allocation2], 24
      %v1772 = vld [vmem:[%s1771] sm:$0xf]
      %v1773 = vld [vmem:[%s1771 + $0x4] sm:$0xf]
      %v1774 = vld [vmem:[%s1771 + $0xc] sm:$0xf]
      %v1775 = vld [vmem:[%s1771 + $0x10] sm:$0xf]
      %v1776 = vld [vmem:[%s1771 + $0x18] sm:$0xf]
      %v1777 = vld [vmem:[%s1771 + $0x1c] sm:$0xf]
      %v1778 = vld [vmem:[%s1771 + $0x24] sm:$0xf]
      %v1779 = vld [vmem:[%s1771 + $0x28] sm:$0xf]
      %v1780 = vld [vmem:[%s1771 + $0x30] sm:$0xf]
      %v1781 = vld [vmem:[%s1771 + $0x34] sm:$0xf]
      %v1782 = vld [vmem:[%s1771 + $0x3c] sm:$0xf]
      %v1783 = vld [vmem:[%s1771 + $0x40] sm:$0xf]
      %v1784 = vld [vmem:[%s1771 + $0x48] sm:$0xf]
      %v1785 = vld [vmem:[%s1771 + $0x4c] sm:$0xf]
      %v1786 = vld [vmem:[%s1771 + $0x54] sm:$0xf]
      %v1787 = vld [vmem:[%s1771 + $0x58] sm:$0xf]
      %v1788 = vld [vmem:[%s1771 + $0x60] sm:$0xf]
      %v1789 = vld [vmem:[%s1771 + $0x64] sm:$0xf]
      %v1790 = vld [vmem:[%s1771 + $0x6c] sm:$0xf]
      %v1791 = vld [vmem:[%s1771 + $0x70] sm:$0xf]
      %1812 = vrot.lane.b32.xlu0 %v1772, 48
      %v1813 = vpop.permute.xlu0 %1812
      %1814 = vrot.lane.b32.xlu0 %v1773, 48
      %v1815 = vpop.permute.xlu0 %1814
      %1816 = vrot.lane.b32.xlu0 %v1774, 48
      %v1817 = vpop.permute.xlu0 %1816
      %1818 = vrot.lane.b32.xlu0 %v1775, 48
      %v1819 = vpop.permute.xlu0 %1818
      %1820 = vrot.lane.b32.xlu0 %v1776, 48
      %v1821 = vpop.permute.xlu0 %1820
      %1822 = vrot.lane.b32.xlu0 %v1777, 48
      %v1823 = vpop.permute.xlu0 %1822
      %1824 = vrot.lane.b32.xlu0 %v1778, 48
      %v1825 = vpop.permute.xlu0 %1824
      %1826 = vrot.lane.b32.xlu0 %v1779, 48
      %v1827 = vpop.permute.xlu0 %1826
      %1828 = vrot.lane.b32.xlu0 %v1780, 48
      %v1829 = vpop.permute.xlu0 %1828
      %1830 = vrot.lane.b32.xlu0 %v1781, 48
      %v1831 = vpop.permute.xlu0 %1830
      %1832 = vrot.lane.b32.xlu0 %v1782, 48
      %v1833 = vpop.permute.xlu0 %1832
      %1834 = vrot.lane.b32.xlu0 %v1783, 48
      %v1835 = vpop.permute.xlu0 %1834
      %1836 = vrot.lane.b32.xlu0 %v1784, 48
      %v1837 = vpop.permute.xlu0 %1836
      %1838 = vrot.lane.b32.xlu0 %v1785, 48
      %v1839 = vpop.permute.xlu0 %1838
      %1840 = vrot.lane.b32.xlu0 %v1786, 48
      %v1841 = vpop.permute.xlu0 %1840
      %1842 = vrot.lane.b32.xlu0 %v1787, 48
      %v1843 = vpop.permute.xlu0 %1842
      %1844 = vrot.lane.b32.xlu0 %v1788, 48
      %v1845 = vpop.permute.xlu0 %1844
      %1846 = vrot.lane.b32.xlu0 %v1789, 48
      %v1847 = vpop.permute.xlu0 %1846
      %1848 = vrot.lane.b32.xlu0 %v1790, 48
      %v1849 = vpop.permute.xlu0 %1848
      %1850 = vrot.lane.b32.xlu0 %v1791, 48
      %v1851 = vpop.permute.xlu0 %1850
      %vm1872 = vcmask 454016
      %1873 = vst.msk [vmem:[#allocation3] sm:$0xf] %vm1872, %v1813
      %1874 = vst.msk [vmem:[#allocation3 + $0x4] sm:$0xf] %vm1872, %v1815
      %1875 = vst.msk [vmem:[#allocation3 + $0x8] sm:$0xf] %vm1872, %v1817
      %1876 = vst.msk [vmem:[#allocation3 + $0xc] sm:$0xf] %vm1872, %v1819
      %1877 = vst.msk [vmem:[#allocation3 + $0x10] sm:$0xf] %vm1872, %v1821
      %1878 = vst.msk [vmem:[#allocation3 + $0x14] sm:$0xf] %vm1872, %v1823
      %1879 = vst.msk [vmem:[#allocation3 + $0x18] sm:$0xf] %vm1872, %v1825
      %1880 = vst.msk [vmem:[#allocation3 + $0x1c] sm:$0xf] %vm1872, %v1827
      %1881 = vst.msk [vmem:[#allocation3 + $0x20] sm:$0xf] %vm1872, %v1829
      %1882 = vst.msk [vmem:[#allocation3 + $0x24] sm:$0xf] %vm1872, %v1831
      %1883 = vst.msk [vmem:[#allocation3 + $0x28] sm:$0xf] %vm1872, %v1833
      %1884 = vst.msk [vmem:[#allocation3 + $0x2c] sm:$0xf] %vm1872, %v1835
      %1885 = vst.msk [vmem:[#allocation3 + $0x30] sm:$0xf] %vm1872, %v1837
      %1886 = vst.msk [vmem:[#allocation3 + $0x34] sm:$0xf] %vm1872, %v1839
      %1887 = vst.msk [vmem:[#allocation3 + $0x38] sm:$0xf] %vm1872, %v1841
      %1888 = vst.msk [vmem:[#allocation3 + $0x3c] sm:$0xf] %vm1872, %v1843
      %1889 = vst.msk [vmem:[#allocation3 + $0x40] sm:$0xf] %vm1872, %v1845
      %1890 = vst.msk [vmem:[#allocation3 + $0x44] sm:$0xf] %vm1872, %v1847
      %1891 = vst.msk [vmem:[#allocation3 + $0x48] sm:$0xf] %vm1872, %v1849
      %1892 = vst.msk [vmem:[#allocation3 + $0x4c] sm:$0xf] %vm1872, %v1851
      %v1893 = vld [vmem:[%s1771] sm:$0xf]
      %v1894 = vld [vmem:[%s1771 + $0x4] sm:$0xf]
      %v1895 = vld [vmem:[%s1771 + $0x8] sm:$0x1]
      %v1896 = vld [vmem:[%s1771 + $0xc] sm:$0xf]
      %v1897 = vld [vmem:[%s1771 + $0x10] sm:$0xf]
      %v1898 = vld [vmem:[%s1771 + $0x14] sm:$0x1]
      %v1899 = vld [vmem:[%s1771 + $0x18] sm:$0xf]
      %v1900 = vld [vmem:[%s1771 + $0x1c] sm:$0xf]
      %v1901 = vld [vmem:[%s1771 + $0x20] sm:$0x1]
      %v1902 = vld [vmem:[%s1771 + $0x24] sm:$0xf]
      %v1903 = vld [vmem:[%s1771 + $0x28] sm:$0xf]
      %v1904 = vld [vmem:[%s1771 + $0x2c] sm:$0x1]
      %v1905 = vld [vmem:[%s1771 + $0x30] sm:$0xf]
      %v1906 = vld [vmem:[%s1771 + $0x34] sm:$0xf]
      %v1907 = vld [vmem:[%s1771 + $0x38] sm:$0x1]
      %v1908 = vld [vmem:[%s1771 + $0x3c] sm:$0xf]
      %v1909 = vld [vmem:[%s1771 + $0x40] sm:$0xf]
      %v1910 = vld [vmem:[%s1771 + $0x44] sm:$0x1]
      %v1911 = vld [vmem:[%s1771 + $0x48] sm:$0xf]
      %v1912 = vld [vmem:[%s1771 + $0x4c] sm:$0xf]
      %v1913 = vld [vmem:[%s1771 + $0x50] sm:$0x1]
      %v1914 = vld [vmem:[%s1771 + $0x54] sm:$0xf]
      %v1915 = vld [vmem:[%s1771 + $0x58] sm:$0xf]
      %v1916 = vld [vmem:[%s1771 + $0x5c] sm:$0x1]
      %v1917 = vld [vmem:[%s1771 + $0x60] sm:$0xf]
      %v1918 = vld [vmem:[%s1771 + $0x64] sm:$0xf]
      %v1919 = vld [vmem:[%s1771 + $0x68] sm:$0x1]
      %v1920 = vld [vmem:[%s1771 + $0x6c] sm:$0xf]
      %v1921 = vld [vmem:[%s1771 + $0x70] sm:$0xf]
      %v1922 = vld [vmem:[%s1771 + $0x74] sm:$0x1]
      %v1924 = vshrl.u32 %v1893, 16
      %v1926 = vrot.slane %v1924, 4
      %v1927 = vshll.u32 %v1893, 16
      %v1929 = vrot.slane %v1927, 5
      %v1930 = vor.u32 %v1926, %v1929
      %v1931 = vrot.slane %v1930, 4
      %v1933 = vshll.u32 %v1894, 16
      %v1935 = vrot.slane %v1933, 5
      %v1936 = vsel %vm551, %v1931, %v1935
      %v1937 = vshrl.u32 %v1894, 16
      %v1939 = vrot.slane %v1937, 4
      %v1940 = vor.u32 %v1939, %v1935
      %v1941 = vrot.slane %v1940, 4
      %v1943 = vshll.u32 %v1895, 16
      %v1945 = vrot.slane %v1943, 5
      %v1946 = vsel %vm551, %v1941, %v1945
      %v1948 = vshrl.u32 %v1896, 16
      %v1950 = vrot.slane %v1948, 4
      %v1951 = vshll.u32 %v1896, 16
      %v1953 = vrot.slane %v1951, 5
      %v1954 = vor.u32 %v1950, %v1953
      %v1955 = vrot.slane %v1954, 4
      %v1957 = vshll.u32 %v1897, 16
      %v1959 = vrot.slane %v1957, 5
      %v1960 = vsel %vm551, %v1955, %v1959
      %v1961 = vshrl.u32 %v1897, 16
      %v1963 = vrot.slane %v1961, 4
      %v1964 = vor.u32 %v1963, %v1959
      %v1965 = vrot.slane %v1964, 4
      %v1967 = vshll.u32 %v1898, 16
      %v1969 = vrot.slane %v1967, 5
      %v1970 = vsel %vm551, %v1965, %v1969
      %v1972 = vshrl.u32 %v1899, 16
      %v1974 = vrot.slane %v1972, 4
      %v1975 = vshll.u32 %v1899, 16
      %v1977 = vrot.slane %v1975, 5
      %v1978 = vor.u32 %v1974, %v1977
      %v1979 = vrot.slane %v1978, 4
      %v1981 = vshll.u32 %v1900, 16
      %v1983 = vrot.slane %v1981, 5
      %v1984 = vsel %vm551, %v1979, %v1983
      %v1985 = vshrl.u32 %v1900, 16
      %v1987 = vrot.slane %v1985, 4
      %v1988 = vor.u32 %v1987, %v1983
      %v1989 = vrot.slane %v1988, 4
      %v1991 = vshll.u32 %v1901, 16
      %v1993 = vrot.slane %v1991, 5
      %v1994 = vsel %vm551, %v1989, %v1993
      %v1996 = vshrl.u32 %v1902, 16
      %v1998 = vrot.slane %v1996, 4
      %v1999 = vshll.u32 %v1902, 16
      %v2001 = vrot.slane %v1999, 5
      %v2002 = vor.u32 %v1998, %v2001
      %v2003 = vrot.slane %v2002, 4
      %v2005 = vshll.u32 %v1903, 16
      %v2007 = vrot.slane %v2005, 5
      %v2008 = vsel %vm551, %v2003, %v2007
      %v2009 = vshrl.u32 %v1903, 16
      %v2011 = vrot.slane %v2009, 4
      %v2012 = vor.u32 %v2011, %v2007
      %v2013 = vrot.slane %v2012, 4
      %v2015 = vshll.u32 %v1904, 16
      %v2017 = vrot.slane %v2015, 5
      %v2018 = vsel %vm551, %v2013, %v2017
      %v2020 = vshrl.u32 %v1905, 16
      %v2022 = vrot.slane %v2020, 4
      %v2023 = vshll.u32 %v1905, 16
      %v2025 = vrot.slane %v2023, 5
      %v2026 = vor.u32 %v2022, %v2025
      %v2027 = vrot.slane %v2026, 4
      %v2029 = vshll.u32 %v1906, 16
      %v2031 = vrot.slane %v2029, 5
      %v2032 = vsel %vm551, %v2027, %v2031
      %v2033 = vshrl.u32 %v1906, 16
      %v2035 = vrot.slane %v2033, 4
      %v2036 = vor.u32 %v2035, %v2031
      %v2037 = vrot.slane %v2036, 4
      %v2039 = vshll.u32 %v1907, 16
      %v2041 = vrot.slane %v2039, 5
      %v2042 = vsel %vm551, %v2037, %v2041
      %v2044 = vshrl.u32 %v1908, 16
      %v2046 = vrot.slane %v2044, 4
      %v2047 = vshll.u32 %v1908, 16
      %v2049 = vrot.slane %v2047, 5
      %v2050 = vor.u32 %v2046, %v2049
      %v2051 = vrot.slane %v2050, 4
      %v2053 = vshll.u32 %v1909, 16
      %v2055 = vrot.slane %v2053, 5
      %v2056 = vsel %vm551, %v2051, %v2055
      %v2057 = vshrl.u32 %v1909, 16
      %v2059 = vrot.slane %v2057, 4
      %v2060 = vor.u32 %v2059, %v2055
      %v2061 = vrot.slane %v2060, 4
      %v2063 = vshll.u32 %v1910, 16
      %v2065 = vrot.slane %v2063, 5
      %v2066 = vsel %vm551, %v2061, %v2065
      %v2068 = vshrl.u32 %v1911, 16
      %v2070 = vrot.slane %v2068, 4
      %v2071 = vshll.u32 %v1911, 16
      %v2073 = vrot.slane %v2071, 5
      %v2074 = vor.u32 %v2070, %v2073
      %v2075 = vrot.slane %v2074, 4
      %v2077 = vshll.u32 %v1912, 16
      %v2079 = vrot.slane %v2077, 5
      %v2080 = vsel %vm551, %v2075, %v2079
      %v2081 = vshrl.u32 %v1912, 16
      %v2083 = vrot.slane %v2081, 4
      %v2084 = vor.u32 %v2083, %v2079
      %v2085 = vrot.slane %v2084, 4
      %v2087 = vshll.u32 %v1913, 16
      %v2089 = vrot.slane %v2087, 5
      %v2090 = vsel %vm551, %v2085, %v2089
      %v2092 = vshrl.u32 %v1914, 16
      %v2094 = vrot.slane %v2092, 4
      %v2095 = vshll.u32 %v1914, 16
      %v2097 = vrot.slane %v2095, 5
      %v2098 = vor.u32 %v2094, %v2097
      %v2099 = vrot.slane %v2098, 4
      %v2101 = vshll.u32 %v1915, 16
      %v2103 = vrot.slane %v2101, 5
      %v2104 = vsel %vm551, %v2099, %v2103
      %v2105 = vshrl.u32 %v1915, 16
      %v2107 = vrot.slane %v2105, 4
      %v2108 = vor.u32 %v2107, %v2103
      %v2109 = vrot.slane %v2108, 4
      %v2111 = vshll.u32 %v1916, 16
      %v2113 = vrot.slane %v2111, 5
      %v2114 = vsel %vm551, %v2109, %v2113
      %v2116 = vshrl.u32 %v1917, 16
      %v2118 = vrot.slane %v2116, 4
      %v2119 = vshll.u32 %v1917, 16
      %v2121 = vrot.slane %v2119, 5
      %v2122 = vor.u32 %v2118, %v2121
      %v2123 = vrot.slane %v2122, 4
      %v2125 = vshll.u32 %v1918, 16
      %v2127 = vrot.slane %v2125, 5
      %v2128 = vsel %vm551, %v2123, %v2127
      %v2129 = vshrl.u32 %v1918, 16
      %v2131 = vrot.slane %v2129, 4
      %v2132 = vor.u32 %v2131, %v2127
      %v2133 = vrot.slane %v2132, 4
      %v2135 = vshll.u32 %v1919, 16
      %v2137 = vrot.slane %v2135, 5
      %v2138 = vsel %vm551, %v2133, %v2137
      %v2140 = vshrl.u32 %v1920, 16
      %v2142 = vrot.slane %v2140, 4
      %v2143 = vshll.u32 %v1920, 16
      %v2145 = vrot.slane %v2143, 5
      %v2146 = vor.u32 %v2142, %v2145
      %v2147 = vrot.slane %v2146, 4
      %v2149 = vshll.u32 %v1921, 16
      %v2151 = vrot.slane %v2149, 5
      %v2152 = vsel %vm551, %v2147, %v2151
      %v2153 = vshrl.u32 %v1921, 16
      %v2155 = vrot.slane %v2153, 4
      %v2156 = vor.u32 %v2155, %v2151
      %v2157 = vrot.slane %v2156, 4
      %v2159 = vshll.u32 %v1922, 16
      %v2161 = vrot.slane %v2159, 5
      %v2162 = vsel %vm551, %v2157, %v2161
      %2163 = vrot.lane.b32.xlu0 %v1936, 56
      %v2164 = vpop.permute.xlu0 %2163
      %2165 = vrot.lane.b32.xlu0 %v1946, 56
      %v2166 = vpop.permute.xlu0 %2165
      %2167 = vrot.lane.b32.xlu0 %v1960, 56
      %v2168 = vpop.permute.xlu0 %2167
      %2169 = vrot.lane.b32.xlu0 %v1970, 56
      %v2170 = vpop.permute.xlu0 %2169
      %2171 = vrot.lane.b32.xlu0 %v1984, 56
      %v2172 = vpop.permute.xlu0 %2171
      %2173 = vrot.lane.b32.xlu0 %v1994, 56
      %v2174 = vpop.permute.xlu0 %2173
      %2175 = vrot.lane.b32.xlu0 %v2008, 56
      %v2176 = vpop.permute.xlu0 %2175
      %2177 = vrot.lane.b32.xlu0 %v2018, 56
      %v2178 = vpop.permute.xlu0 %2177
      %2179 = vrot.lane.b32.xlu0 %v2032, 56
      %v2180 = vpop.permute.xlu0 %2179
      %2181 = vrot.lane.b32.xlu0 %v2042, 56
      %v2182 = vpop.permute.xlu0 %2181
      %2183 = vrot.lane.b32.xlu0 %v2056, 56
      %v2184 = vpop.permute.xlu0 %2183
      %2185 = vrot.lane.b32.xlu0 %v2066, 56
      %v2186 = vpop.permute.xlu0 %2185
      %2187 = vrot.lane.b32.xlu0 %v2080, 56
      %v2188 = vpop.permute.xlu0 %2187
      %2189 = vrot.lane.b32.xlu0 %v2090, 56
      %v2190 = vpop.permute.xlu0 %2189
      %2191 = vrot.lane.b32.xlu0 %v2104, 56
      %v2192 = vpop.permute.xlu0 %2191
      %2193 = vrot.lane.b32.xlu0 %v2114, 56
      %v2194 = vpop.permute.xlu0 %2193
      %2195 = vrot.lane.b32.xlu0 %v2128, 56
      %v2196 = vpop.permute.xlu0 %2195
      %2197 = vrot.lane.b32.xlu0 %v2138, 56
      %v2198 = vpop.permute.xlu0 %2197
      %2199 = vrot.lane.b32.xlu0 %v2152, 56
      %v2200 = vpop.permute.xlu0 %2199
      %2201 = vrot.lane.b32.xlu0 %v2162, 56
      %v2202 = vpop.permute.xlu0 %2201
      %vm2223 = vcmask 519616
      %2224 = vst.msk [vmem:[#allocation3] sm:$0xf] %vm2223, %v2164
      %2225 = vst.msk [vmem:[#allocation3 + $0x4] sm:$0xf] %vm2223, %v2166
      %2226 = vst.msk [vmem:[#allocation3 + $0x8] sm:$0xf] %vm2223, %v2168
      %2227 = vst.msk [vmem:[#allocation3 + $0xc] sm:$0xf] %vm2223, %v2170
      %2228 = vst.msk [vmem:[#allocation3 + $0x10] sm:$0xf] %vm2223, %v2172
      %2229 = vst.msk [vmem:[#allocation3 + $0x14] sm:$0xf] %vm2223, %v2174
      %2230 = vst.msk [vmem:[#allocation3 + $0x18] sm:$0xf] %vm2223, %v2176
      %2231 = vst.msk [vmem:[#allocation3 + $0x1c] sm:$0xf] %vm2223, %v2178
      %2232 = vst.msk [vmem:[#allocation3 + $0x20] sm:$0xf] %vm2223, %v2180
      %2233 = vst.msk [vmem:[#allocation3 + $0x24] sm:$0xf] %vm2223, %v2182
      %2234 = vst.msk [vmem:[#allocation3 + $0x28] sm:$0xf] %vm2223, %v2184
      %2235 = vst.msk [vmem:[#allocation3 + $0x2c] sm:$0xf] %vm2223, %v2186
      %2236 = vst.msk [vmem:[#allocation3 + $0x30] sm:$0xf] %vm2223, %v2188
      %2237 = vst.msk [vmem:[#allocation3 + $0x34] sm:$0xf] %vm2223, %v2190
      %2238 = vst.msk [vmem:[#allocation3 + $0x38] sm:$0xf] %vm2223, %v2192
      %2239 = vst.msk [vmem:[#allocation3 + $0x3c] sm:$0xf] %vm2223, %v2194
      %2240 = vst.msk [vmem:[#allocation3 + $0x40] sm:$0xf] %vm2223, %v2196
      %2241 = vst.msk [vmem:[#allocation3 + $0x44] sm:$0xf] %vm2223, %v2198
      %2242 = vst.msk [vmem:[#allocation3 + $0x48] sm:$0xf] %vm2223, %v2200
      %2243 = vst.msk [vmem:[#allocation3 + $0x4c] sm:$0xf] %vm2223, %v2202
      %v2244 = vld [vmem:[%s1771] sm:$0xe]
      %v2245 = vld [vmem:[%s1771 + $0x4] sm:$0xf]
      %v2246 = vld [vmem:[%s1771 + $0x8] sm:$0x1]
      %v2247 = vld [vmem:[%s1771 + $0xc] sm:$0xe]
      %v2248 = vld [vmem:[%s1771 + $0x10] sm:$0xf]
      %v2249 = vld [vmem:[%s1771 + $0x14] sm:$0x1]
      %v2250 = vld [vmem:[%s1771 + $0x18] sm:$0xe]
      %v2251 = vld [vmem:[%s1771 + $0x1c] sm:$0xf]
      %v2252 = vld [vmem:[%s1771 + $0x20] sm:$0x1]
      %v2253 = vld [vmem:[%s1771 + $0x24] sm:$0xe]
      %v2254 = vld [vmem:[%s1771 + $0x28] sm:$0xf]
      %v2255 = vld [vmem:[%s1771 + $0x2c] sm:$0x1]
      %v2256 = vld [vmem:[%s1771 + $0x30] sm:$0xe]
      %v2257 = vld [vmem:[%s1771 + $0x34] sm:$0xf]
      %v2258 = vld [vmem:[%s1771 + $0x38] sm:$0x1]
      %v2259 = vld [vmem:[%s1771 + $0x3c] sm:$0xe]
      %v2260 = vld [vmem:[%s1771 + $0x40] sm:$0xf]
      %v2261 = vld [vmem:[%s1771 + $0x44] sm:$0x1]
      %v2262 = vld [vmem:[%s1771 + $0x48] sm:$0xe]
      %v2263 = vld [vmem:[%s1771 + $0x4c] sm:$0xf]
      %v2264 = vld [vmem:[%s1771 + $0x50] sm:$0x1]
      %v2265 = vld [vmem:[%s1771 + $0x54] sm:$0xe]
      %v2266 = vld [vmem:[%s1771 + $0x58] sm:$0xf]
      %v2267 = vld [vmem:[%s1771 + $0x5c] sm:$0x1]
      %v2268 = vld [vmem:[%s1771 + $0x60] sm:$0xe]
      %v2269 = vld [vmem:[%s1771 + $0x64] sm:$0xf]
      %v2270 = vld [vmem:[%s1771 + $0x68] sm:$0x1]
      %v2271 = vld [vmem:[%s1771 + $0x6c] sm:$0xe]
      %v2272 = vld [vmem:[%s1771 + $0x70] sm:$0xf]
      %v2273 = vld [vmem:[%s1771 + $0x74] sm:$0x1]
      %v2304 = vrot.slane %v2244, 5
      %v2305 = vrot.slane %v2304, 4
      %v2306 = vrot.slane %v2245, 5
      %v2307 = vsel %vm935, %v2305, %v2306
      %v2308 = vrot.slane %v2306, 4
      %v2309 = vrot.slane %v2246, 5
      %v2310 = vsel %vm935, %v2308, %v2309
      %v2311 = vrot.slane %v2247, 5
      %v2312 = vrot.slane %v2311, 4
      %v2313 = vrot.slane %v2248, 5
      %v2314 = vsel %vm935, %v2312, %v2313
      %v2315 = vrot.slane %v2313, 4
      %v2316 = vrot.slane %v2249, 5
      %v2317 = vsel %vm935, %v2315, %v2316
      %v2318 = vrot.slane %v2250, 5
      %v2319 = vrot.slane %v2318, 4
      %v2320 = vrot.slane %v2251, 5
      %v2321 = vsel %vm935, %v2319, %v2320
      %v2322 = vrot.slane %v2320, 4
      %v2323 = vrot.slane %v2252, 5
      %v2324 = vsel %vm935, %v2322, %v2323
      %v2325 = vrot.slane %v2253, 5
      %v2326 = vrot.slane %v2325, 4
      %v2327 = vrot.slane %v2254, 5
      %v2328 = vsel %vm935, %v2326, %v2327
      %v2329 = vrot.slane %v2327, 4
      %v2330 = vrot.slane %v2255, 5
      %v2331 = vsel %vm935, %v2329, %v2330
      %v2332 = vrot.slane %v2256, 5
      %v2333 = vrot.slane %v2332, 4
      %v2334 = vrot.slane %v2257, 5
      %v2335 = vsel %vm935, %v2333, %v2334
      %v2336 = vrot.slane %v2334, 4
      %v2337 = vrot.slane %v2258, 5
      %v2338 = vsel %vm935, %v2336, %v2337
      %v2339 = vrot.slane %v2259, 5
      %v2340 = vrot.slane %v2339, 4
      %v2341 = vrot.slane %v2260, 5
      %v2342 = vsel %vm935, %v2340, %v2341
      %v2343 = vrot.slane %v2341, 4
      %v2344 = vrot.slane %v2261, 5
      %v2345 = vsel %vm935, %v2343, %v2344
      %v2346 = vrot.slane %v2262, 5
      %v2347 = vrot.slane %v2346, 4
      %v2348 = vrot.slane %v2263, 5
      %v2349 = vsel %vm935, %v2347, %v2348
      %v2350 = vrot.slane %v2348, 4
      %v2351 = vrot.slane %v2264, 5
      %v2352 = vsel %vm935, %v2350, %v2351
      %v2353 = vrot.slane %v2265, 5
      %v2354 = vrot.slane %v2353, 4
      %v2355 = vrot.slane %v2266, 5
      %v2356 = vsel %vm935, %v2354, %v2355
      %v2357 = vrot.slane %v2355, 4
      %v2358 = vrot.slane %v2267, 5
      %v2359 = vsel %vm935, %v2357, %v2358
      %v2360 = vrot.slane %v2268, 5
      %v2361 = vrot.slane %v2360, 4
      %v2362 = vrot.slane %v2269, 5
      %v2363 = vsel %vm935, %v2361, %v2362
      %v2364 = vrot.slane %v2362, 4
      %v2365 = vrot.slane %v2270, 5
      %v2366 = vsel %vm935, %v2364, %v2365
      %v2367 = vrot.slane %v2271, 5
      %v2368 = vrot.slane %v2367, 4
      %v2369 = vrot.slane %v2272, 5
      %v2370 = vsel %vm935, %v2368, %v2369
      %v2371 = vrot.slane %v2369, 4
      %v2372 = vrot.slane %v2273, 5
      %v2373 = vsel %vm935, %v2371, %v2372
      %2374 = vrot.lane.b32.xlu0 %v2307, 64
      %v2375 = vpop.permute.xlu0 %2374
      %2376 = vrot.lane.b32.xlu0 %v2310, 64
      %v2377 = vpop.permute.xlu0 %2376
      %2378 = vrot.lane.b32.xlu0 %v2314, 64
      %v2379 = vpop.permute.xlu0 %2378
      %2380 = vrot.lane.b32.xlu0 %v2317, 64
      %v2381 = vpop.permute.xlu0 %2380
      %2382 = vrot.lane.b32.xlu0 %v2321, 64
      %v2383 = vpop.permute.xlu0 %2382
      %2384 = vrot.lane.b32.xlu0 %v2324, 64
      %v2385 = vpop.permute.xlu0 %2384
      %2386 = vrot.lane.b32.xlu0 %v2328, 64
      %v2387 = vpop.permute.xlu0 %2386
      %2388 = vrot.lane.b32.xlu0 %v2331, 64
      %v2389 = vpop.permute.xlu0 %2388
      %2390 = vrot.lane.b32.xlu0 %v2335, 64
      %v2391 = vpop.permute.xlu0 %2390
      %2392 = vrot.lane.b32.xlu0 %v2338, 64
      %v2393 = vpop.permute.xlu0 %2392
      %2394 = vrot.lane.b32.xlu0 %v2342, 64
      %v2395 = vpop.permute.xlu0 %2394
      %2396 = vrot.lane.b32.xlu0 %v2345, 64
      %v2397 = vpop.permute.xlu0 %2396
      %2398 = vrot.lane.b32.xlu0 %v2349, 64
      %v2399 = vpop.permute.xlu0 %2398
      %2400 = vrot.lane.b32.xlu0 %v2352, 64
      %v2401 = vpop.permute.xlu0 %2400
      %2402 = vrot.lane.b32.xlu0 %v2356, 64
      %v2403 = vpop.permute.xlu0 %2402
      %2404 = vrot.lane.b32.xlu0 %v2359, 64
      %v2405 = vpop.permute.xlu0 %2404
      %2406 = vrot.lane.b32.xlu0 %v2363, 64
      %v2407 = vpop.permute.xlu0 %2406
      %2408 = vrot.lane.b32.xlu0 %v2366, 64
      %v2409 = vpop.permute.xlu0 %2408
      %2410 = vrot.lane.b32.xlu0 %v2370, 64
      %v2411 = vpop.permute.xlu0 %2410
      %2412 = vrot.lane.b32.xlu0 %v2373, 64
      %v2413 = vpop.permute.xlu0 %2412
      %vm2434 = vcmask 585216
      %2435 = vst.msk [vmem:[#allocation3] sm:$0xf] %vm2434, %v2375
      %2436 = vst.msk [vmem:[#allocation3 + $0x4] sm:$0xf] %vm2434, %v2377
      %2437 = vst.msk [vmem:[#allocation3 + $0x8] sm:$0xf] %vm2434, %v2379
      %2438 = vst.msk [vmem:[#allocation3 + $0xc] sm:$0xf] %vm2434, %v2381
      %2439 = vst.msk [vmem:[#allocation3 + $0x10] sm:$0xf] %vm2434, %v2383
      %2440 = vst.msk [vmem:[#allocation3 + $0x14] sm:$0xf] %vm2434, %v2385
      %2441 = vst.msk [vmem:[#allocation3 + $0x18] sm:$0xf] %vm2434, %v2387
      %2442 = vst.msk [vmem:[#allocation3 + $0x1c] sm:$0xf] %vm2434, %v2389
      %2443 = vst.msk [vmem:[#allocation3 + $0x20] sm:$0xf] %vm2434, %v2391
      %2444 = vst.msk [vmem:[#allocation3 + $0x24] sm:$0xf] %vm2434, %v2393
      %2445 = vst.msk [vmem:[#allocation3 + $0x28] sm:$0xf] %vm2434, %v2395
      %2446 = vst.msk [vmem:[#allocation3 + $0x2c] sm:$0xf] %vm2434, %v2397
      %2447 = vst.msk [vmem:[#allocation3 + $0x30] sm:$0xf] %vm2434, %v2399
      %2448 = vst.msk [vmem:[#allocation3 + $0x34] sm:$0xf] %vm2434, %v2401
      %2449 = vst.msk [vmem:[#allocation3 + $0x38] sm:$0xf] %vm2434, %v2403
      %2450 = vst.msk [vmem:[#allocation3 + $0x3c] sm:$0xf] %vm2434, %v2405
      %2451 = vst.msk [vmem:[#allocation3 + $0x40] sm:$0xf] %vm2434, %v2407
      %2452 = vst.msk [vmem:[#allocation3 + $0x44] sm:$0xf] %vm2434, %v2409
      %2453 = vst.msk [vmem:[#allocation3 + $0x48] sm:$0xf] %vm2434, %v2411
      %2454 = vst.msk [vmem:[#allocation3 + $0x4c] sm:$0xf] %vm2434, %v2413
      %v2455 = vld [vmem:[#allocation3] sm:$0xf]
      %v2456 = vld [vmem:[#allocation3 + $0x4] sm:$0xf]
      %v2457 = vld [vmem:[#allocation3 + $0x8] sm:$0xf]
      %v2458 = vld [vmem:[#allocation3 + $0xc] sm:$0xf]
      %v2459 = vld [vmem:[#allocation3 + $0x10] sm:$0xf]
      %v2460 = vld [vmem:[#allocation3 + $0x14] sm:$0xf]
      %v2461 = vld [vmem:[#allocation3 + $0x18] sm:$0xf]
      %v2462 = vld [vmem:[#allocation3 + $0x1c] sm:$0xf]
      %v2463 = vld [vmem:[#allocation3 + $0x20] sm:$0xf]
      %v2464 = vld [vmem:[#allocation3 + $0x24] sm:$0xf]
      %v2465 = vld [vmem:[#allocation3 + $0x28] sm:$0xf]
      %v2466 = vld [vmem:[#allocation3 + $0x2c] sm:$0xf]
      %v2467 = vld [vmem:[#allocation3 + $0x30] sm:$0xf]
      %v2468 = vld [vmem:[#allocation3 + $0x34] sm:$0xf]
      %v2469 = vld [vmem:[#allocation3 + $0x38] sm:$0xf]
      %v2470 = vld [vmem:[#allocation3 + $0x3c] sm:$0xf]
      %v2471 = vld [vmem:[#allocation3 + $0x40] sm:$0xf]
      %v2472 = vld [vmem:[#allocation3 + $0x44] sm:$0xf]
      %v2473 = vld [vmem:[#allocation3 + $0x48] sm:$0xf]
      %v2474 = vld [vmem:[#allocation3 + $0x4c] sm:$0xf]
      %v2475 = vld [vmem:[%s2] sm:$0xf]
      %v2476 = vld [vmem:[%s2 + $0x4] sm:$0xf]
      %v2477 = vld [vmem:[%s2 + $0x8] sm:$0xf]
      %v2478 = vld [vmem:[%s2 + $0xc] sm:$0xf]
      %v2479 = vld [vmem:[%s2 + $0x10] sm:$0xf]
      %v2480 = vld [vmem:[%s2 + $0x14] sm:$0xf]
      %v2481 = vld [vmem:[%s2 + $0x18] sm:$0xf]
      %v2482 = vld [vmem:[%s2 + $0x1c] sm:$0xf]
      %v2483 = vld [vmem:[%s2 + $0x20] sm:$0xf]
      %v2504 = vunpack.c.l.b16 %v2455
      %v2505 = vunpack.c.l.b16 %v2456
      %v2506 = vunpack.c.l.b16 %v2457
      %v2507 = vunpack.c.l.b16 %v2458
      %v2508 = vunpack.c.l.b16 %v2459
      %v2509 = vunpack.c.l.b16 %v2460
      %v2510 = vunpack.c.l.b16 %v2461
      %v2511 = vunpack.c.l.b16 %v2462
      %v2512 = vunpack.c.l.b16 %v2463
      %v2513 = vunpack.c.l.b16 %v2464
      %v2514 = vunpack.c.l.b16 %v2465
      %v2515 = vunpack.c.l.b16 %v2466
      %v2516 = vunpack.c.l.b16 %v2467
      %v2517 = vunpack.c.l.b16 %v2468
      %v2518 = vunpack.c.l.b16 %v2469
      %v2519 = vunpack.c.l.b16 %v2470
      %v2520 = vunpack.c.l.b16 %v2471
      %v2521 = vunpack.c.l.b16 %v2472
      %v2522 = vunpack.c.l.b16 %v2473
      %v2523 = vunpack.c.l.b16 %v2474
      %v2524 = vpack.c.b16 %v2505, %v2504
      %v2525 = vpack.c.b16 %v2507, %v2506
      %v2526 = vpack.c.b16 %v2509, %v2508
      %v2527 = vpack.c.b16 %v2511, %v2510
      %v2528 = vpack.c.b16 %v2513, %v2512
      %v2529 = vpack.c.b16 %v2515, %v2514
      %v2530 = vpack.c.b16 %v2517, %v2516
      %v2531 = vpack.c.b16 %v2519, %v2518
      %v2532 = vpack.c.b16 %v2521, %v2520
      %v2533 = vpack.c.b16 %v2523, %v2522
      %v2543 = vunpack.c.l.b16 %v2475
      %v2544 = vunpack.c.l.b16 %v2476
      %v2545 = vunpack.c.l.b16 %v2477
      %v2546 = vunpack.c.l.b16 %v2478
      %v2547 = vunpack.c.l.b16 %v2479
      %v2548 = vunpack.c.l.b16 %v2480
      %v2549 = vunpack.c.l.b16 %v2481
      %v2550 = vunpack.c.l.b16 %v2482
      %v2551 = vunpack.c.l.b16 %v2483
      %v2552 = vpack.c.b16 %v2544, %v2543
      %v2553 = vpack.c.b16 %v2546, %v2545
      %v2554 = vpack.c.b16 %v2548, %v2547
      %v2555 = vpack.c.b16 %v2550, %v2549
      %v2556 = vpack.c.b16 %v2551, %v2551
      %vm2561 = vcmask 588800
      %v2563 = vsel %vm2561, %v2524, 0
      %v2566 = vsel %vm2561, %v2525, 0
      %v2569 = vsel %vm2561, %v2526, 0
      %v2572 = vsel %vm2561, %v2527, 0
      %v2575 = vsel %vm2561, %v2528, 0
      %v2578 = vsel %vm2561, %v2529, 0
      %v2581 = vsel %vm2561, %v2530, 0
      %v2584 = vsel %vm2561, %v2531, 0
      %v2587 = vsel %vm2561, %v2532, 0
      %v2590 = vsel %vm2561, %v2533, 0
      %vm2592 = vcmask 1043456
      %v2594 = vsel %vm2592, %v2556, 0
      %2596 = vmatpush.bf16.msra.mxu0 0
      %2597 = vmatpush.bf16.msra.mxu0 0
      %2598 = vmatpush.bf16.msra.mxu0 0
      %2599 = vmatpush.bf16.msra.mxu0 %v2594
      %2600 = vmatpush.bf16.msra.mxu0 %v2555
      %2601 = vmatpush.bf16.msra.mxu0 %v2554
      %2602 = vmatpush.bf16.msra.mxu0 %v2553
      %2603 = vmatpush.bf16.msra.mxu0 %v2552
      %2604 = vmatmul.bf16.gmra.mxu0 %v2563
      %v2605 = vpop.f32.mrf.mxu0
      %v2606 = vadd.f32 0.0, %v2605
      %v2607 = vpop.f32.mrf.mxu0
      %v2608 = vadd.f32 0.0, %v2607
      %2609 = vmatmul.bf16.gmra.mxu0 %v2566
      %v2610 = vpop.f32.mrf.mxu0
      %v2611 = vadd.f32 0.0, %v2610
      %v2612 = vpop.f32.mrf.mxu0
      %v2613 = vadd.f32 0.0, %v2612
      %2614 = vmatmul.bf16.gmra.mxu0 %v2569
      %v2615 = vpop.f32.mrf.mxu0
      %v2616 = vadd.f32 0.0, %v2615
      %v2617 = vpop.f32.mrf.mxu0
      %v2618 = vadd.f32 0.0, %v2617
      %2619 = vmatmul.bf16.gmra.mxu0 %v2572
      %v2620 = vpop.f32.mrf.mxu0
      %v2621 = vadd.f32 0.0, %v2620
      %v2622 = vpop.f32.mrf.mxu0
      %v2623 = vadd.f32 0.0, %v2622
      %2624 = vmatmul.bf16.gmra.mxu0 %v2575
      %v2625 = vpop.f32.mrf.mxu0
      %v2626 = vadd.f32 0.0, %v2625
      %v2627 = vpop.f32.mrf.mxu0
      %v2628 = vadd.f32 0.0, %v2627
      %2629 = vmatmul.bf16.gmra.mxu0 %v2578
      %v2630 = vpop.f32.mrf.mxu0
      %v2631 = vadd.f32 0.0, %v2630
      %v2632 = vpop.f32.mrf.mxu0
      %v2633 = vadd.f32 0.0, %v2632
      %2634 = vmatmul.bf16.gmra.mxu0 %v2581
      %v2635 = vpop.f32.mrf.mxu0
      %v2636 = vadd.f32 0.0, %v2635
      %v2637 = vpop.f32.mrf.mxu0
      %v2638 = vadd.f32 0.0, %v2637
      %2639 = vmatmul.bf16.gmra.mxu0 %v2584
      %v2640 = vpop.f32.mrf.mxu0
      %v2641 = vadd.f32 0.0, %v2640
      %v2642 = vpop.f32.mrf.mxu0
      %v2643 = vadd.f32 0.0, %v2642
      %2644 = vmatmul.bf16.gmra.mxu0 %v2587
      %v2645 = vpop.f32.mrf.mxu0
      %v2646 = vadd.f32 0.0, %v2645
      %v2647 = vpop.f32.mrf.mxu0
      %v2648 = vadd.f32 0.0, %v2647
      %2649 = vmatmul.bf16.gmra.mxu0 %v2590
      %v2650 = vpop.f32.mrf.mxu0
      %v2651 = vadd.f32 0.0, %v2650
      %v2652 = vpop.f32.mrf.mxu0
      %v2653 = vadd.f32 0.0, %v2652
      %2654 = vdwg.mxu0
      %v2655 = vld [vmem:[%s3] sm:$0x1]
      %v2657 = vperm.slane %v2655, 0
      %v2659 = vmul.f32 %v2606, %v2657
      %v2660 = vmul.f32 %v2608, %v2657
      %v2661 = vmul.f32 %v2611, %v2657
      %v2662 = vmul.f32 %v2613, %v2657
      %v2663 = vmul.f32 %v2616, %v2657
      %v2664 = vmul.f32 %v2618, %v2657
      %v2665 = vmul.f32 %v2621, %v2657
      %v2666 = vmul.f32 %v2623, %v2657
      %v2667 = vmul.f32 %v2626, %v2657
      %v2668 = vmul.f32 %v2628, %v2657
      %v2669 = vmul.f32 %v2631, %v2657
      %v2670 = vmul.f32 %v2633, %v2657
      %v2671 = vmul.f32 %v2636, %v2657
      %v2672 = vmul.f32 %v2638, %v2657
      %v2673 = vmul.f32 %v2641, %v2657
      %v2674 = vmul.f32 %v2643, %v2657
      %v2675 = vmul.f32 %v2646, %v2657
      %v2676 = vmul.f32 %v2648, %v2657
      %v2677 = vmul.f32 %v2651, %v2657
      %v2678 = vmul.f32 %v2653, %v2657
      %v2679 = vld [vmem:[%s4] sm:$0x1]
      %v2681 = vperm.slane %v2679, 0
      %v2683 = vadd.f32 %v2659, %v2681
      %v2684 = vadd.f32 %v2660, %v2681
      %v2685 = vadd.f32 %v2661, %v2681
      %v2686 = vadd.f32 %v2662, %v2681
      %v2687 = vadd.f32 %v2663, %v2681
      %v2688 = vadd.f32 %v2664, %v2681
      %v2689 = vadd.f32 %v2665, %v2681
      %v2690 = vadd.f32 %v2666, %v2681
      %v2691 = vadd.f32 %v2667, %v2681
      %v2692 = vadd.f32 %v2668, %v2681
      %v2693 = vadd.f32 %v2669, %v2681
      %v2694 = vadd.f32 %v2670, %v2681
      %v2695 = vadd.f32 %v2671, %v2681
      %v2696 = vadd.f32 %v2672, %v2681
      %v2697 = vadd.f32 %v2673, %v2681
      %v2698 = vadd.f32 %v2674, %v2681
      %v2699 = vadd.f32 %v2675, %v2681
      %v2700 = vadd.f32 %v2676, %v2681
      %v2701 = vadd.f32 %v2677, %v2681
      %v2702 = vadd.f32 %v2678, %v2681
      %v2703 = vmax.f32 %v2683, 0.0
      %v2704 = vmax.f32 %v2684, 0.0
      %v2705 = vmax.f32 %v2685, 0.0
      %v2706 = vmax.f32 %v2686, 0.0
      %v2707 = vmax.f32 %v2687, 0.0
      %v2708 = vmax.f32 %v2688, 0.0
      %v2709 = vmax.f32 %v2689, 0.0
      %v2710 = vmax.f32 %v2690, 0.0
      %v2711 = vmax.f32 %v2691, 0.0
      %v2712 = vmax.f32 %v2692, 0.0
      %v2713 = vmax.f32 %v2693, 0.0
      %v2714 = vmax.f32 %v2694, 0.0
      %v2715 = vmax.f32 %v2695, 0.0
      %v2716 = vmax.f32 %v2696, 0.0
      %v2717 = vmax.f32 %v2697, 0.0
      %v2718 = vmax.f32 %v2698, 0.0
      %v2719 = vmax.f32 %v2699, 0.0
      %v2720 = vmax.f32 %v2700, 0.0
      %v2721 = vmax.f32 %v2701, 0.0
      %v2722 = vmax.f32 %v2702, 0.0
      %v2723 = vpack.c.bf16 %v2703, %v2703
      %v2724 = vpack.c.bf16 %v2704, %v2704
      %v2725 = vpack.c.bf16 %v2705, %v2705
      %v2726 = vpack.c.bf16 %v2706, %v2706
      %v2727 = vpack.c.bf16 %v2707, %v2707
      %v2728 = vpack.c.bf16 %v2708, %v2708
      %v2729 = vpack.c.bf16 %v2709, %v2709
      %v2730 = vpack.c.bf16 %v2710, %v2710
      %v2731 = vpack.c.bf16 %v2711, %v2711
      %v2732 = vpack.c.bf16 %v2712, %v2712
      %v2733 = vpack.c.bf16 %v2713, %v2713
      %v2734 = vpack.c.bf16 %v2714, %v2714
      %v2735 = vpack.c.bf16 %v2715, %v2715
      %v2736 = vpack.c.bf16 %v2716, %v2716
      %v2737 = vpack.c.bf16 %v2717, %v2717
      %v2738 = vpack.c.bf16 %v2718, %v2718
      %v2739 = vpack.c.bf16 %v2719, %v2719
      %v2740 = vpack.c.bf16 %v2720, %v2720
      %v2741 = vpack.c.bf16 %v2721, %v2721
      %v2742 = vpack.c.bf16 %v2722, %v2722
      %2743 = vst [vmem:[#allocation4 + $0x4] sm:$0xf] %v2723
      %2744 = vst [vmem:[#allocation4 + $0x8] sm:$0xf] %v2724
      %2745 = vst [vmem:[#allocation4 + $0x14] sm:$0xf] %v2725
      %2746 = vst [vmem:[#allocation4 + $0x18] sm:$0xf] %v2726
      %2747 = vst [vmem:[#allocation4 + $0x24] sm:$0xf] %v2727
      %2748 = vst [vmem:[#allocation4 + $0x28] sm:$0xf] %v2728
      %2749 = vst [vmem:[#allocation4 + $0x34] sm:$0xf] %v2729
      %2750 = vst [vmem:[#allocation4 + $0x38] sm:$0xf] %v2730
      %2751 = vst [vmem:[#allocation4 + $0x44] sm:$0xf] %v2731
      %2752 = vst [vmem:[#allocation4 + $0x48] sm:$0xf] %v2732
      %2753 = vst [vmem:[#allocation4 + $0x54] sm:$0xf] %v2733
      %2754 = vst [vmem:[#allocation4 + $0x58] sm:$0xf] %v2734
      %2755 = vst [vmem:[#allocation4 + $0x64] sm:$0xf] %v2735
      %2756 = vst [vmem:[#allocation4 + $0x68] sm:$0xf] %v2736
      %2757 = vst [vmem:[#allocation4 + $0x74] sm:$0xf] %v2737
      %2758 = vst [vmem:[#allocation4 + $0x78] sm:$0xf] %v2738
      %2759 = vst [vmem:[#allocation4 + $0x84] sm:$0xf] %v2739
      %2760 = vst [vmem:[#allocation4 + $0x88] sm:$0xf] %v2740
      %2761 = vst [vmem:[#allocation4 + $0x94] sm:$0xf] %v2741
      %2762 = vst [vmem:[#allocation4 + $0x98] sm:$0xf] %v2742
      %vm2763 = vcmask 1043459
      %vm2764 = vsmask.f32 7950
      %vm2765 = vmand %vm2763, %vm2764
      %v2766 = vld [vmem:[#allocation4] sm:$0x8]
      %v2767 = vsel %vm2765, 0, %v2766
      %2768 = vst [vmem:[#allocation4] sm:$0x8] %v2767
      %v2769 = vld [vmem:[#allocation4 + $0x10] sm:$0x8]
      %v2770 = vsel %vm2765, 0, %v2769
      %2771 = vst [vmem:[#allocation4 + $0x10] sm:$0x8] %v2770
      %v2772 = vld [vmem:[#allocation4 + $0x20] sm:$0x8]
      %v2773 = vsel %vm2765, 0, %v2772
      %2774 = vst [vmem:[#allocation4 + $0x20] sm:$0x8] %v2773
      %v2775 = vld [vmem:[#allocation4 + $0x30] sm:$0x8]
      %v2776 = vsel %vm2765, 0, %v2775
      %2777 = vst [vmem:[#allocation4 + $0x30] sm:$0x8] %v2776
      %v2778 = vld [vmem:[#allocation4 + $0x40] sm:$0x8]
      %v2779 = vsel %vm2765, 0, %v2778
      %2780 = vst [vmem:[#allocation4 + $0x40] sm:$0x8] %v2779
      %v2781 = vld [vmem:[#allocation4 + $0x50] sm:$0x8]
      %v2782 = vsel %vm2765, 0, %v2781
      %2783 = vst [vmem:[#allocation4 + $0x50] sm:$0x8] %v2782
      %v2784 = vld [vmem:[#allocation4 + $0x60] sm:$0x8]
      %v2785 = vsel %vm2765, 0, %v2784
      %2786 = vst [vmem:[#allocation4 + $0x60] sm:$0x8] %v2785
      %v2787 = vld [vmem:[#allocation4 + $0x70] sm:$0x8]
      %v2788 = vsel %vm2765, 0, %v2787
      %2789 = vst [vmem:[#allocation4 + $0x70] sm:$0x8] %v2788
      %v2790 = vld [vmem:[#allocation4 + $0x80] sm:$0x8]
      %v2791 = vsel %vm2765, 0, %v2790
      %2792 = vst [vmem:[#allocation4 + $0x80] sm:$0x8] %v2791
      %v2793 = vld [vmem:[#allocation4 + $0x90] sm:$0x8]
      %v2794 = vsel %vm2765, 0, %v2793
      %2795 = vst [vmem:[#allocation4 + $0x90] sm:$0x8] %v2794
      %vm2796 = vcmask 1040384
      %vm2797 = vsmask.f32 256
      %vm2798 = vmand %vm2796, %vm2797
      %v2799 = vld [vmem:[#allocation4 + $0xc] sm:$0x1]
      %v2800 = vsel %vm2798, 0, %v2799
      %2801 = vst [vmem:[#allocation4 + $0xc] sm:$0x1] %v2800
      %v2802 = vld [vmem:[#allocation4 + $0x1c] sm:$0x1]
      %v2803 = vsel %vm2798, 0, %v2802
      %2804 = vst [vmem:[#allocation4 + $0x1c] sm:$0x1] %v2803
      %v2805 = vld [vmem:[#allocation4 + $0x2c] sm:$0x1]
      %v2806 = vsel %vm2798, 0, %v2805
      %2807 = vst [vmem:[#allocation4 + $0x2c] sm:$0x1] %v2806
      %v2808 = vld [vmem:[#allocation4 + $0x3c] sm:$0x1]
      %v2809 = vsel %vm2798, 0, %v2808
      %2810 = vst [vmem:[#allocation4 + $0x3c] sm:$0x1] %v2809
      %v2811 = vld [vmem:[#allocation4 + $0x4c] sm:$0x1]
      %v2812 = vsel %vm2798, 0, %v2811
      %2813 = vst [vmem:[#allocation4 + $0x4c] sm:$0x1] %v2812
      %v2814 = vld [vmem:[#allocation4 + $0x5c] sm:$0x1]
      %v2815 = vsel %vm2798, 0, %v2814
      %2816 = vst [vmem:[#allocation4 + $0x5c] sm:$0x1] %v2815
      %v2817 = vld [vmem:[#allocation4 + $0x6c] sm:$0x1]
      %v2818 = vsel %vm2798, 0, %v2817
      %2819 = vst [vmem:[#allocation4 + $0x6c] sm:$0x1] %v2818
      %v2820 = vld [vmem:[#allocation4 + $0x7c] sm:$0x1]
      %v2821 = vsel %vm2798, 0, %v2820
      %2822 = vst [vmem:[#allocation4 + $0x7c] sm:$0x1] %v2821
      %v2823 = vld [vmem:[#allocation4 + $0x8c] sm:$0x1]
      %v2824 = vsel %vm2798, 0, %v2823
      %2825 = vst [vmem:[#allocation4 + $0x8c] sm:$0x1] %v2824
      %v2826 = vld [vmem:[#allocation4 + $0x9c] sm:$0x1]
      %v2827 = vsel %vm2798, 0, %v2826
      %2828 = vst [vmem:[#allocation4 + $0x9c] sm:$0x1] %v2827
      %p2829 = scmp.eq.s32.totalorder %s24, 0
      // Predicated region
      $region53: #{double_conv_forward.1} parent=51 // pred_check
        %p2830 = pneg %p2829
      $region54: #{double_conv_forward.1} parent=51 // pred_check_branch
        %2832 = sbr.rel (%p2830) target = $region56
      $region55: #{double_conv_forward.1} parent=51 // pred_region
        %2833 = vst [vmem:[#allocation4] sm:$0xf] 0
        %2834 = vst [vmem:[#allocation4 + $0x4] sm:$0xf] 0
        %2835 = vst [vmem:[#allocation4 + $0x8] sm:$0xf] 0
        %2836 = vst [vmem:[#allocation4 + $0xc] sm:$0xf] 0
      $region56: #{double_conv_forward.1} parent=51 // pred_fallthru
        _
      %p2837 = scmp.eq.s32.totalorder %s24, 1
      // Predicated region
      $region57: #{double_conv_forward.1} parent=51 // pred_check
        %p2838 = pneg %p2837
      $region58: #{double_conv_forward.1} parent=51 // pred_check_branch
        %2840 = sbr.rel (%p2838) target = $region60
      $region59: #{double_conv_forward.1} parent=51 // pred_region
        %s2841 = scalar_lea.vmem [#allocation4], 144
        %2842 = vst [vmem:[%s2841] sm:$0xf] 0
        %2843 = vst [vmem:[%s2841 + $0x4] sm:$0xf] 0
        %2844 = vst [vmem:[%s2841 + $0x8] sm:$0xf] 0
        %2845 = vst [vmem:[%s2841 + $0xc] sm:$0xf] 0
      $region60: #{double_conv_forward.1} parent=51 // pred_fallthru
        _
      %v2846 = vld [vmem:[#allocation4] sm:$0x8]
      %v2847 = vld [vmem:[#allocation4 + $0x4] sm:$0xf]
      %v2848 = vld [vmem:[#allocation4 + $0x8] sm:$0xf]
      %v2849 = vld [vmem:[#allocation4 + $0x10] sm:$0x8]
      %v2850 = vld [vmem:[#allocation4 + $0x14] sm:$0xf]
      %v2851 = vld [vmem:[#allocation4 + $0x18] sm:$0xf]
      %v2852 = vld [vmem:[#allocation4 + $0x20] sm:$0x8]
      %v2853 = vld [vmem:[#allocation4 + $0x24] sm:$0xf]
      %v2854 = vld [vmem:[#allocation4 + $0x28] sm:$0xf]
      %v2855 = vld [vmem:[#allocation4 + $0x30] sm:$0x8]
      %v2856 = vld [vmem:[#allocation4 + $0x34] sm:$0xf]
      %v2857 = vld [vmem:[#allocation4 + $0x38] sm:$0xf]
      %v2858 = vld [vmem:[#allocation4 + $0x40] sm:$0x8]
      %v2859 = vld [vmem:[#allocation4 + $0x44] sm:$0xf]
      %v2860 = vld [vmem:[#allocation4 + $0x48] sm:$0xf]
      %v2861 = vld [vmem:[#allocation4 + $0x50] sm:$0x8]
      %v2862 = vld [vmem:[#allocation4 + $0x54] sm:$0xf]
      %v2863 = vld [vmem:[#allocation4 + $0x58] sm:$0xf]
      %v2864 = vld [vmem:[#allocation4 + $0x60] sm:$0x8]
      %v2865 = vld [vmem:[#allocation4 + $0x64] sm:$0xf]
      %v2866 = vld [vmem:[#allocation4 + $0x68] sm:$0xf]
      %v2867 = vld [vmem:[#allocation4 + $0x70] sm:$0x8]
      %v2868 = vld [vmem:[#allocation4 + $0x74] sm:$0xf]
      %v2869 = vld [vmem:[#allocation4 + $0x78] sm:$0xf]
      %vm2870 = vsmask.f32 4368
      %vm2871 = vmor %vm2797, %vm2870
      %v2873 = vshrl.u32 %v2846, 16
      %v2875 = vrot.slane %v2873, 7
      %v2876 = vrot.slane %v2875, 4
      %v2878 = vshrl.u32 %v2847, 16
      %v2880 = vrot.slane %v2878, 7
      %v2881 = vshll.u32 %v2847, 16
      %v2883 = vor.u32 %v2880, %v2881
      %v2884 = vsel %vm2871, %v2876, %v2883
      %v2885 = vrot.slane %v2880, 4
      %v2887 = vshrl.u32 %v2848, 16
      %v2889 = vrot.slane %v2887, 7
      %v2890 = vshll.u32 %v2848, 16
      %v2892 = vor.u32 %v2889, %v2890
      %v2893 = vsel %vm2871, %v2885, %v2892
      %v2895 = vshrl.u32 %v2849, 16
      %v2897 = vrot.slane %v2895, 7
      %v2898 = vrot.slane %v2897, 4
      %v2900 = vshrl.u32 %v2850, 16
      %v2902 = vrot.slane %v2900, 7
      %v2903 = vshll.u32 %v2850, 16
      %v2905 = vor.u32 %v2902, %v2903
      %v2906 = vsel %vm2871, %v2898, %v2905
      %v2907 = vrot.slane %v2902, 4
      %v2909 = vshrl.u32 %v2851, 16
      %v2911 = vrot.slane %v2909, 7
      %v2912 = vshll.u32 %v2851, 16
      %v2914 = vor.u32 %v2911, %v2912
      %v2915 = vsel %vm2871, %v2907, %v2914
      %v2917 = vshrl.u32 %v2852, 16
      %v2919 = vrot.slane %v2917, 7
      %v2920 = vrot.slane %v2919, 4
      %v2922 = vshrl.u32 %v2853, 16
      %v2924 = vrot.slane %v2922, 7
      %v2925 = vshll.u32 %v2853, 16
      %v2927 = vor.u32 %v2924, %v2925
      %v2928 = vsel %vm2871, %v2920, %v2927
      %v2929 = vrot.slane %v2924, 4
      %v2931 = vshrl.u32 %v2854, 16
      %v2933 = vrot.slane %v2931, 7
      %v2934 = vshll.u32 %v2854, 16
      %v2936 = vor.u32 %v2933, %v2934
      %v2937 = vsel %vm2871, %v2929, %v2936
      %v2939 = vshrl.u32 %v2855, 16
      %v2941 = vrot.slane %v2939, 7
      %v2942 = vrot.slane %v2941, 4
      %v2944 = vshrl.u32 %v2856, 16
      %v2946 = vrot.slane %v2944, 7
      %v2947 = vshll.u32 %v2856, 16
      %v2949 = vor.u32 %v2946, %v2947
      %v2950 = vsel %vm2871, %v2942, %v2949
      %v2951 = vrot.slane %v2946, 4
      %v2953 = vshrl.u32 %v2857, 16
      %v2955 = vrot.slane %v2953, 7
      %v2956 = vshll.u32 %v2857, 16
      %v2958 = vor.u32 %v2955, %v2956
      %v2959 = vsel %vm2871, %v2951, %v2958
      %v2961 = vshrl.u32 %v2858, 16
      %v2963 = vrot.slane %v2961, 7
      %v2964 = vrot.slane %v2963, 4
      %v2966 = vshrl.u32 %v2859, 16
      %v2968 = vrot.slane %v2966, 7
      %v2969 = vshll.u32 %v2859, 16
      %v2971 = vor.u32 %v2968, %v2969
      %v2972 = vsel %vm2871, %v2964, %v2971
      %v2973 = vrot.slane %v2968, 4
      %v2975 = vshrl.u32 %v2860, 16
      %v2977 = vrot.slane %v2975, 7
      %v2978 = vshll.u32 %v2860, 16
      %v2980 = vor.u32 %v2977, %v2978
      %v2981 = vsel %vm2871, %v2973, %v2980
      %v2983 = vshrl.u32 %v2861, 16
      %v2985 = vrot.slane %v2983, 7
      %v2986 = vrot.slane %v2985, 4
      %v2988 = vshrl.u32 %v2862, 16
      %v2990 = vrot.slane %v2988, 7
      %v2991 = vshll.u32 %v2862, 16
      %v2993 = vor.u32 %v2990, %v2991
      %v2994 = vsel %vm2871, %v2986, %v2993
      %v2995 = vrot.slane %v2990, 4
      %v2997 = vshrl.u32 %v2863, 16
      %v2999 = vrot.slane %v2997, 7
      %v3000 = vshll.u32 %v2863, 16
      %v3002 = vor.u32 %v2999, %v3000
      %v3003 = vsel %vm2871, %v2995, %v3002
      %v3005 = vshrl.u32 %v2864, 16
      %v3007 = vrot.slane %v3005, 7
      %v3008 = vrot.slane %v3007, 4
      %v3010 = vshrl.u32 %v2865, 16
      %v3012 = vrot.slane %v3010, 7
      %v3013 = vshll.u32 %v2865, 16
      %v3015 = vor.u32 %v3012, %v3013
      %v3016 = vsel %vm2871, %v3008, %v3015
      %v3017 = vrot.slane %v3012, 4
      %v3019 = vshrl.u32 %v2866, 16
      %v3021 = vrot.slane %v3019, 7
      %v3022 = vshll.u32 %v2866, 16
      %v3024 = vor.u32 %v3021, %v3022
      %v3025 = vsel %vm2871, %v3017, %v3024
      %v3027 = vshrl.u32 %v2867, 16
      %v3029 = vrot.slane %v3027, 7
      %v3030 = vrot.slane %v3029, 4
      %v3032 = vshrl.u32 %v2868, 16
      %v3034 = vrot.slane %v3032, 7
      %v3035 = vshll.u32 %v2868, 16
      %v3037 = vor.u32 %v3034, %v3035
      %v3038 = vsel %vm2871, %v3030, %v3037
      %v3039 = vrot.slane %v3034, 4
      %v3041 = vshrl.u32 %v2869, 16
      %v3043 = vrot.slane %v3041, 7
      %v3044 = vshll.u32 %v2869, 16
      %v3046 = vor.u32 %v3043, %v3044
      %v3047 = vsel %vm2871, %v3039, %v3046
      %3064 = vst [vmem:[#allocation5] sm:$0xf] %v2884
      %3065 = vst [vmem:[#allocation5 + $0x24] sm:$0xf] %v2893
      %3066 = vst [vmem:[#allocation5 + $0x48] sm:$0xf] %v2906
      %3067 = vst [vmem:[#allocation5 + $0x6c] sm:$0xf] %v2915
      %3068 = vst [vmem:[#allocation5 + $0x90] sm:$0xf] %v2928
      %3069 = vst [vmem:[#allocation5 + $0xb4] sm:$0xf] %v2937
      %3070 = vst [vmem:[#allocation5 + $0xd8] sm:$0xf] %v2950
      %3071 = vst [vmem:[#allocation5 + $0xfc] sm:$0xf] %v2959
      %3072 = vst [vmem:[#allocation5 + $0x120] sm:$0xf] %v2972
      %3073 = vst [vmem:[#allocation5 + $0x144] sm:$0xf] %v2981
      %3074 = vst [vmem:[#allocation5 + $0x168] sm:$0xf] %v2994
      %3075 = vst [vmem:[#allocation5 + $0x18c] sm:$0xf] %v3003
      %3076 = vst [vmem:[#allocation5 + $0x1b0] sm:$0xf] %v3016
      %3077 = vst [vmem:[#allocation5 + $0x1d4] sm:$0xf] %v3025
      %3078 = vst [vmem:[#allocation5 + $0x1f8] sm:$0xf] %v3038
      %3079 = vst [vmem:[#allocation5 + $0x21c] sm:$0xf] %v3047
      %v3080 = vld [vmem:[#allocation4 + $0x4] sm:$0xf]
      %v3081 = vld [vmem:[#allocation4 + $0x8] sm:$0xf]
      %v3082 = vld [vmem:[#allocation4 + $0x14] sm:$0xf]
      %v3083 = vld [vmem:[#allocation4 + $0x18] sm:$0xf]
      %v3084 = vld [vmem:[#allocation4 + $0x24] sm:$0xf]
      %v3085 = vld [vmem:[#allocation4 + $0x28] sm:$0xf]
      %v3086 = vld [vmem:[#allocation4 + $0x34] sm:$0xf]
      %v3087 = vld [vmem:[#allocation4 + $0x38] sm:$0xf]
      %v3088 = vld [vmem:[#allocation4 + $0x44] sm:$0xf]
      %v3089 = vld [vmem:[#allocation4 + $0x48] sm:$0xf]
      %v3090 = vld [vmem:[#allocation4 + $0x54] sm:$0xf]
      %v3091 = vld [vmem:[#allocation4 + $0x58] sm:$0xf]
      %v3092 = vld [vmem:[#allocation4 + $0x64] sm:$0xf]
      %v3093 = vld [vmem:[#allocation4 + $0x68] sm:$0xf]
      %v3094 = vld [vmem:[#allocation4 + $0x74] sm:$0xf]
      %v3095 = vld [vmem:[#allocation4 + $0x78] sm:$0xf]
      %3096 = vst [vmem:[#allocation5 + $0x4] sm:$0xf] %v3080
      %3097 = vst [vmem:[#allocation5 + $0x28] sm:$0xf] %v3081
      %3098 = vst [vmem:[#allocation5 + $0x4c] sm:$0xf] %v3082
      %3099 = vst [vmem:[#allocation5 + $0x70] sm:$0xf] %v3083
      %3100 = vst [vmem:[#allocation5 + $0x94] sm:$0xf] %v3084
      %3101 = vst [vmem:[#allocation5 + $0xb8] sm:$0xf] %v3085
      %3102 = vst [vmem:[#allocation5 + $0xdc] sm:$0xf] %v3086
      %3103 = vst [vmem:[#allocation5 + $0x100] sm:$0xf] %v3087
      %3104 = vst [vmem:[#allocation5 + $0x124] sm:$0xf] %v3088
      %3105 = vst [vmem:[#allocation5 + $0x148] sm:$0xf] %v3089
      %3106 = vst [vmem:[#allocation5 + $0x16c] sm:$0xf] %v3090
      %3107 = vst [vmem:[#allocation5 + $0x190] sm:$0xf] %v3091
      %3108 = vst [vmem:[#allocation5 + $0x1b4] sm:$0xf] %v3092
      %3109 = vst [vmem:[#allocation5 + $0x1d8] sm:$0xf] %v3093
      %3110 = vst [vmem:[#allocation5 + $0x1fc] sm:$0xf] %v3094
      %3111 = vst [vmem:[#allocation5 + $0x220] sm:$0xf] %v3095
      %v3112 = vld [vmem:[#allocation4 + $0x4] sm:$0xf]
      %v3113 = vld [vmem:[#allocation4 + $0x8] sm:$0xf]
      %v3114 = vld [vmem:[#allocation4 + $0xc] sm:$0x1]
      %v3115 = vld [vmem:[#allocation4 + $0x14] sm:$0xf]
      %v3116 = vld [vmem:[#allocation4 + $0x18] sm:$0xf]
      %v3117 = vld [vmem:[#allocation4 + $0x1c] sm:$0x1]
      %v3118 = vld [vmem:[#allocation4 + $0x24] sm:$0xf]
      %v3119 = vld [vmem:[#allocation4 + $0x28] sm:$0xf]
      %v3120 = vld [vmem:[#allocation4 + $0x2c] sm:$0x1]
      %v3121 = vld [vmem:[#allocation4 + $0x34] sm:$0xf]
      %v3122 = vld [vmem:[#allocation4 + $0x38] sm:$0xf]
      %v3123 = vld [vmem:[#allocation4 + $0x3c] sm:$0x1]
      %v3124 = vld [vmem:[#allocation4 + $0x44] sm:$0xf]
      %v3125 = vld [vmem:[#allocation4 + $0x48] sm:$0xf]
      %v3126 = vld [vmem:[#allocation4 + $0x4c] sm:$0x1]
      %v3127 = vld [vmem:[#allocation4 + $0x54] sm:$0xf]
      %v3128 = vld [vmem:[#allocation4 + $0x58] sm:$0xf]
      %v3129 = vld [vmem:[#allocation4 + $0x5c] sm:$0x1]
      %v3130 = vld [vmem:[#allocation4 + $0x64] sm:$0xf]
      %v3131 = vld [vmem:[#allocation4 + $0x68] sm:$0xf]
      %v3132 = vld [vmem:[#allocation4 + $0x6c] sm:$0x1]
      %v3133 = vld [vmem:[#allocation4 + $0x74] sm:$0xf]
      %v3134 = vld [vmem:[#allocation4 + $0x78] sm:$0xf]
      %v3135 = vld [vmem:[#allocation4 + $0x7c] sm:$0x1]
      %v3137 = vshrl.u32 %v3112, 16
      %v3139 = vrot.slane %v3137, 4
      %v3140 = vshll.u32 %v3112, 16
      %v3142 = vrot.slane %v3140, 5
      %v3143 = vor.u32 %v3139, %v3142
      %v3144 = vrot.slane %v3143, 4
      %v3146 = vshll.u32 %v3113, 16
      %v3148 = vrot.slane %v3146, 5
      %v3149 = vsel %vm551, %v3144, %v3148
      %v3150 = vshrl.u32 %v3113, 16
      %v3152 = vrot.slane %v3150, 4
      %v3153 = vor.u32 %v3152, %v3148
      %v3154 = vrot.slane %v3153, 4
      %v3156 = vshll.u32 %v3114, 16
      %v3158 = vrot.slane %v3156, 5
      %v3159 = vsel %vm551, %v3154, %v3158
      %v3161 = vshrl.u32 %v3115, 16
      %v3163 = vrot.slane %v3161, 4
      %v3164 = vshll.u32 %v3115, 16
      %v3166 = vrot.slane %v3164, 5
      %v3167 = vor.u32 %v3163, %v3166
      %v3168 = vrot.slane %v3167, 4
      %v3170 = vshll.u32 %v3116, 16
      %v3172 = vrot.slane %v3170, 5
      %v3173 = vsel %vm551, %v3168, %v3172
      %v3174 = vshrl.u32 %v3116, 16
      %v3176 = vrot.slane %v3174, 4
      %v3177 = vor.u32 %v3176, %v3172
      %v3178 = vrot.slane %v3177, 4
      %v3180 = vshll.u32 %v3117, 16
      %v3182 = vrot.slane %v3180, 5
      %v3183 = vsel %vm551, %v3178, %v3182
      %v3185 = vshrl.u32 %v3118, 16
      %v3187 = vrot.slane %v3185, 4
      %v3188 = vshll.u32 %v3118, 16
      %v3190 = vrot.slane %v3188, 5
      %v3191 = vor.u32 %v3187, %v3190
      %v3192 = vrot.slane %v3191, 4
      %v3194 = vshll.u32 %v3119, 16
      %v3196 = vrot.slane %v3194, 5
      %v3197 = vsel %vm551, %v3192, %v3196
      %v3198 = vshrl.u32 %v3119, 16
      %v3200 = vrot.slane %v3198, 4
      %v3201 = vor.u32 %v3200, %v3196
      %v3202 = vrot.slane %v3201, 4
      %v3204 = vshll.u32 %v3120, 16
      %v3206 = vrot.slane %v3204, 5
      %v3207 = vsel %vm551, %v3202, %v3206
      %v3209 = vshrl.u32 %v3121, 16
      %v3211 = vrot.slane %v3209, 4
      %v3212 = vshll.u32 %v3121, 16
      %v3214 = vrot.slane %v3212, 5
      %v3215 = vor.u32 %v3211, %v3214
      %v3216 = vrot.slane %v3215, 4
      %v3218 = vshll.u32 %v3122, 16
      %v3220 = vrot.slane %v3218, 5
      %v3221 = vsel %vm551, %v3216, %v3220
      %v3222 = vshrl.u32 %v3122, 16
      %v3224 = vrot.slane %v3222, 4
      %v3225 = vor.u32 %v3224, %v3220
      %v3226 = vrot.slane %v3225, 4
      %v3228 = vshll.u32 %v3123, 16
      %v3230 = vrot.slane %v3228, 5
      %v3231 = vsel %vm551, %v3226, %v3230
      %v3233 = vshrl.u32 %v3124, 16
      %v3235 = vrot.slane %v3233, 4
      %v3236 = vshll.u32 %v3124, 16
      %v3238 = vrot.slane %v3236, 5
      %v3239 = vor.u32 %v3235, %v3238
      %v3240 = vrot.slane %v3239, 4
      %v3242 = vshll.u32 %v3125, 16
      %v3244 = vrot.slane %v3242, 5
      %v3245 = vsel %vm551, %v3240, %v3244
      %v3246 = vshrl.u32 %v3125, 16
      %v3248 = vrot.slane %v3246, 4
      %v3249 = vor.u32 %v3248, %v3244
      %v3250 = vrot.slane %v3249, 4
      %v3252 = vshll.u32 %v3126, 16
      %v3254 = vrot.slane %v3252, 5
      %v3255 = vsel %vm551, %v3250, %v3254
      %v3257 = vshrl.u32 %v3127, 16
      %v3259 = vrot.slane %v3257, 4
      %v3260 = vshll.u32 %v3127, 16
      %v3262 = vrot.slane %v3260, 5
      %v3263 = vor.u32 %v3259, %v3262
      %v3264 = vrot.slane %v3263, 4
      %v3266 = vshll.u32 %v3128, 16
      %v3268 = vrot.slane %v3266, 5
      %v3269 = vsel %vm551, %v3264, %v3268
      %v3270 = vshrl.u32 %v3128, 16
      %v3272 = vrot.slane %v3270, 4
      %v3273 = vor.u32 %v3272, %v3268
      %v3274 = vrot.slane %v3273, 4
      %v3276 = vshll.u32 %v3129, 16
      %v3278 = vrot.slane %v3276, 5
      %v3279 = vsel %vm551, %v3274, %v3278
      %v3281 = vshrl.u32 %v3130, 16
      %v3283 = vrot.slane %v3281, 4
      %v3284 = vshll.u32 %v3130, 16
      %v3286 = vrot.slane %v3284, 5
      %v3287 = vor.u32 %v3283, %v3286
      %v3288 = vrot.slane %v3287, 4
      %v3290 = vshll.u32 %v3131, 16
      %v3292 = vrot.slane %v3290, 5
      %v3293 = vsel %vm551, %v3288, %v3292
      %v3294 = vshrl.u32 %v3131, 16
      %v3296 = vrot.slane %v3294, 4
      %v3297 = vor.u32 %v3296, %v3292
      %v3298 = vrot.slane %v3297, 4
      %v3300 = vshll.u32 %v3132, 16
      %v3302 = vrot.slane %v3300, 5
      %v3303 = vsel %vm551, %v3298, %v3302
      %v3305 = vshrl.u32 %v3133, 16
      %v3307 = vrot.slane %v3305, 4
      %v3308 = vshll.u32 %v3133, 16
      %v3310 = vrot.slane %v3308, 5
      %v3311 = vor.u32 %v3307, %v3310
      %v3312 = vrot.slane %v3311, 4
      %v3314 = vshll.u32 %v3134, 16
      %v3316 = vrot.slane %v3314, 5
      %v3317 = vsel %vm551, %v3312, %v3316
      %v3318 = vshrl.u32 %v3134, 16
      %v3320 = vrot.slane %v3318, 4
      %v3321 = vor.u32 %v3320, %v3316
      %v3322 = vrot.slane %v3321, 4
      %v3324 = vshll.u32 %v3135, 16
      %v3326 = vrot.slane %v3324, 5
      %v3327 = vsel %vm551, %v3322, %v3326
      %3344 = vst [vmem:[#allocation5 + $0x8] sm:$0xf] %v3149
      %3345 = vst [vmem:[#allocation5 + $0x2c] sm:$0xf] %v3159
      %3346 = vst [vmem:[#allocation5 + $0x50] sm:$0xf] %v3173
      %3347 = vst [vmem:[#allocation5 + $0x74] sm:$0xf] %v3183
      %3348 = vst [vmem:[#allocation5 + $0x98] sm:$0xf] %v3197
      %3349 = vst [vmem:[#allocation5 + $0xbc] sm:$0xf] %v3207
      %3350 = vst [vmem:[#allocation5 + $0xe0] sm:$0xf] %v3221
      %3351 = vst [vmem:[#allocation5 + $0x104] sm:$0xf] %v3231
      %3352 = vst [vmem:[#allocation5 + $0x128] sm:$0xf] %v3245
      %3353 = vst [vmem:[#allocation5 + $0x14c] sm:$0xf] %v3255
      %3354 = vst [vmem:[#allocation5 + $0x170] sm:$0xf] %v3269
      %3355 = vst [vmem:[#allocation5 + $0x194] sm:$0xf] %v3279
      %3356 = vst [vmem:[#allocation5 + $0x1b8] sm:$0xf] %v3293
      %3357 = vst [vmem:[#allocation5 + $0x1dc] sm:$0xf] %v3303
      %3358 = vst [vmem:[#allocation5 + $0x200] sm:$0xf] %v3317
      %3359 = vst [vmem:[#allocation5 + $0x224] sm:$0xf] %v3327
      %s3360 = scalar_lea.vmem [#allocation4], 16
      %v3361 = vld [vmem:[%s3360] sm:$0x8]
      %v3362 = vld [vmem:[%s3360 + $0x4] sm:$0xf]
      %v3363 = vld [vmem:[%s3360 + $0x8] sm:$0xf]
      %v3364 = vld [vmem:[%s3360 + $0x10] sm:$0x8]
      %v3365 = vld [vmem:[%s3360 + $0x14] sm:$0xf]
      %v3366 = vld [vmem:[%s3360 + $0x18] sm:$0xf]
      %v3367 = vld [vmem:[%s3360 + $0x20] sm:$0x8]
      %v3368 = vld [vmem:[%s3360 + $0x24] sm:$0xf]
      %v3369 = vld [vmem:[%s3360 + $0x28] sm:$0xf]
      %v3370 = vld [vmem:[%s3360 + $0x30] sm:$0x8]
      %v3371 = vld [vmem:[%s3360 + $0x34] sm:$0xf]
      %v3372 = vld [vmem:[%s3360 + $0x38] sm:$0xf]
      %v3373 = vld [vmem:[%s3360 + $0x40] sm:$0x8]
      %v3374 = vld [vmem:[%s3360 + $0x44] sm:$0xf]
      %v3375 = vld [vmem:[%s3360 + $0x48] sm:$0xf]
      %v3376 = vld [vmem:[%s3360 + $0x50] sm:$0x8]
      %v3377 = vld [vmem:[%s3360 + $0x54] sm:$0xf]
      %v3378 = vld [vmem:[%s3360 + $0x58] sm:$0xf]
      %v3379 = vld [vmem:[%s3360 + $0x60] sm:$0x8]
      %v3380 = vld [vmem:[%s3360 + $0x64] sm:$0xf]
      %v3381 = vld [vmem:[%s3360 + $0x68] sm:$0xf]
      %v3382 = vld [vmem:[%s3360 + $0x70] sm:$0x8]
      %v3383 = vld [vmem:[%s3360 + $0x74] sm:$0xf]
      %v3384 = vld [vmem:[%s3360 + $0x78] sm:$0xf]
      %v3386 = vshrl.u32 %v3361, 16
      %v3388 = vrot.slane %v3386, 7
      %v3389 = vrot.slane %v3388, 4
      %v3391 = vshrl.u32 %v3362, 16
      %v3393 = vrot.slane %v3391, 7
      %v3394 = vshll.u32 %v3362, 16
      %v3396 = vor.u32 %v3393, %v3394
      %v3397 = vsel %vm2871, %v3389, %v3396
      %v3398 = vrot.slane %v3393, 4
      %v3400 = vshrl.u32 %v3363, 16
      %v3402 = vrot.slane %v3400, 7
      %v3403 = vshll.u32 %v3363, 16
      %v3405 = vor.u32 %v3402, %v3403
      %v3406 = vsel %vm2871, %v3398, %v3405
      %v3408 = vshrl.u32 %v3364, 16
      %v3410 = vrot.slane %v3408, 7
      %v3411 = vrot.slane %v3410, 4
      %v3413 = vshrl.u32 %v3365, 16
      %v3415 = vrot.slane %v3413, 7
      %v3416 = vshll.u32 %v3365, 16
      %v3418 = vor.u32 %v3415, %v3416
      %v3419 = vsel %vm2871, %v3411, %v3418
      %v3420 = vrot.slane %v3415, 4
      %v3422 = vshrl.u32 %v3366, 16
      %v3424 = vrot.slane %v3422, 7
      %v3425 = vshll.u32 %v3366, 16
      %v3427 = vor.u32 %v3424, %v3425
      %v3428 = vsel %vm2871, %v3420, %v3427
      %v3430 = vshrl.u32 %v3367, 16
      %v3432 = vrot.slane %v3430, 7
      %v3433 = vrot.slane %v3432, 4
      %v3435 = vshrl.u32 %v3368, 16
      %v3437 = vrot.slane %v3435, 7
      %v3438 = vshll.u32 %v3368, 16
      %v3440 = vor.u32 %v3437, %v3438
      %v3441 = vsel %vm2871, %v3433, %v3440
      %v3442 = vrot.slane %v3437, 4
      %v3444 = vshrl.u32 %v3369, 16
      %v3446 = vrot.slane %v3444, 7
      %v3447 = vshll.u32 %v3369, 16
      %v3449 = vor.u32 %v3446, %v3447
      %v3450 = vsel %vm2871, %v3442, %v3449
      %v3452 = vshrl.u32 %v3370, 16
      %v3454 = vrot.slane %v3452, 7
      %v3455 = vrot.slane %v3454, 4
      %v3457 = vshrl.u32 %v3371, 16
      %v3459 = vrot.slane %v3457, 7
      %v3460 = vshll.u32 %v3371, 16
      %v3462 = vor.u32 %v3459, %v3460
      %v3463 = vsel %vm2871, %v3455, %v3462
      %v3464 = vrot.slane %v3459, 4
      %v3466 = vshrl.u32 %v3372, 16
      %v3468 = vrot.slane %v3466, 7
      %v3469 = vshll.u32 %v3372, 16
      %v3471 = vor.u32 %v3468, %v3469
      %v3472 = vsel %vm2871, %v3464, %v3471
      %v3474 = vshrl.u32 %v3373, 16
      %v3476 = vrot.slane %v3474, 7
      %v3477 = vrot.slane %v3476, 4
      %v3479 = vshrl.u32 %v3374, 16
      %v3481 = vrot.slane %v3479, 7
      %v3482 = vshll.u32 %v3374, 16
      %v3484 = vor.u32 %v3481, %v3482
      %v3485 = vsel %vm2871, %v3477, %v3484
      %v3486 = vrot.slane %v3481, 4
      %v3488 = vshrl.u32 %v3375, 16
      %v3490 = vrot.slane %v3488, 7
      %v3491 = vshll.u32 %v3375, 16
      %v3493 = vor.u32 %v3490, %v3491
      %v3494 = vsel %vm2871, %v3486, %v3493
      %v3496 = vshrl.u32 %v3376, 16
      %v3498 = vrot.slane %v3496, 7
      %v3499 = vrot.slane %v3498, 4
      %v3501 = vshrl.u32 %v3377, 16
      %v3503 = vrot.slane %v3501, 7
      %v3504 = vshll.u32 %v3377, 16
      %v3506 = vor.u32 %v3503, %v3504
      %v3507 = vsel %vm2871, %v3499, %v3506
      %v3508 = vrot.slane %v3503, 4
      %v3510 = vshrl.u32 %v3378, 16
      %v3512 = vrot.slane %v3510, 7
      %v3513 = vshll.u32 %v3378, 16
      %v3515 = vor.u32 %v3512, %v3513
      %v3516 = vsel %vm2871, %v3508, %v3515
      %v3518 = vshrl.u32 %v3379, 16
      %v3520 = vrot.slane %v3518, 7
      %v3521 = vrot.slane %v3520, 4
      %v3523 = vshrl.u32 %v3380, 16
      %v3525 = vrot.slane %v3523, 7
      %v3526 = vshll.u32 %v3380, 16
      %v3528 = vor.u32 %v3525, %v3526
      %v3529 = vsel %vm2871, %v3521, %v3528
      %v3530 = vrot.slane %v3525, 4
      %v3532 = vshrl.u32 %v3381, 16
      %v3534 = vrot.slane %v3532, 7
      %v3535 = vshll.u32 %v3381, 16
      %v3537 = vor.u32 %v3534, %v3535
      %v3538 = vsel %vm2871, %v3530, %v3537
      %v3540 = vshrl.u32 %v3382, 16
      %v3542 = vrot.slane %v3540, 7
      %v3543 = vrot.slane %v3542, 4
      %v3545 = vshrl.u32 %v3383, 16
      %v3547 = vrot.slane %v3545, 7
      %v3548 = vshll.u32 %v3383, 16
      %v3550 = vor.u32 %v3547, %v3548
      %v3551 = vsel %vm2871, %v3543, %v3550
      %v3552 = vrot.slane %v3547, 4
      %v3554 = vshrl.u32 %v3384, 16
      %v3556 = vrot.slane %v3554, 7
      %v3557 = vshll.u32 %v3384, 16
      %v3559 = vor.u32 %v3556, %v3557
      %v3560 = vsel %vm2871, %v3552, %v3559
      %3577 = vst [vmem:[#allocation5 + $0xc] sm:$0xf] %v3397
      %3578 = vst [vmem:[#allocation5 + $0x30] sm:$0xf] %v3406
      %3579 = vst [vmem:[#allocation5 + $0x54] sm:$0xf] %v3419
      %3580 = vst [vmem:[#allocation5 + $0x78] sm:$0xf] %v3428
      %3581 = vst [vmem:[#allocation5 + $0x9c] sm:$0xf] %v3441
      %3582 = vst [vmem:[#allocation5 + $0xc0] sm:$0xf] %v3450
      %3583 = vst [vmem:[#allocation5 + $0xe4] sm:$0xf] %v3463
      %3584 = vst [vmem:[#allocation5 + $0x108] sm:$0xf] %v3472
      %3585 = vst [vmem:[#allocation5 + $0x12c] sm:$0xf] %v3485
      %3586 = vst [vmem:[#allocation5 + $0x150] sm:$0xf] %v3494
      %3587 = vst [vmem:[#allocation5 + $0x174] sm:$0xf] %v3507
      %3588 = vst [vmem:[#allocation5 + $0x198] sm:$0xf] %v3516
      %3589 = vst [vmem:[#allocation5 + $0x1bc] sm:$0xf] %v3529
      %3590 = vst [vmem:[#allocation5 + $0x1e0] sm:$0xf] %v3538
      %3591 = vst [vmem:[#allocation5 + $0x204] sm:$0xf] %v3551
      %3592 = vst [vmem:[#allocation5 + $0x228] sm:$0xf] %v3560
      %v3593 = vld [vmem:[%s3360 + $0x4] sm:$0xf]
      %v3594 = vld [vmem:[%s3360 + $0x8] sm:$0xf]
      %v3595 = vld [vmem:[%s3360 + $0x14] sm:$0xf]
      %v3596 = vld [vmem:[%s3360 + $0x18] sm:$0xf]
      %v3597 = vld [vmem:[%s3360 + $0x24] sm:$0xf]
      %v3598 = vld [vmem:[%s3360 + $0x28] sm:$0xf]
      %v3599 = vld [vmem:[%s3360 + $0x34] sm:$0xf]
      %v3600 = vld [vmem:[%s3360 + $0x38] sm:$0xf]
      %v3601 = vld [vmem:[%s3360 + $0x44] sm:$0xf]
      %v3602 = vld [vmem:[%s3360 + $0x48] sm:$0xf]
      %v3603 = vld [vmem:[%s3360 + $0x54] sm:$0xf]
      %v3604 = vld [vmem:[%s3360 + $0x58] sm:$0xf]
      %v3605 = vld [vmem:[%s3360 + $0x64] sm:$0xf]
      %v3606 = vld [vmem:[%s3360 + $0x68] sm:$0xf]
      %v3607 = vld [vmem:[%s3360 + $0x74] sm:$0xf]
      %v3608 = vld [vmem:[%s3360 + $0x78] sm:$0xf]
      %3609 = vst [vmem:[#allocation5 + $0x10] sm:$0xf] %v3593
      %3610 = vst [vmem:[#allocation5 + $0x34] sm:$0xf] %v3594
      %3611 = vst [vmem:[#allocation5 + $0x58] sm:$0xf] %v3595
      %3612 = vst [vmem:[#allocation5 + $0x7c] sm:$0xf] %v3596
      %3613 = vst [vmem:[#allocation5 + $0xa0] sm:$0xf] %v3597
      %3614 = vst [vmem:[#allocation5 + $0xc4] sm:$0xf] %v3598
      %3615 = vst [vmem:[#allocation5 + $0xe8] sm:$0xf] %v3599
      %3616 = vst [vmem:[#allocation5 + $0x10c] sm:$0xf] %v3600
      %3617 = vst [vmem:[#allocation5 + $0x130] sm:$0xf] %v3601
      %3618 = vst [vmem:[#allocation5 + $0x154] sm:$0xf] %v3602
      %3619 = vst [vmem:[#allocation5 + $0x178] sm:$0xf] %v3603
      %3620 = vst [vmem:[#allocation5 + $0x19c] sm:$0xf] %v3604
      %3621 = vst [vmem:[#allocation5 + $0x1c0] sm:$0xf] %v3605
      %3622 = vst [vmem:[#allocation5 + $0x1e4] sm:$0xf] %v3606
      %3623 = vst [vmem:[#allocation5 + $0x208] sm:$0xf] %v3607
      %3624 = vst [vmem:[#allocation5 + $0x22c] sm:$0xf] %v3608
      %v3625 = vld [vmem:[%s3360 + $0x4] sm:$0xf]
      %v3626 = vld [vmem:[%s3360 + $0x8] sm:$0xf]
      %v3627 = vld [vmem:[%s3360 + $0xc] sm:$0x1]
      %v3628 = vld [vmem:[%s3360 + $0x14] sm:$0xf]
      %v3629 = vld [vmem:[%s3360 + $0x18] sm:$0xf]
      %v3630 = vld [vmem:[%s3360 + $0x1c] sm:$0x1]
      %v3631 = vld [vmem:[%s3360 + $0x24] sm:$0xf]
      %v3632 = vld [vmem:[%s3360 + $0x28] sm:$0xf]
      %v3633 = vld [vmem:[%s3360 + $0x2c] sm:$0x1]
      %v3634 = vld [vmem:[%s3360 + $0x34] sm:$0xf]
      %v3635 = vld [vmem:[%s3360 + $0x38] sm:$0xf]
      %v3636 = vld [vmem:[%s3360 + $0x3c] sm:$0x1]
      %v3637 = vld [vmem:[%s3360 + $0x44] sm:$0xf]
      %v3638 = vld [vmem:[%s3360 + $0x48] sm:$0xf]
      %v3639 = vld [vmem:[%s3360 + $0x4c] sm:$0x1]
      %v3640 = vld [vmem:[%s3360 + $0x54] sm:$0xf]
      %v3641 = vld [vmem:[%s3360 + $0x58] sm:$0xf]
      %v3642 = vld [vmem:[%s3360 + $0x5c] sm:$0x1]
      %v3643 = vld [vmem:[%s3360 + $0x64] sm:$0xf]
      %v3644 = vld [vmem:[%s3360 + $0x68] sm:$0xf]
      %v3645 = vld [vmem:[%s3360 + $0x6c] sm:$0x1]
      %v3646 = vld [vmem:[%s3360 + $0x74] sm:$0xf]
      %v3647 = vld [vmem:[%s3360 + $0x78] sm:$0xf]
      %v3648 = vld [vmem:[%s3360 + $0x7c] sm:$0x1]
      %v3650 = vshrl.u32 %v3625, 16
      %v3652 = vrot.slane %v3650, 4
      %v3653 = vshll.u32 %v3625, 16
      %v3655 = vrot.slane %v3653, 5
      %v3656 = vor.u32 %v3652, %v3655
      %v3657 = vrot.slane %v3656, 4
      %v3659 = vshll.u32 %v3626, 16
      %v3661 = vrot.slane %v3659, 5
      %v3662 = vsel %vm551, %v3657, %v3661
      %v3663 = vshrl.u32 %v3626, 16
      %v3665 = vrot.slane %v3663, 4
      %v3666 = vor.u32 %v3665, %v3661
      %v3667 = vrot.slane %v3666, 4
      %v3669 = vshll.u32 %v3627, 16
      %v3671 = vrot.slane %v3669, 5
      %v3672 = vsel %vm551, %v3667, %v3671
      %v3674 = vshrl.u32 %v3628, 16
      %v3676 = vrot.slane %v3674, 4
      %v3677 = vshll.u32 %v3628, 16
      %v3679 = vrot.slane %v3677, 5
      %v3680 = vor.u32 %v3676, %v3679
      %v3681 = vrot.slane %v3680, 4
      %v3683 = vshll.u32 %v3629, 16
      %v3685 = vrot.slane %v3683, 5
      %v3686 = vsel %vm551, %v3681, %v3685
      %v3687 = vshrl.u32 %v3629, 16
      %v3689 = vrot.slane %v3687, 4
      %v3690 = vor.u32 %v3689, %v3685
      %v3691 = vrot.slane %v3690, 4
      %v3693 = vshll.u32 %v3630, 16
      %v3695 = vrot.slane %v3693, 5
      %v3696 = vsel %vm551, %v3691, %v3695
      %v3698 = vshrl.u32 %v3631, 16
      %v3700 = vrot.slane %v3698, 4
      %v3701 = vshll.u32 %v3631, 16
      %v3703 = vrot.slane %v3701, 5
      %v3704 = vor.u32 %v3700, %v3703
      %v3705 = vrot.slane %v3704, 4
      %v3707 = vshll.u32 %v3632, 16
      %v3709 = vrot.slane %v3707, 5
      %v3710 = vsel %vm551, %v3705, %v3709
      %v3711 = vshrl.u32 %v3632, 16
      %v3713 = vrot.slane %v3711, 4
      %v3714 = vor.u32 %v3713, %v3709
      %v3715 = vrot.slane %v3714, 4
      %v3717 = vshll.u32 %v3633, 16
      %v3719 = vrot.slane %v3717, 5
      %v3720 = vsel %vm551, %v3715, %v3719
      %v3722 = vshrl.u32 %v3634, 16
      %v3724 = vrot.slane %v3722, 4
      %v3725 = vshll.u32 %v3634, 16
      %v3727 = vrot.slane %v3725, 5
      %v3728 = vor.u32 %v3724, %v3727
      %v3729 = vrot.slane %v3728, 4
      %v3731 = vshll.u32 %v3635, 16
      %v3733 = vrot.slane %v3731, 5
      %v3734 = vsel %vm551, %v3729, %v3733
      %v3735 = vshrl.u32 %v3635, 16
      %v3737 = vrot.slane %v3735, 4
      %v3738 = vor.u32 %v3737, %v3733
      %v3739 = vrot.slane %v3738, 4
      %v3741 = vshll.u32 %v3636, 16
      %v3743 = vrot.slane %v3741, 5
      %v3744 = vsel %vm551, %v3739, %v3743
      %v3746 = vshrl.u32 %v3637, 16
      %v3748 = vrot.slane %v3746, 4
      %v3749 = vshll.u32 %v3637, 16
      %v3751 = vrot.slane %v3749, 5
      %v3752 = vor.u32 %v3748, %v3751
      %v3753 = vrot.slane %v3752, 4
      %v3755 = vshll.u32 %v3638, 16
      %v3757 = vrot.slane %v3755, 5
      %v3758 = vsel %vm551, %v3753, %v3757
      %v3759 = vshrl.u32 %v3638, 16
      %v3761 = vrot.slane %v3759, 4
      %v3762 = vor.u32 %v3761, %v3757
      %v3763 = vrot.slane %v3762, 4
      %v3765 = vshll.u32 %v3639, 16
      %v3767 = vrot.slane %v3765, 5
      %v3768 = vsel %vm551, %v3763, %v3767
      %v3770 = vshrl.u32 %v3640, 16
      %v3772 = vrot.slane %v3770, 4
      %v3773 = vshll.u32 %v3640, 16
      %v3775 = vrot.slane %v3773, 5
      %v3776 = vor.u32 %v3772, %v3775
      %v3777 = vrot.slane %v3776, 4
      %v3779 = vshll.u32 %v3641, 16
      %v3781 = vrot.slane %v3779, 5
      %v3782 = vsel %vm551, %v3777, %v3781
      %v3783 = vshrl.u32 %v3641, 16
      %v3785 = vrot.slane %v3783, 4
      %v3786 = vor.u32 %v3785, %v3781
      %v3787 = vrot.slane %v3786, 4
      %v3789 = vshll.u32 %v3642, 16
      %v3791 = vrot.slane %v3789, 5
      %v3792 = vsel %vm551, %v3787, %v3791
      %v3794 = vshrl.u32 %v3643, 16
      %v3796 = vrot.slane %v3794, 4
      %v3797 = vshll.u32 %v3643, 16
      %v3799 = vrot.slane %v3797, 5
      %v3800 = vor.u32 %v3796, %v3799
      %v3801 = vrot.slane %v3800, 4
      %v3803 = vshll.u32 %v3644, 16
      %v3805 = vrot.slane %v3803, 5
      %v3806 = vsel %vm551, %v3801, %v3805
      %v3807 = vshrl.u32 %v3644, 16
      %v3809 = vrot.slane %v3807, 4
      %v3810 = vor.u32 %v3809, %v3805
      %v3811 = vrot.slane %v3810, 4
      %v3813 = vshll.u32 %v3645, 16
      %v3815 = vrot.slane %v3813, 5
      %v3816 = vsel %vm551, %v3811, %v3815
      %v3818 = vshrl.u32 %v3646, 16
      %v3820 = vrot.slane %v3818, 4
      %v3821 = vshll.u32 %v3646, 16
      %v3823 = vrot.slane %v3821, 5
      %v3824 = vor.u32 %v3820, %v3823
      %v3825 = vrot.slane %v3824, 4
      %v3827 = vshll.u32 %v3647, 16
      %v3829 = vrot.slane %v3827, 5
      %v3830 = vsel %vm551, %v3825, %v3829
      %v3831 = vshrl.u32 %v3647, 16
      %v3833 = vrot.slane %v3831, 4
      %v3834 = vor.u32 %v3833, %v3829
      %v3835 = vrot.slane %v3834, 4
      %v3837 = vshll.u32 %v3648, 16
      %v3839 = vrot.slane %v3837, 5
      %v3840 = vsel %vm551, %v3835, %v3839
      %3857 = vst [vmem:[#allocation5 + $0x14] sm:$0xf] %v3662
      %3858 = vst [vmem:[#allocation5 + $0x38] sm:$0xf] %v3672
      %3859 = vst [vmem:[#allocation5 + $0x5c] sm:$0xf] %v3686
      %3860 = vst [vmem:[#allocation5 + $0x80] sm:$0xf] %v3696
      %3861 = vst [vmem:[#allocation5 + $0xa4] sm:$0xf] %v3710
      %3862 = vst [vmem:[#allocation5 + $0xc8] sm:$0xf] %v3720
      %3863 = vst [vmem:[#allocation5 + $0xec] sm:$0xf] %v3734
      %3864 = vst [vmem:[#allocation5 + $0x110] sm:$0xf] %v3744
      %3865 = vst [vmem:[#allocation5 + $0x134] sm:$0xf] %v3758
      %3866 = vst [vmem:[#allocation5 + $0x158] sm:$0xf] %v3768
      %3867 = vst [vmem:[#allocation5 + $0x17c] sm:$0xf] %v3782
      %3868 = vst [vmem:[#allocation5 + $0x1a0] sm:$0xf] %v3792
      %3869 = vst [vmem:[#allocation5 + $0x1c4] sm:$0xf] %v3806
      %3870 = vst [vmem:[#allocation5 + $0x1e8] sm:$0xf] %v3816
      %3871 = vst [vmem:[#allocation5 + $0x20c] sm:$0xf] %v3830
      %3872 = vst [vmem:[#allocation5 + $0x230] sm:$0xf] %v3840
      %s3873 = scalar_lea.vmem [#allocation4], 32
      %v3874 = vld [vmem:[%s3873] sm:$0x8]
      %v3875 = vld [vmem:[%s3873 + $0x4] sm:$0xf]
      %v3876 = vld [vmem:[%s3873 + $0x8] sm:$0xf]
      %v3877 = vld [vmem:[%s3873 + $0x10] sm:$0x8]
      %v3878 = vld [vmem:[%s3873 + $0x14] sm:$0xf]
      %v3879 = vld [vmem:[%s3873 + $0x18] sm:$0xf]
      %v3880 = vld [vmem:[%s3873 + $0x20] sm:$0x8]
      %v3881 = vld [vmem:[%s3873 + $0x24] sm:$0xf]
      %v3882 = vld [vmem:[%s3873 + $0x28] sm:$0xf]
      %v3883 = vld [vmem:[%s3873 + $0x30] sm:$0x8]
      %v3884 = vld [vmem:[%s3873 + $0x34] sm:$0xf]
      %v3885 = vld [vmem:[%s3873 + $0x38] sm:$0xf]
      %v3886 = vld [vmem:[%s3873 + $0x40] sm:$0x8]
      %v3887 = vld [vmem:[%s3873 + $0x44] sm:$0xf]
      %v3888 = vld [vmem:[%s3873 + $0x48] sm:$0xf]
      %v3889 = vld [vmem:[%s3873 + $0x50] sm:$0x8]
      %v3890 = vld [vmem:[%s3873 + $0x54] sm:$0xf]
      %v3891 = vld [vmem:[%s3873 + $0x58] sm:$0xf]
      %v3892 = vld [vmem:[%s3873 + $0x60] sm:$0x8]
      %v3893 = vld [vmem:[%s3873 + $0x64] sm:$0xf]
      %v3894 = vld [vmem:[%s3873 + $0x68] sm:$0xf]
      %v3895 = vld [vmem:[%s3873 + $0x70] sm:$0x8]
      %v3896 = vld [vmem:[%s3873 + $0x74] sm:$0xf]
      %v3897 = vld [vmem:[%s3873 + $0x78] sm:$0xf]
      %v3899 = vshrl.u32 %v3874, 16
      %v3901 = vrot.slane %v3899, 7
      %v3902 = vrot.slane %v3901, 4
      %v3904 = vshrl.u32 %v3875, 16
      %v3906 = vrot.slane %v3904, 7
      %v3907 = vshll.u32 %v3875, 16
      %v3909 = vor.u32 %v3906, %v3907
      %v3910 = vsel %vm2871, %v3902, %v3909
      %v3911 = vrot.slane %v3906, 4
      %v3913 = vshrl.u32 %v3876, 16
      %v3915 = vrot.slane %v3913, 7
      %v3916 = vshll.u32 %v3876, 16
      %v3918 = vor.u32 %v3915, %v3916
      %v3919 = vsel %vm2871, %v3911, %v3918
      %v3921 = vshrl.u32 %v3877, 16
      %v3923 = vrot.slane %v3921, 7
      %v3924 = vrot.slane %v3923, 4
      %v3926 = vshrl.u32 %v3878, 16
      %v3928 = vrot.slane %v3926, 7
      %v3929 = vshll.u32 %v3878, 16
      %v3931 = vor.u32 %v3928, %v3929
      %v3932 = vsel %vm2871, %v3924, %v3931
      %v3933 = vrot.slane %v3928, 4
      %v3935 = vshrl.u32 %v3879, 16
      %v3937 = vrot.slane %v3935, 7
      %v3938 = vshll.u32 %v3879, 16
      %v3940 = vor.u32 %v3937, %v3938
      %v3941 = vsel %vm2871, %v3933, %v3940
      %v3943 = vshrl.u32 %v3880, 16
      %v3945 = vrot.slane %v3943, 7
      %v3946 = vrot.slane %v3945, 4
      %v3948 = vshrl.u32 %v3881, 16
      %v3950 = vrot.slane %v3948, 7
      %v3951 = vshll.u32 %v3881, 16
      %v3953 = vor.u32 %v3950, %v3951
      %v3954 = vsel %vm2871, %v3946, %v3953
      %v3955 = vrot.slane %v3950, 4
      %v3957 = vshrl.u32 %v3882, 16
      %v3959 = vrot.slane %v3957, 7
      %v3960 = vshll.u32 %v3882, 16
      %v3962 = vor.u32 %v3959, %v3960
      %v3963 = vsel %vm2871, %v3955, %v3962
      %v3965 = vshrl.u32 %v3883, 16
      %v3967 = vrot.slane %v3965, 7
      %v3968 = vrot.slane %v3967, 4
      %v3970 = vshrl.u32 %v3884, 16
      %v3972 = vrot.slane %v3970, 7
      %v3973 = vshll.u32 %v3884, 16
      %v3975 = vor.u32 %v3972, %v3973
      %v3976 = vsel %vm2871, %v3968, %v3975
      %v3977 = vrot.slane %v3972, 4
      %v3979 = vshrl.u32 %v3885, 16
      %v3981 = vrot.slane %v3979, 7
      %v3982 = vshll.u32 %v3885, 16
      %v3984 = vor.u32 %v3981, %v3982
      %v3985 = vsel %vm2871, %v3977, %v3984
      %v3987 = vshrl.u32 %v3886, 16
      %v3989 = vrot.slane %v3987, 7
      %v3990 = vrot.slane %v3989, 4
      %v3992 = vshrl.u32 %v3887, 16
      %v3994 = vrot.slane %v3992, 7
      %v3995 = vshll.u32 %v3887, 16
      %v3997 = vor.u32 %v3994, %v3995
      %v3998 = vsel %vm2871, %v3990, %v3997
      %v3999 = vrot.slane %v3994, 4
      %v4001 = vshrl.u32 %v3888, 16
      %v4003 = vrot.slane %v4001, 7
      %v4004 = vshll.u32 %v3888, 16
      %v4006 = vor.u32 %v4003, %v4004
      %v4007 = vsel %vm2871, %v3999, %v4006
      %v4009 = vshrl.u32 %v3889, 16
      %v4011 = vrot.slane %v4009, 7
      %v4012 = vrot.slane %v4011, 4
      %v4014 = vshrl.u32 %v3890, 16
      %v4016 = vrot.slane %v4014, 7
      %v4017 = vshll.u32 %v3890, 16
      %v4019 = vor.u32 %v4016, %v4017
      %v4020 = vsel %vm2871, %v4012, %v4019
      %v4021 = vrot.slane %v4016, 4
      %v4023 = vshrl.u32 %v3891, 16
      %v4025 = vrot.slane %v4023, 7
      %v4026 = vshll.u32 %v3891, 16
      %v4028 = vor.u32 %v4025, %v4026
      %v4029 = vsel %vm2871, %v4021, %v4028
      %v4031 = vshrl.u32 %v3892, 16
      %v4033 = vrot.slane %v4031, 7
      %v4034 = vrot.slane %v4033, 4
      %v4036 = vshrl.u32 %v3893, 16
      %v4038 = vrot.slane %v4036, 7
      %v4039 = vshll.u32 %v3893, 16
      %v4041 = vor.u32 %v4038, %v4039
      %v4042 = vsel %vm2871, %v4034, %v4041
      %v4043 = vrot.slane %v4038, 4
      %v4045 = vshrl.u32 %v3894, 16
      %v4047 = vrot.slane %v4045, 7
      %v4048 = vshll.u32 %v3894, 16
      %v4050 = vor.u32 %v4047, %v4048
      %v4051 = vsel %vm2871, %v4043, %v4050
      %v4053 = vshrl.u32 %v3895, 16
      %v4055 = vrot.slane %v4053, 7
      %v4056 = vrot.slane %v4055, 4
      %v4058 = vshrl.u32 %v3896, 16
      %v4060 = vrot.slane %v4058, 7
      %v4061 = vshll.u32 %v3896, 16
      %v4063 = vor.u32 %v4060, %v4061
      %v4064 = vsel %vm2871, %v4056, %v4063
      %v4065 = vrot.slane %v4060, 4
      %v4067 = vshrl.u32 %v3897, 16
      %v4069 = vrot.slane %v4067, 7
      %v4070 = vshll.u32 %v3897, 16
      %v4072 = vor.u32 %v4069, %v4070
      %v4073 = vsel %vm2871, %v4065, %v4072
      %4090 = vst [vmem:[#allocation5 + $0x18] sm:$0xf] %v3910
      %4091 = vst [vmem:[#allocation5 + $0x3c] sm:$0xf] %v3919
      %4092 = vst [vmem:[#allocation5 + $0x60] sm:$0xf] %v3932
      %4093 = vst [vmem:[#allocation5 + $0x84] sm:$0xf] %v3941
      %4094 = vst [vmem:[#allocation5 + $0xa8] sm:$0xf] %v3954
      %4095 = vst [vmem:[#allocation5 + $0xcc] sm:$0xf] %v3963
      %4096 = vst [vmem:[#allocation5 + $0xf0] sm:$0xf] %v3976
      %4097 = vst [vmem:[#allocation5 + $0x114] sm:$0xf] %v3985
      %4098 = vst [vmem:[#allocation5 + $0x138] sm:$0xf] %v3998
      %4099 = vst [vmem:[#allocation5 + $0x15c] sm:$0xf] %v4007
      %4100 = vst [vmem:[#allocation5 + $0x180] sm:$0xf] %v4020
      %4101 = vst [vmem:[#allocation5 + $0x1a4] sm:$0xf] %v4029
      %4102 = vst [vmem:[#allocation5 + $0x1c8] sm:$0xf] %v4042
      %4103 = vst [vmem:[#allocation5 + $0x1ec] sm:$0xf] %v4051
      %4104 = vst [vmem:[#allocation5 + $0x210] sm:$0xf] %v4064
      %4105 = vst [vmem:[#allocation5 + $0x234] sm:$0xf] %v4073
      %v4106 = vld [vmem:[%s3873 + $0x4] sm:$0xf]
      %v4107 = vld [vmem:[%s3873 + $0x8] sm:$0xf]
      %v4108 = vld [vmem:[%s3873 + $0x14] sm:$0xf]
      %v4109 = vld [vmem:[%s3873 + $0x18] sm:$0xf]
      %v4110 = vld [vmem:[%s3873 + $0x24] sm:$0xf]
      %v4111 = vld [vmem:[%s3873 + $0x28] sm:$0xf]
      %v4112 = vld [vmem:[%s3873 + $0x34] sm:$0xf]
      %v4113 = vld [vmem:[%s3873 + $0x38] sm:$0xf]
      %v4114 = vld [vmem:[%s3873 + $0x44] sm:$0xf]
      %v4115 = vld [vmem:[%s3873 + $0x48] sm:$0xf]
      %v4116 = vld [vmem:[%s3873 + $0x54] sm:$0xf]
      %v4117 = vld [vmem:[%s3873 + $0x58] sm:$0xf]
      %v4118 = vld [vmem:[%s3873 + $0x64] sm:$0xf]
      %v4119 = vld [vmem:[%s3873 + $0x68] sm:$0xf]
      %v4120 = vld [vmem:[%s3873 + $0x74] sm:$0xf]
      %v4121 = vld [vmem:[%s3873 + $0x78] sm:$0xf]
      %4122 = vst [vmem:[#allocation5 + $0x1c] sm:$0xf] %v4106
      %4123 = vst [vmem:[#allocation5 + $0x40] sm:$0xf] %v4107
      %4124 = vst [vmem:[#allocation5 + $0x64] sm:$0xf] %v4108
      %4125 = vst [vmem:[#allocation5 + $0x88] sm:$0xf] %v4109
      %4126 = vst [vmem:[#allocation5 + $0xac] sm:$0xf] %v4110
      %4127 = vst [vmem:[#allocation5 + $0xd0] sm:$0xf] %v4111
      %4128 = vst [vmem:[#allocation5 + $0xf4] sm:$0xf] %v4112
      %4129 = vst [vmem:[#allocation5 + $0x118] sm:$0xf] %v4113
      %4130 = vst [vmem:[#allocation5 + $0x13c] sm:$0xf] %v4114
      %4131 = vst [vmem:[#allocation5 + $0x160] sm:$0xf] %v4115
      %4132 = vst [vmem:[#allocation5 + $0x184] sm:$0xf] %v4116
      %4133 = vst [vmem:[#allocation5 + $0x1a8] sm:$0xf] %v4117
      %4134 = vst [vmem:[#allocation5 + $0x1cc] sm:$0xf] %v4118
      %4135 = vst [vmem:[#allocation5 + $0x1f0] sm:$0xf] %v4119
      %4136 = vst [vmem:[#allocation5 + $0x214] sm:$0xf] %v4120
      %4137 = vst [vmem:[#allocation5 + $0x238] sm:$0xf] %v4121
      %v4138 = vld [vmem:[%s3873 + $0x4] sm:$0xf]
      %v4139 = vld [vmem:[%s3873 + $0x8] sm:$0xf]
      %v4140 = vld [vmem:[%s3873 + $0xc] sm:$0x1]
      %v4141 = vld [vmem:[%s3873 + $0x14] sm:$0xf]
      %v4142 = vld [vmem:[%s3873 + $0x18] sm:$0xf]
      %v4143 = vld [vmem:[%s3873 + $0x1c] sm:$0x1]
      %v4144 = vld [vmem:[%s3873 + $0x24] sm:$0xf]
      %v4145 = vld [vmem:[%s3873 + $0x28] sm:$0xf]
      %v4146 = vld [vmem:[%s3873 + $0x2c] sm:$0x1]
      %v4147 = vld [vmem:[%s3873 + $0x34] sm:$0xf]
      %v4148 = vld [vmem:[%s3873 + $0x38] sm:$0xf]
      %v4149 = vld [vmem:[%s3873 + $0x3c] sm:$0x1]
      %v4150 = vld [vmem:[%s3873 + $0x44] sm:$0xf]
      %v4151 = vld [vmem:[%s3873 + $0x48] sm:$0xf]
      %v4152 = vld [vmem:[%s3873 + $0x4c] sm:$0x1]
      %v4153 = vld [vmem:[%s3873 + $0x54] sm:$0xf]
      %v4154 = vld [vmem:[%s3873 + $0x58] sm:$0xf]
      %v4155 = vld [vmem:[%s3873 + $0x5c] sm:$0x1]
      %v4156 = vld [vmem:[%s3873 + $0x64] sm:$0xf]
      %v4157 = vld [vmem:[%s3873 + $0x68] sm:$0xf]
      %v4158 = vld [vmem:[%s3873 + $0x6c] sm:$0x1]
      %v4159 = vld [vmem:[%s3873 + $0x74] sm:$0xf]
      %v4160 = vld [vmem:[%s3873 + $0x78] sm:$0xf]
      %v4161 = vld [vmem:[%s3873 + $0x7c] sm:$0x1]
      %v4163 = vshrl.u32 %v4138, 16
      %v4165 = vrot.slane %v4163, 4
      %v4166 = vshll.u32 %v4138, 16
      %v4168 = vrot.slane %v4166, 5
      %v4169 = vor.u32 %v4165, %v4168
      %v4170 = vrot.slane %v4169, 4
      %v4172 = vshll.u32 %v4139, 16
      %v4174 = vrot.slane %v4172, 5
      %v4175 = vsel %vm551, %v4170, %v4174
      %v4176 = vshrl.u32 %v4139, 16
      %v4178 = vrot.slane %v4176, 4
      %v4179 = vor.u32 %v4178, %v4174
      %v4180 = vrot.slane %v4179, 4
      %v4182 = vshll.u32 %v4140, 16
      %v4184 = vrot.slane %v4182, 5
      %v4185 = vsel %vm551, %v4180, %v4184
      %v4187 = vshrl.u32 %v4141, 16
      %v4189 = vrot.slane %v4187, 4
      %v4190 = vshll.u32 %v4141, 16
      %v4192 = vrot.slane %v4190, 5
      %v4193 = vor.u32 %v4189, %v4192
      %v4194 = vrot.slane %v4193, 4
      %v4196 = vshll.u32 %v4142, 16
      %v4198 = vrot.slane %v4196, 5
      %v4199 = vsel %vm551, %v4194, %v4198
      %v4200 = vshrl.u32 %v4142, 16
      %v4202 = vrot.slane %v4200, 4
      %v4203 = vor.u32 %v4202, %v4198
      %v4204 = vrot.slane %v4203, 4
      %v4206 = vshll.u32 %v4143, 16
      %v4208 = vrot.slane %v4206, 5
      %v4209 = vsel %vm551, %v4204, %v4208
      %v4211 = vshrl.u32 %v4144, 16
      %v4213 = vrot.slane %v4211, 4
      %v4214 = vshll.u32 %v4144, 16
      %v4216 = vrot.slane %v4214, 5
      %v4217 = vor.u32 %v4213, %v4216
      %v4218 = vrot.slane %v4217, 4
      %v4220 = vshll.u32 %v4145, 16
      %v4222 = vrot.slane %v4220, 5
      %v4223 = vsel %vm551, %v4218, %v4222
      %v4224 = vshrl.u32 %v4145, 16
      %v4226 = vrot.slane %v4224, 4
      %v4227 = vor.u32 %v4226, %v4222
      %v4228 = vrot.slane %v4227, 4
      %v4230 = vshll.u32 %v4146, 16
      %v4232 = vrot.slane %v4230, 5
      %v4233 = vsel %vm551, %v4228, %v4232
      %v4235 = vshrl.u32 %v4147, 16
      %v4237 = vrot.slane %v4235, 4
      %v4238 = vshll.u32 %v4147, 16
      %v4240 = vrot.slane %v4238, 5
      %v4241 = vor.u32 %v4237, %v4240
      %v4242 = vrot.slane %v4241, 4
      %v4244 = vshll.u32 %v4148, 16
      %v4246 = vrot.slane %v4244, 5
      %v4247 = vsel %vm551, %v4242, %v4246
      %v4248 = vshrl.u32 %v4148, 16
      %v4250 = vrot.slane %v4248, 4
      %v4251 = vor.u32 %v4250, %v4246
      %v4252 = vrot.slane %v4251, 4
      %v4254 = vshll.u32 %v4149, 16
      %v4256 = vrot.slane %v4254, 5
      %v4257 = vsel %vm551, %v4252, %v4256
      %v4259 = vshrl.u32 %v4150, 16
      %v4261 = vrot.slane %v4259, 4
      %v4262 = vshll.u32 %v4150, 16
      %v4264 = vrot.slane %v4262, 5
      %v4265 = vor.u32 %v4261, %v4264
      %v4266 = vrot.slane %v4265, 4
      %v4268 = vshll.u32 %v4151, 16
      %v4270 = vrot.slane %v4268, 5
      %v4271 = vsel %vm551, %v4266, %v4270
      %v4272 = vshrl.u32 %v4151, 16
      %v4274 = vrot.slane %v4272, 4
      %v4275 = vor.u32 %v4274, %v4270
      %v4276 = vrot.slane %v4275, 4
      %v4278 = vshll.u32 %v4152, 16
      %v4280 = vrot.slane %v4278, 5
      %v4281 = vsel %vm551, %v4276, %v4280
      %v4283 = vshrl.u32 %v4153, 16
      %v4285 = vrot.slane %v4283, 4
      %v4286 = vshll.u32 %v4153, 16
      %v4288 = vrot.slane %v4286, 5
      %v4289 = vor.u32 %v4285, %v4288
      %v4290 = vrot.slane %v4289, 4
      %v4292 = vshll.u32 %v4154, 16
      %v4294 = vrot.slane %v4292, 5
      %v4295 = vsel %vm551, %v4290, %v4294
      %v4296 = vshrl.u32 %v4154, 16
      %v4298 = vrot.slane %v4296, 4
      %v4299 = vor.u32 %v4298, %v4294
      %v4300 = vrot.slane %v4299, 4
      %v4302 = vshll.u32 %v4155, 16
      %v4304 = vrot.slane %v4302, 5
      %v4305 = vsel %vm551, %v4300, %v4304
      %v4307 = vshrl.u32 %v4156, 16
      %v4309 = vrot.slane %v4307, 4
      %v4310 = vshll.u32 %v4156, 16
      %v4312 = vrot.slane %v4310, 5
      %v4313 = vor.u32 %v4309, %v4312
      %v4314 = vrot.slane %v4313, 4
      %v4316 = vshll.u32 %v4157, 16
      %v4318 = vrot.slane %v4316, 5
      %v4319 = vsel %vm551, %v4314, %v4318
      %v4320 = vshrl.u32 %v4157, 16
      %v4322 = vrot.slane %v4320, 4
      %v4323 = vor.u32 %v4322, %v4318
      %v4324 = vrot.slane %v4323, 4
      %v4326 = vshll.u32 %v4158, 16
      %v4328 = vrot.slane %v4326, 5
      %v4329 = vsel %vm551, %v4324, %v4328
      %v4331 = vshrl.u32 %v4159, 16
      %v4333 = vrot.slane %v4331, 4
      %v4334 = vshll.u32 %v4159, 16
      %v4336 = vrot.slane %v4334, 5
      %v4337 = vor.u32 %v4333, %v4336
      %v4338 = vrot.slane %v4337, 4
      %v4340 = vshll.u32 %v4160, 16
      %v4342 = vrot.slane %v4340, 5
      %v4343 = vsel %vm551, %v4338, %v4342
      %v4344 = vshrl.u32 %v4160, 16
      %v4346 = vrot.slane %v4344, 4
      %v4347 = vor.u32 %v4346, %v4342
      %v4348 = vrot.slane %v4347, 4
      %v4350 = vshll.u32 %v4161, 16
      %v4352 = vrot.slane %v4350, 5
      %v4353 = vsel %vm551, %v4348, %v4352
      %4370 = vst [vmem:[#allocation5 + $0x20] sm:$0xf] %v4175
      %4371 = vst [vmem:[#allocation5 + $0x44] sm:$0xf] %v4185
      %4372 = vst [vmem:[#allocation5 + $0x68] sm:$0xf] %v4199
      %4373 = vst [vmem:[#allocation5 + $0x8c] sm:$0xf] %v4209
      %4374 = vst [vmem:[#allocation5 + $0xb0] sm:$0xf] %v4223
      %4375 = vst [vmem:[#allocation5 + $0xd4] sm:$0xf] %v4233
      %4376 = vst [vmem:[#allocation5 + $0xf8] sm:$0xf] %v4247
      %4377 = vst [vmem:[#allocation5 + $0x11c] sm:$0xf] %v4257
      %4378 = vst [vmem:[#allocation5 + $0x140] sm:$0xf] %v4271
      %4379 = vst [vmem:[#allocation5 + $0x164] sm:$0xf] %v4281
      %4380 = vst [vmem:[#allocation5 + $0x188] sm:$0xf] %v4295
      %4381 = vst [vmem:[#allocation5 + $0x1ac] sm:$0xf] %v4305
      %4382 = vst [vmem:[#allocation5 + $0x1d0] sm:$0xf] %v4319
      %4383 = vst [vmem:[#allocation5 + $0x1f4] sm:$0xf] %v4329
      %4384 = vst [vmem:[#allocation5 + $0x218] sm:$0xf] %v4343
      %4385 = vst [vmem:[#allocation5 + $0x23c] sm:$0xf] %v4353
      %v4386 = vld [vmem:[#allocation5] sm:$0xff]
      %v4387 = vld [vmem:[#allocation5 + $0x8] sm:$0xff]
      %v4388 = vld [vmem:[#allocation5 + $0x10] sm:$0xff]
      %v4389 = vld [vmem:[#allocation5 + $0x18] sm:$0xff]
      %v4390 = vld [vmem:[#allocation5 + $0x20] sm:$0xf]
      %v4391 = vld [vmem:[#allocation5 + $0x24] sm:$0xff]
      %v4392 = vld [vmem:[#allocation5 + $0x2c] sm:$0xff]
      %v4393 = vld [vmem:[#allocation5 + $0x34] sm:$0xff]
      %v4394 = vld [vmem:[#allocation5 + $0x3c] sm:$0xff]
      %v4395 = vld [vmem:[#allocation5 + $0x44] sm:$0xf]
      %v4396 = vld [vmem:[#allocation5 + $0x48] sm:$0xff]
      %v4397 = vld [vmem:[#allocation5 + $0x50] sm:$0xff]
      %v4398 = vld [vmem:[#allocation5 + $0x58] sm:$0xff]
      %v4399 = vld [vmem:[#allocation5 + $0x60] sm:$0xff]
      %v4400 = vld [vmem:[#allocation5 + $0x68] sm:$0xf]
      %v4401 = vld [vmem:[#allocation5 + $0x6c] sm:$0xff]
      %v4402 = vld [vmem:[#allocation5 + $0x74] sm:$0xff]
      %v4403 = vld [vmem:[#allocation5 + $0x7c] sm:$0xff]
      %v4404 = vld [vmem:[#allocation5 + $0x84] sm:$0xff]
      %v4405 = vld [vmem:[#allocation5 + $0x8c] sm:$0xf]
      %v4406 = vld [vmem:[#allocation5 + $0x90] sm:$0xff]
      %v4407 = vld [vmem:[#allocation5 + $0x98] sm:$0xff]
      %v4408 = vld [vmem:[#allocation5 + $0xa0] sm:$0xff]
      %v4409 = vld [vmem:[#allocation5 + $0xa8] sm:$0xff]
      %v4410 = vld [vmem:[#allocation5 + $0xb0] sm:$0xf]
      %v4411 = vld [vmem:[#allocation5 + $0xb4] sm:$0xff]
      %v4412 = vld [vmem:[#allocation5 + $0xbc] sm:$0xff]
      %v4413 = vld [vmem:[#allocation5 + $0xc4] sm:$0xff]
      %v4414 = vld [vmem:[#allocation5 + $0xcc] sm:$0xff]
      %v4415 = vld [vmem:[#allocation5 + $0xd4] sm:$0xf]
      %v4416 = vld [vmem:[#allocation5 + $0xd8] sm:$0xff]
      %v4417 = vld [vmem:[#allocation5 + $0xe0] sm:$0xff]
      %v4418 = vld [vmem:[#allocation5 + $0xe8] sm:$0xff]
      %v4419 = vld [vmem:[#allocation5 + $0xf0] sm:$0xff]
      %v4420 = vld [vmem:[#allocation5 + $0xf8] sm:$0xf]
      %v4421 = vld [vmem:[#allocation5 + $0xfc] sm:$0xff]
      %v4422 = vld [vmem:[#allocation5 + $0x104] sm:$0xff]
      %v4423 = vld [vmem:[#allocation5 + $0x10c] sm:$0xff]
      %v4424 = vld [vmem:[#allocation5 + $0x114] sm:$0xff]
      %v4425 = vld [vmem:[#allocation5 + $0x11c] sm:$0xf]
      %v4426 = vld [vmem:[#allocation5 + $0x120] sm:$0xff]
      %v4427 = vld [vmem:[#allocation5 + $0x128] sm:$0xff]
      %v4428 = vld [vmem:[#allocation5 + $0x130] sm:$0xff]
      %v4429 = vld [vmem:[#allocation5 + $0x138] sm:$0xff]
      %v4430 = vld [vmem:[#allocation5 + $0x140] sm:$0xf]
      %v4431 = vld [vmem:[#allocation5 + $0x144] sm:$0xff]
      %v4432 = vld [vmem:[#allocation5 + $0x14c] sm:$0xff]
      %v4433 = vld [vmem:[#allocation5 + $0x154] sm:$0xff]
      %v4434 = vld [vmem:[#allocation5 + $0x15c] sm:$0xff]
      %v4435 = vld [vmem:[#allocation5 + $0x164] sm:$0xf]
      %v4436 = vld [vmem:[#allocation5 + $0x168] sm:$0xff]
      %v4437 = vld [vmem:[#allocation5 + $0x170] sm:$0xff]
      %v4438 = vld [vmem:[#allocation5 + $0x178] sm:$0xff]
      %v4439 = vld [vmem:[#allocation5 + $0x180] sm:$0xff]
      %v4440 = vld [vmem:[#allocation5 + $0x188] sm:$0xf]
      %v4441 = vld [vmem:[#allocation5 + $0x18c] sm:$0xff]
      %v4442 = vld [vmem:[#allocation5 + $0x194] sm:$0xff]
      %v4443 = vld [vmem:[#allocation5 + $0x19c] sm:$0xff]
      %v4444 = vld [vmem:[#allocation5 + $0x1a4] sm:$0xff]
      %v4445 = vld [vmem:[#allocation5 + $0x1ac] sm:$0xf]
      %v4446 = vld [vmem:[#allocation5 + $0x1b0] sm:$0xff]
      %v4447 = vld [vmem:[#allocation5 + $0x1b8] sm:$0xff]
      %v4448 = vld [vmem:[#allocation5 + $0x1c0] sm:$0xff]
      %v4449 = vld [vmem:[#allocation5 + $0x1c8] sm:$0xff]
      %v4450 = vld [vmem:[#allocation5 + $0x1d0] sm:$0xf]
      %v4451 = vld [vmem:[#allocation5 + $0x1d4] sm:$0xff]
      %v4452 = vld [vmem:[#allocation5 + $0x1dc] sm:$0xff]
      %v4453 = vld [vmem:[#allocation5 + $0x1e4] sm:$0xff]
      %v4454 = vld [vmem:[#allocation5 + $0x1ec] sm:$0xff]
      %v4455 = vld [vmem:[#allocation5 + $0x1f4] sm:$0xf]
      %v4456 = vld [vmem:[#allocation5 + $0x1f8] sm:$0xff]
      %v4457 = vld [vmem:[#allocation5 + $0x200] sm:$0xff]
      %v4458 = vld [vmem:[#allocation5 + $0x208] sm:$0xff]
      %v4459 = vld [vmem:[#allocation5 + $0x210] sm:$0xff]
      %v4460 = vld [vmem:[#allocation5 + $0x218] sm:$0xf]
      %v4461 = vld [vmem:[#allocation5 + $0x21c] sm:$0xff]
      %v4462 = vld [vmem:[#allocation5 + $0x224] sm:$0xff]
      %v4463 = vld [vmem:[#allocation5 + $0x22c] sm:$0xff]
      %v4464 = vld [vmem:[#allocation5 + $0x234] sm:$0xff]
      %v4465 = vld [vmem:[#allocation5 + $0x23c] sm:$0xf]
      %v4466 = vld [vmem:[%s5] sm:$0xf]
      %v4467 = vld [vmem:[%s5 + $0x4] sm:$0xf]
      %v4468 = vld [vmem:[%s5 + $0x8] sm:$0xf]
      %v4469 = vld [vmem:[%s5 + $0xc] sm:$0xf]
      %v4470 = vld [vmem:[%s5 + $0x10] sm:$0xf]
      %v4471 = vld [vmem:[%s5 + $0x14] sm:$0xf]
      %v4472 = vld [vmem:[%s5 + $0x18] sm:$0xf]
      %v4473 = vld [vmem:[%s5 + $0x1c] sm:$0xf]
      %v4474 = vld [vmem:[%s5 + $0x20] sm:$0xf]
      %v4475 = vld [vmem:[%s5 + $0x24] sm:$0xf]
      %v4476 = vld [vmem:[%s5 + $0x28] sm:$0xf]
      %v4477 = vld [vmem:[%s5 + $0x2c] sm:$0xf]
      %v4478 = vld [vmem:[%s5 + $0x30] sm:$0xf]
      %v4479 = vld [vmem:[%s5 + $0x34] sm:$0xf]
      %v4480 = vld [vmem:[%s5 + $0x38] sm:$0xf]
      %v4481 = vld [vmem:[%s5 + $0x3c] sm:$0xf]
      %v4482 = vld [vmem:[%s5 + $0x40] sm:$0xf]
      %v4483 = vld [vmem:[%s5 + $0x44] sm:$0xf]
      %v4484 = vld [vmem:[%s5 + $0x48] sm:$0xf]
      %v4485 = vld [vmem:[%s5 + $0x4c] sm:$0xf]
      %v4486 = vld [vmem:[%s5 + $0x50] sm:$0xf]
      %v4487 = vld [vmem:[%s5 + $0x54] sm:$0xf]
      %v4488 = vld [vmem:[%s5 + $0x58] sm:$0xf]
      %v4489 = vld [vmem:[%s5 + $0x5c] sm:$0xf]
      %v4490 = vld [vmem:[%s5 + $0x60] sm:$0xf]
      %v4491 = vld [vmem:[%s5 + $0x64] sm:$0xf]
      %v4492 = vld [vmem:[%s5 + $0x68] sm:$0xf]
      %v4493 = vld [vmem:[%s5 + $0x6c] sm:$0xf]
      %v4494 = vld [vmem:[%s5 + $0x70] sm:$0xf]
      %v4495 = vld [vmem:[%s5 + $0x74] sm:$0xf]
      %v4496 = vld [vmem:[%s5 + $0x78] sm:$0xf]
      %v4497 = vld [vmem:[%s5 + $0x7c] sm:$0xf]
      %v4498 = vld [vmem:[%s5 + $0x80] sm:$0xf]
      %v4499 = vld [vmem:[%s5 + $0x84] sm:$0xf]
      %v4500 = vld [vmem:[%s5 + $0x88] sm:$0xf]
      %v4501 = vld [vmem:[%s5 + $0x8c] sm:$0xf]
      %v4502 = vld [vmem:[%s5 + $0x90] sm:$0xf]
      %v4503 = vld [vmem:[%s5 + $0x94] sm:$0xf]
      %v4504 = vld [vmem:[%s5 + $0x98] sm:$0xf]
      %v4505 = vld [vmem:[%s5 + $0x9c] sm:$0xf]
      %v4506 = vld [vmem:[%s5 + $0xa0] sm:$0xf]
      %v4507 = vld [vmem:[%s5 + $0xa4] sm:$0xf]
      %v4508 = vld [vmem:[%s5 + $0xa8] sm:$0xf]
      %v4509 = vld [vmem:[%s5 + $0xac] sm:$0xf]
      %v4510 = vld [vmem:[%s5 + $0xb0] sm:$0xf]
      %v4511 = vld [vmem:[%s5 + $0xb4] sm:$0xf]
      %v4512 = vld [vmem:[%s5 + $0xb8] sm:$0xf]
      %v4513 = vld [vmem:[%s5 + $0xbc] sm:$0xf]
      %v4514 = vld [vmem:[%s5 + $0xc0] sm:$0xf]
      %v4515 = vld [vmem:[%s5 + $0xc4] sm:$0xf]
      %v4516 = vld [vmem:[%s5 + $0xc8] sm:$0xf]
      %v4517 = vld [vmem:[%s5 + $0xcc] sm:$0xf]
      %v4518 = vld [vmem:[%s5 + $0xd0] sm:$0xf]
      %v4519 = vld [vmem:[%s5 + $0xd4] sm:$0xf]
      %v4520 = vld [vmem:[%s5 + $0xd8] sm:$0xf]
      %v4521 = vld [vmem:[%s5 + $0xdc] sm:$0xf]
      %v4522 = vld [vmem:[%s5 + $0xe0] sm:$0xf]
      %v4523 = vld [vmem:[%s5 + $0xe4] sm:$0xf]
      %v4524 = vld [vmem:[%s5 + $0xe8] sm:$0xf]
      %v4525 = vld [vmem:[%s5 + $0xec] sm:$0xf]
      %v4526 = vld [vmem:[%s5 + $0xf0] sm:$0xf]
      %v4527 = vld [vmem:[%s5 + $0xf4] sm:$0xf]
      %v4528 = vld [vmem:[%s5 + $0xf8] sm:$0xf]
      %v4529 = vld [vmem:[%s5 + $0xfc] sm:$0xf]
      %v4530 = vld [vmem:[%s5 + $0x100] sm:$0xf]
      %v4531 = vld [vmem:[%s5 + $0x104] sm:$0xf]
      %v4532 = vld [vmem:[%s5 + $0x108] sm:$0xf]
      %v4533 = vld [vmem:[%s5 + $0x10c] sm:$0xf]
      %v4534 = vld [vmem:[%s5 + $0x110] sm:$0xf]
      %v4535 = vld [vmem:[%s5 + $0x114] sm:$0xf]
      %v4536 = vld [vmem:[%s5 + $0x118] sm:$0xf]
      %v4537 = vld [vmem:[%s5 + $0x11c] sm:$0xf]
      %v4538 = vld [vmem:[%s5 + $0x120] sm:$0xf]
      %v4539 = vld [vmem:[%s5 + $0x124] sm:$0xf]
      %v4540 = vld [vmem:[%s5 + $0x128] sm:$0xf]
      %v4541 = vld [vmem:[%s5 + $0x12c] sm:$0xf]
      %v4542 = vld [vmem:[%s5 + $0x130] sm:$0xf]
      %v4543 = vld [vmem:[%s5 + $0x134] sm:$0xf]
      %v4544 = vld [vmem:[%s5 + $0x138] sm:$0xf]
      %v4545 = vld [vmem:[%s5 + $0x13c] sm:$0xf]
      %v4546 = vld [vmem:[%s5 + $0x140] sm:$0xf]
      %v4547 = vld [vmem:[%s5 + $0x144] sm:$0xf]
      %v4548 = vld [vmem:[%s5 + $0x148] sm:$0xf]
      %v4549 = vld [vmem:[%s5 + $0x14c] sm:$0xf]
      %v4550 = vld [vmem:[%s5 + $0x150] sm:$0xf]
      %v4551 = vld [vmem:[%s5 + $0x154] sm:$0xf]
      %v4552 = vld [vmem:[%s5 + $0x158] sm:$0xf]
      %v4553 = vld [vmem:[%s5 + $0x15c] sm:$0xf]
      %v4554 = vld [vmem:[%s5 + $0x160] sm:$0xf]
      %v4555 = vld [vmem:[%s5 + $0x164] sm:$0xf]
      %v4556 = vld [vmem:[%s5 + $0x168] sm:$0xf]
      %v4557 = vld [vmem:[%s5 + $0x16c] sm:$0xf]
      %v4558 = vld [vmem:[%s5 + $0x170] sm:$0xf]
      %v4559 = vld [vmem:[%s5 + $0x174] sm:$0xf]
      %v4560 = vld [vmem:[%s5 + $0x178] sm:$0xf]
      %v4561 = vld [vmem:[%s5 + $0x17c] sm:$0xf]
      %v4562 = vld [vmem:[%s5 + $0x180] sm:$0xf]
      %v4563 = vld [vmem:[%s5 + $0x184] sm:$0xf]
      %v4564 = vld [vmem:[%s5 + $0x188] sm:$0xf]
      %v4565 = vld [vmem:[%s5 + $0x18c] sm:$0xf]
      %v4566 = vld [vmem:[%s5 + $0x190] sm:$0xf]
      %v4567 = vld [vmem:[%s5 + $0x194] sm:$0xf]
      %v4568 = vld [vmem:[%s5 + $0x198] sm:$0xf]
      %v4569 = vld [vmem:[%s5 + $0x19c] sm:$0xf]
      %v4570 = vld [vmem:[%s5 + $0x1a0] sm:$0xf]
      %v4571 = vld [vmem:[%s5 + $0x1a4] sm:$0xf]
      %v4572 = vld [vmem:[%s5 + $0x1a8] sm:$0xf]
      %v4573 = vld [vmem:[%s5 + $0x1ac] sm:$0xf]
      %v4574 = vld [vmem:[%s5 + $0x1b0] sm:$0xf]
      %v4575 = vld [vmem:[%s5 + $0x1b4] sm:$0xf]
      %v4576 = vld [vmem:[%s5 + $0x1b8] sm:$0xf]
      %v4577 = vld [vmem:[%s5 + $0x1bc] sm:$0xf]
      %v4578 = vld [vmem:[%s5 + $0x1c0] sm:$0xf]
      %v4579 = vld [vmem:[%s5 + $0x1c4] sm:$0xf]
      %v4580 = vld [vmem:[%s5 + $0x1c8] sm:$0xf]
      %v4581 = vld [vmem:[%s5 + $0x1cc] sm:$0xf]
      %v4582 = vld [vmem:[%s5 + $0x1d0] sm:$0xf]
      %v4583 = vld [vmem:[%s5 + $0x1d4] sm:$0xf]
      %v4584 = vld [vmem:[%s5 + $0x1d8] sm:$0xf]
      %v4585 = vld [vmem:[%s5 + $0x1dc] sm:$0xf]
      %v4586 = vld [vmem:[%s5 + $0x1e0] sm:$0xf]
      %v4587 = vld [vmem:[%s5 + $0x1e4] sm:$0xf]
      %v4588 = vld [vmem:[%s5 + $0x1e8] sm:$0xf]
      %v4589 = vld [vmem:[%s5 + $0x1ec] sm:$0xf]
      %v4590 = vld [vmem:[%s5 + $0x1f0] sm:$0xf]
      %v4591 = vld [vmem:[%s5 + $0x1f4] sm:$0xf]
      %v4592 = vld [vmem:[%s5 + $0x1f8] sm:$0xf]
      %v4593 = vld [vmem:[%s5 + $0x1fc] sm:$0xf]
      %v4594 = vld [vmem:[%s5 + $0x200] sm:$0xf]
      %v4595 = vld [vmem:[%s5 + $0x204] sm:$0xf]
      %v4596 = vld [vmem:[%s5 + $0x208] sm:$0xf]
      %v4597 = vld [vmem:[%s5 + $0x20c] sm:$0xf]
      %v4598 = vld [vmem:[%s5 + $0x210] sm:$0xf]
      %v4599 = vld [vmem:[%s5 + $0x214] sm:$0xf]
      %v4600 = vld [vmem:[%s5 + $0x218] sm:$0xf]
      %v4601 = vld [vmem:[%s5 + $0x21c] sm:$0xf]
      %v4602 = vld [vmem:[%s5 + $0x220] sm:$0xf]
      %v4603 = vld [vmem:[%s5 + $0x224] sm:$0xf]
      %v4604 = vld [vmem:[%s5 + $0x228] sm:$0xf]
      %v4605 = vld [vmem:[%s5 + $0x22c] sm:$0xf]
      %v4606 = vld [vmem:[%s5 + $0x230] sm:$0xf]
      %v4607 = vld [vmem:[%s5 + $0x234] sm:$0xf]
      %v4608 = vld [vmem:[%s5 + $0x238] sm:$0xf]
      %v4609 = vld [vmem:[%s5 + $0x23c] sm:$0xf]
      %v4690 = vunpack.c.l.b16 %v4386
      %v4691 = vunpack.c.h.b16 %v4386
      %v4692 = vunpack.c.l.b16 %v4387
      %v4693 = vunpack.c.h.b16 %v4387
      %v4694 = vunpack.c.l.b16 %v4388
      %v4695 = vunpack.c.h.b16 %v4388
      %v4696 = vunpack.c.l.b16 %v4389
      %v4697 = vunpack.c.h.b16 %v4389
      %v4698 = vunpack.c.l.b16 %v4390
      %v4699 = vunpack.c.l.b16 %v4391
      %v4700 = vunpack.c.h.b16 %v4391
      %v4701 = vunpack.c.l.b16 %v4392
      %v4702 = vunpack.c.h.b16 %v4392
      %v4703 = vunpack.c.l.b16 %v4393
      %v4704 = vunpack.c.h.b16 %v4393
      %v4705 = vunpack.c.l.b16 %v4394
      %v4706 = vunpack.c.h.b16 %v4394
      %v4707 = vunpack.c.l.b16 %v4395
      %v4708 = vunpack.c.l.b16 %v4396
      %v4709 = vunpack.c.h.b16 %v4396
      %v4710 = vunpack.c.l.b16 %v4397
      %v4711 = vunpack.c.h.b16 %v4397
      %v4712 = vunpack.c.l.b16 %v4398
      %v4713 = vunpack.c.h.b16 %v4398
      %v4714 = vunpack.c.l.b16 %v4399
      %v4715 = vunpack.c.h.b16 %v4399
      %v4716 = vunpack.c.l.b16 %v4400
      %v4717 = vunpack.c.l.b16 %v4401
      %v4718 = vunpack.c.h.b16 %v4401
      %v4719 = vunpack.c.l.b16 %v4402
      %v4720 = vunpack.c.h.b16 %v4402
      %v4721 = vunpack.c.l.b16 %v4403
      %v4722 = vunpack.c.h.b16 %v4403
      %v4723 = vunpack.c.l.b16 %v4404
      %v4724 = vunpack.c.h.b16 %v4404
      %v4725 = vunpack.c.l.b16 %v4405
      %v4726 = vunpack.c.l.b16 %v4406
      %v4727 = vunpack.c.h.b16 %v4406
      %v4728 = vunpack.c.l.b16 %v4407
      %v4729 = vunpack.c.h.b16 %v4407
      %v4730 = vunpack.c.l.b16 %v4408
      %v4731 = vunpack.c.h.b16 %v4408
      %v4732 = vunpack.c.l.b16 %v4409
      %v4733 = vunpack.c.h.b16 %v4409
      %v4734 = vunpack.c.l.b16 %v4410
      %v4735 = vunpack.c.l.b16 %v4411
      %v4736 = vunpack.c.h.b16 %v4411
      %v4737 = vunpack.c.l.b16 %v4412
      %v4738 = vunpack.c.h.b16 %v4412
      %v4739 = vunpack.c.l.b16 %v4413
      %v4740 = vunpack.c.h.b16 %v4413
      %v4741 = vunpack.c.l.b16 %v4414
      %v4742 = vunpack.c.h.b16 %v4414
      %v4743 = vunpack.c.l.b16 %v4415
      %v4744 = vunpack.c.l.b16 %v4416
      %v4745 = vunpack.c.h.b16 %v4416
      %v4746 = vunpack.c.l.b16 %v4417
      %v4747 = vunpack.c.h.b16 %v4417
      %v4748 = vunpack.c.l.b16 %v4418
      %v4749 = vunpack.c.h.b16 %v4418
      %v4750 = vunpack.c.l.b16 %v4419
      %v4751 = vunpack.c.h.b16 %v4419
      %v4752 = vunpack.c.l.b16 %v4420
      %v4753 = vunpack.c.l.b16 %v4421
      %v4754 = vunpack.c.h.b16 %v4421
      %v4755 = vunpack.c.l.b16 %v4422
      %v4756 = vunpack.c.h.b16 %v4422
      %v4757 = vunpack.c.l.b16 %v4423
      %v4758 = vunpack.c.h.b16 %v4423
      %v4759 = vunpack.c.l.b16 %v4424
      %v4760 = vunpack.c.h.b16 %v4424
      %v4761 = vunpack.c.l.b16 %v4425
      %v4762 = vunpack.c.l.b16 %v4426
      %v4763 = vunpack.c.h.b16 %v4426
      %v4764 = vunpack.c.l.b16 %v4427
      %v4765 = vunpack.c.h.b16 %v4427
      %v4766 = vunpack.c.l.b16 %v4428
      %v4767 = vunpack.c.h.b16 %v4428
      %v4768 = vunpack.c.l.b16 %v4429
      %v4769 = vunpack.c.h.b16 %v4429
      %v4770 = vunpack.c.l.b16 %v4430
      %v4771 = vunpack.c.l.b16 %v4431
      %v4772 = vunpack.c.h.b16 %v4431
      %v4773 = vunpack.c.l.b16 %v4432
      %v4774 = vunpack.c.h.b16 %v4432
      %v4775 = vunpack.c.l.b16 %v4433
      %v4776 = vunpack.c.h.b16 %v4433
      %v4777 = vunpack.c.l.b16 %v4434
      %v4778 = vunpack.c.h.b16 %v4434
      %v4779 = vunpack.c.l.b16 %v4435
      %v4780 = vunpack.c.l.b16 %v4436
      %v4781 = vunpack.c.h.b16 %v4436
      %v4782 = vunpack.c.l.b16 %v4437
      %v4783 = vunpack.c.h.b16 %v4437
      %v4784 = vunpack.c.l.b16 %v4438
      %v4785 = vunpack.c.h.b16 %v4438
      %v4786 = vunpack.c.l.b16 %v4439
      %v4787 = vunpack.c.h.b16 %v4439
      %v4788 = vunpack.c.l.b16 %v4440
      %v4789 = vunpack.c.l.b16 %v4441
      %v4790 = vunpack.c.h.b16 %v4441
      %v4791 = vunpack.c.l.b16 %v4442
      %v4792 = vunpack.c.h.b16 %v4442
      %v4793 = vunpack.c.l.b16 %v4443
      %v4794 = vunpack.c.h.b16 %v4443
      %v4795 = vunpack.c.l.b16 %v4444
      %v4796 = vunpack.c.h.b16 %v4444
      %v4797 = vunpack.c.l.b16 %v4445
      %v4798 = vunpack.c.l.b16 %v4446
      %v4799 = vunpack.c.h.b16 %v4446
      %v4800 = vunpack.c.l.b16 %v4447
      %v4801 = vunpack.c.h.b16 %v4447
      %v4802 = vunpack.c.l.b16 %v4448
      %v4803 = vunpack.c.h.b16 %v4448
      %v4804 = vunpack.c.l.b16 %v4449
      %v4805 = vunpack.c.h.b16 %v4449
      %v4806 = vunpack.c.l.b16 %v4450
      %v4807 = vunpack.c.l.b16 %v4451
      %v4808 = vunpack.c.h.b16 %v4451
      %v4809 = vunpack.c.l.b16 %v4452
      %v4810 = vunpack.c.h.b16 %v4452
      %v4811 = vunpack.c.l.b16 %v4453
      %v4812 = vunpack.c.h.b16 %v4453
      %v4813 = vunpack.c.l.b16 %v4454
      %v4814 = vunpack.c.h.b16 %v4454
      %v4815 = vunpack.c.l.b16 %v4455
      %v4816 = vunpack.c.l.b16 %v4456
      %v4817 = vunpack.c.h.b16 %v4456
      %v4818 = vunpack.c.l.b16 %v4457
      %v4819 = vunpack.c.h.b16 %v4457
      %v4820 = vunpack.c.l.b16 %v4458
      %v4821 = vunpack.c.h.b16 %v4458
      %v4822 = vunpack.c.l.b16 %v4459
      %v4823 = vunpack.c.h.b16 %v4459
      %v4824 = vunpack.c.l.b16 %v4460
      %v4825 = vunpack.c.l.b16 %v4461
      %v4826 = vunpack.c.h.b16 %v4461
      %v4827 = vunpack.c.l.b16 %v4462
      %v4828 = vunpack.c.h.b16 %v4462
      %v4829 = vunpack.c.l.b16 %v4463
      %v4830 = vunpack.c.h.b16 %v4463
      %v4831 = vunpack.c.l.b16 %v4464
      %v4832 = vunpack.c.h.b16 %v4464
      %v4833 = vunpack.c.l.b16 %v4465
      %v4834 = vpack.c.b16 %v4699, %v4690
      %v4835 = vpack.c.b16 %v4700, %v4691
      %v4836 = vpack.c.b16 %v4701, %v4692
      %v4837 = vpack.c.b16 %v4702, %v4693
      %v4838 = vpack.c.b16 %v4703, %v4694
      %v4839 = vpack.c.b16 %v4704, %v4695
      %v4840 = vpack.c.b16 %v4705, %v4696
      %v4841 = vpack.c.b16 %v4706, %v4697
      %v4842 = vpack.c.b16 %v4707, %v4698
      %v4843 = vpack.c.b16 %v4717, %v4708
      %v4844 = vpack.c.b16 %v4718, %v4709
      %v4845 = vpack.c.b16 %v4719, %v4710
      %v4846 = vpack.c.b16 %v4720, %v4711
      %v4847 = vpack.c.b16 %v4721, %v4712
      %v4848 = vpack.c.b16 %v4722, %v4713
      %v4849 = vpack.c.b16 %v4723, %v4714
      %v4850 = vpack.c.b16 %v4724, %v4715
      %v4851 = vpack.c.b16 %v4725, %v4716
      %v4852 = vpack.c.b16 %v4735, %v4726
      %v4853 = vpack.c.b16 %v4736, %v4727
      %v4854 = vpack.c.b16 %v4737, %v4728
      %v4855 = vpack.c.b16 %v4738, %v4729
      %v4856 = vpack.c.b16 %v4739, %v4730
      %v4857 = vpack.c.b16 %v4740, %v4731
      %v4858 = vpack.c.b16 %v4741, %v4732
      %v4859 = vpack.c.b16 %v4742, %v4733
      %v4860 = vpack.c.b16 %v4743, %v4734
      %v4861 = vpack.c.b16 %v4753, %v4744
      %v4862 = vpack.c.b16 %v4754, %v4745
      %v4863 = vpack.c.b16 %v4755, %v4746
      %v4864 = vpack.c.b16 %v4756, %v4747
      %v4865 = vpack.c.b16 %v4757, %v4748
      %v4866 = vpack.c.b16 %v4758, %v4749
      %v4867 = vpack.c.b16 %v4759, %v4750
      %v4868 = vpack.c.b16 %v4760, %v4751
      %v4869 = vpack.c.b16 %v4761, %v4752
      %v4870 = vpack.c.b16 %v4771, %v4762
      %v4871 = vpack.c.b16 %v4772, %v4763
      %v4872 = vpack.c.b16 %v4773, %v4764
      %v4873 = vpack.c.b16 %v4774, %v4765
      %v4874 = vpack.c.b16 %v4775, %v4766
      %v4875 = vpack.c.b16 %v4776, %v4767
      %v4876 = vpack.c.b16 %v4777, %v4768
      %v4877 = vpack.c.b16 %v4778, %v4769
      %v4878 = vpack.c.b16 %v4779, %v4770
      %v4879 = vpack.c.b16 %v4789, %v4780
      %v4880 = vpack.c.b16 %v4790, %v4781
      %v4881 = vpack.c.b16 %v4791, %v4782
      %v4882 = vpack.c.b16 %v4792, %v4783
      %v4883 = vpack.c.b16 %v4793, %v4784
      %v4884 = vpack.c.b16 %v4794, %v4785
      %v4885 = vpack.c.b16 %v4795, %v4786
      %v4886 = vpack.c.b16 %v4796, %v4787
      %v4887 = vpack.c.b16 %v4797, %v4788
      %v4888 = vpack.c.b16 %v4807, %v4798
      %v4889 = vpack.c.b16 %v4808, %v4799
      %v4890 = vpack.c.b16 %v4809, %v4800
      %v4891 = vpack.c.b16 %v4810, %v4801
      %v4892 = vpack.c.b16 %v4811, %v4802
      %v4893 = vpack.c.b16 %v4812, %v4803
      %v4894 = vpack.c.b16 %v4813, %v4804
      %v4895 = vpack.c.b16 %v4814, %v4805
      %v4896 = vpack.c.b16 %v4815, %v4806
      %v4897 = vpack.c.b16 %v4825, %v4816
      %v4898 = vpack.c.b16 %v4826, %v4817
      %v4899 = vpack.c.b16 %v4827, %v4818
      %v4900 = vpack.c.b16 %v4828, %v4819
      %v4901 = vpack.c.b16 %v4829, %v4820
      %v4902 = vpack.c.b16 %v4830, %v4821
      %v4903 = vpack.c.b16 %v4831, %v4822
      %v4904 = vpack.c.b16 %v4832, %v4823
      %v4905 = vpack.c.b16 %v4833, %v4824
      %v5122 = vunpack.c.l.b16 %v4466
      %v5123 = vunpack.c.l.b16 %v4467
      %v5124 = vunpack.c.l.b16 %v4468
      %v5125 = vunpack.c.l.b16 %v4469
      %v5126 = vunpack.c.l.b16 %v4470
      %v5127 = vunpack.c.l.b16 %v4471
      %v5128 = vunpack.c.l.b16 %v4472
      %v5129 = vunpack.c.l.b16 %v4473
      %v5130 = vunpack.c.l.b16 %v4474
      %v5131 = vunpack.c.l.b16 %v4475
      %v5132 = vunpack.c.l.b16 %v4476
      %v5133 = vunpack.c.l.b16 %v4477
      %v5134 = vunpack.c.l.b16 %v4478
      %v5135 = vunpack.c.l.b16 %v4479
      %v5136 = vunpack.c.l.b16 %v4480
      %v5137 = vunpack.c.l.b16 %v4481
      %v5138 = vunpack.c.l.b16 %v4482
      %v5139 = vunpack.c.l.b16 %v4483
      %v5140 = vunpack.c.l.b16 %v4484
      %v5141 = vunpack.c.l.b16 %v4485
      %v5142 = vunpack.c.l.b16 %v4486
      %v5143 = vunpack.c.l.b16 %v4487
      %v5144 = vunpack.c.l.b16 %v4488
      %v5145 = vunpack.c.l.b16 %v4489
      %v5146 = vunpack.c.l.b16 %v4490
      %v5147 = vunpack.c.l.b16 %v4491
      %v5148 = vunpack.c.l.b16 %v4492
      %v5149 = vunpack.c.l.b16 %v4493
      %v5150 = vunpack.c.l.b16 %v4494
      %v5151 = vunpack.c.l.b16 %v4495
      %v5152 = vunpack.c.l.b16 %v4496
      %v5153 = vunpack.c.l.b16 %v4497
      %v5154 = vunpack.c.l.b16 %v4498
      %v5155 = vunpack.c.l.b16 %v4499
      %v5156 = vunpack.c.l.b16 %v4500
      %v5157 = vunpack.c.l.b16 %v4501
      %v5158 = vunpack.c.l.b16 %v4502
      %v5159 = vunpack.c.l.b16 %v4503
      %v5160 = vunpack.c.l.b16 %v4504
      %v5161 = vunpack.c.l.b16 %v4505
      %v5162 = vunpack.c.l.b16 %v4506
      %v5163 = vunpack.c.l.b16 %v4507
      %v5164 = vunpack.c.l.b16 %v4508
      %v5165 = vunpack.c.l.b16 %v4509
      %v5166 = vunpack.c.l.b16 %v4510
      %v5167 = vunpack.c.l.b16 %v4511
      %v5168 = vunpack.c.l.b16 %v4512
      %v5169 = vunpack.c.l.b16 %v4513
      %v5170 = vunpack.c.l.b16 %v4514
      %v5171 = vunpack.c.l.b16 %v4515
      %v5172 = vunpack.c.l.b16 %v4516
      %v5173 = vunpack.c.l.b16 %v4517
      %v5174 = vunpack.c.l.b16 %v4518
      %v5175 = vunpack.c.l.b16 %v4519
      %v5176 = vunpack.c.l.b16 %v4520
      %v5177 = vunpack.c.l.b16 %v4521
      %v5178 = vunpack.c.l.b16 %v4522
      %v5179 = vunpack.c.l.b16 %v4523
      %v5180 = vunpack.c.l.b16 %v4524
      %v5181 = vunpack.c.l.b16 %v4525
      %v5182 = vunpack.c.l.b16 %v4526
      %v5183 = vunpack.c.l.b16 %v4527
      %v5184 = vunpack.c.l.b16 %v4528
      %v5185 = vunpack.c.l.b16 %v4529
      %v5186 = vunpack.c.l.b16 %v4530
      %v5187 = vunpack.c.l.b16 %v4531
      %v5188 = vunpack.c.l.b16 %v4532
      %v5189 = vunpack.c.l.b16 %v4533
      %v5190 = vunpack.c.l.b16 %v4534
      %v5191 = vunpack.c.l.b16 %v4535
      %v5192 = vunpack.c.l.b16 %v4536
      %v5193 = vunpack.c.l.b16 %v4537
      %v5194 = vunpack.c.l.b16 %v4538
      %v5195 = vunpack.c.l.b16 %v4539
      %v5196 = vunpack.c.l.b16 %v4540
      %v5197 = vunpack.c.l.b16 %v4541
      %v5198 = vunpack.c.l.b16 %v4542
      %v5199 = vunpack.c.l.b16 %v4543
      %v5200 = vunpack.c.l.b16 %v4544
      %v5201 = vunpack.c.l.b16 %v4545
      %v5202 = vunpack.c.l.b16 %v4546
      %v5203 = vunpack.c.l.b16 %v4547
      %v5204 = vunpack.c.l.b16 %v4548
      %v5205 = vunpack.c.l.b16 %v4549
      %v5206 = vunpack.c.l.b16 %v4550
      %v5207 = vunpack.c.l.b16 %v4551
      %v5208 = vunpack.c.l.b16 %v4552
      %v5209 = vunpack.c.l.b16 %v4553
      %v5210 = vunpack.c.l.b16 %v4554
      %v5211 = vunpack.c.l.b16 %v4555
      %v5212 = vunpack.c.l.b16 %v4556
      %v5213 = vunpack.c.l.b16 %v4557
      %v5214 = vunpack.c.l.b16 %v4558
      %v5215 = vunpack.c.l.b16 %v4559
      %v5216 = vunpack.c.l.b16 %v4560
      %v5217 = vunpack.c.l.b16 %v4561
      %v5218 = vunpack.c.l.b16 %v4562
      %v5219 = vunpack.c.l.b16 %v4563
      %v5220 = vunpack.c.l.b16 %v4564
      %v5221 = vunpack.c.l.b16 %v4565
      %v5222 = vunpack.c.l.b16 %v4566
      %v5223 = vunpack.c.l.b16 %v4567
      %v5224 = vunpack.c.l.b16 %v4568
      %v5225 = vunpack.c.l.b16 %v4569
      %v5226 = vunpack.c.l.b16 %v4570
      %v5227 = vunpack.c.l.b16 %v4571
      %v5228 = vunpack.c.l.b16 %v4572
      %v5229 = vunpack.c.l.b16 %v4573
      %v5230 = vunpack.c.l.b16 %v4574
      %v5231 = vunpack.c.l.b16 %v4575
      %v5232 = vunpack.c.l.b16 %v4576
      %v5233 = vunpack.c.l.b16 %v4577
      %v5234 = vunpack.c.l.b16 %v4578
      %v5235 = vunpack.c.l.b16 %v4579
      %v5236 = vunpack.c.l.b16 %v4580
      %v5237 = vunpack.c.l.b16 %v4581
      %v5238 = vunpack.c.l.b16 %v4582
      %v5239 = vunpack.c.l.b16 %v4583
      %v5240 = vunpack.c.l.b16 %v4584
      %v5241 = vunpack.c.l.b16 %v4585
      %v5242 = vunpack.c.l.b16 %v4586
      %v5243 = vunpack.c.l.b16 %v4587
      %v5244 = vunpack.c.l.b16 %v4588
      %v5245 = vunpack.c.l.b16 %v4589
      %v5246 = vunpack.c.l.b16 %v4590
      %v5247 = vunpack.c.l.b16 %v4591
      %v5248 = vunpack.c.l.b16 %v4592
      %v5249 = vunpack.c.l.b16 %v4593
      %v5250 = vunpack.c.l.b16 %v4594
      %v5251 = vunpack.c.l.b16 %v4595
      %v5252 = vunpack.c.l.b16 %v4596
      %v5253 = vunpack.c.l.b16 %v4597
      %v5254 = vunpack.c.l.b16 %v4598
      %v5255 = vunpack.c.l.b16 %v4599
      %v5256 = vunpack.c.l.b16 %v4600
      %v5257 = vunpack.c.l.b16 %v4601
      %v5258 = vunpack.c.l.b16 %v4602
      %v5259 = vunpack.c.l.b16 %v4603
      %v5260 = vunpack.c.l.b16 %v4604
      %v5261 = vunpack.c.l.b16 %v4605
      %v5262 = vunpack.c.l.b16 %v4606
      %v5263 = vunpack.c.l.b16 %v4607
      %v5264 = vunpack.c.l.b16 %v4608
      %v5265 = vunpack.c.l.b16 %v4609
      %v5266 = vpack.c.b16 %v5123, %v5122
      %v5267 = vpack.c.b16 %v5125, %v5124
      %v5268 = vpack.c.b16 %v5127, %v5126
      %v5269 = vpack.c.b16 %v5129, %v5128
      %v5270 = vpack.c.b16 %v5131, %v5130
      %v5271 = vpack.c.b16 %v5133, %v5132
      %v5272 = vpack.c.b16 %v5135, %v5134
      %v5273 = vpack.c.b16 %v5137, %v5136
      %v5274 = vpack.c.b16 %v5139, %v5138
      %v5275 = vpack.c.b16 %v5141, %v5140
      %v5276 = vpack.c.b16 %v5143, %v5142
      %v5277 = vpack.c.b16 %v5145, %v5144
      %v5278 = vpack.c.b16 %v5147, %v5146
      %v5279 = vpack.c.b16 %v5149, %v5148
      %v5280 = vpack.c.b16 %v5151, %v5150
      %v5281 = vpack.c.b16 %v5153, %v5152
      %v5282 = vpack.c.b16 %v5155, %v5154
      %v5283 = vpack.c.b16 %v5157, %v5156
      %v5284 = vpack.c.b16 %v5159, %v5158
      %v5285 = vpack.c.b16 %v5161, %v5160
      %v5286 = vpack.c.b16 %v5163, %v5162
      %v5287 = vpack.c.b16 %v5165, %v5164
      %v5288 = vpack.c.b16 %v5167, %v5166
      %v5289 = vpack.c.b16 %v5169, %v5168
      %v5290 = vpack.c.b16 %v5171, %v5170
      %v5291 = vpack.c.b16 %v5173, %v5172
      %v5292 = vpack.c.b16 %v5175, %v5174
      %v5293 = vpack.c.b16 %v5177, %v5176
      %v5294 = vpack.c.b16 %v5179, %v5178
      %v5295 = vpack.c.b16 %v5181, %v5180
      %v5296 = vpack.c.b16 %v5183, %v5182
      %v5297 = vpack.c.b16 %v5185, %v5184
      %v5298 = vpack.c.b16 %v5187, %v5186
      %v5299 = vpack.c.b16 %v5189, %v5188
      %v5300 = vpack.c.b16 %v5191, %v5190
      %v5301 = vpack.c.b16 %v5193, %v5192
      %v5302 = vpack.c.b16 %v5195, %v5194
      %v5303 = vpack.c.b16 %v5197, %v5196
      %v5304 = vpack.c.b16 %v5199, %v5198
      %v5305 = vpack.c.b16 %v5201, %v5200
      %v5306 = vpack.c.b16 %v5203, %v5202
      %v5307 = vpack.c.b16 %v5205, %v5204
      %v5308 = vpack.c.b16 %v5207, %v5206
      %v5309 = vpack.c.b16 %v5209, %v5208
      %v5310 = vpack.c.b16 %v5211, %v5210
      %v5311 = vpack.c.b16 %v5213, %v5212
      %v5312 = vpack.c.b16 %v5215, %v5214
      %v5313 = vpack.c.b16 %v5217, %v5216
      %v5314 = vpack.c.b16 %v5219, %v5218
      %v5315 = vpack.c.b16 %v5221, %v5220
      %v5316 = vpack.c.b16 %v5223, %v5222
      %v5317 = vpack.c.b16 %v5225, %v5224
      %v5318 = vpack.c.b16 %v5227, %v5226
      %v5319 = vpack.c.b16 %v5229, %v5228
      %v5320 = vpack.c.b16 %v5231, %v5230
      %v5321 = vpack.c.b16 %v5233, %v5232
      %v5322 = vpack.c.b16 %v5235, %v5234
      %v5323 = vpack.c.b16 %v5237, %v5236
      %v5324 = vpack.c.b16 %v5239, %v5238
      %v5325 = vpack.c.b16 %v5241, %v5240
      %v5326 = vpack.c.b16 %v5243, %v5242
      %v5327 = vpack.c.b16 %v5245, %v5244
      %v5328 = vpack.c.b16 %v5247, %v5246
      %v5329 = vpack.c.b16 %v5249, %v5248
      %v5330 = vpack.c.b16 %v5251, %v5250
      %v5331 = vpack.c.b16 %v5253, %v5252
      %v5332 = vpack.c.b16 %v5255, %v5254
      %v5333 = vpack.c.b16 %v5257, %v5256
      %v5334 = vpack.c.b16 %v5259, %v5258
      %v5335 = vpack.c.b16 %v5261, %v5260
      %v5336 = vpack.c.b16 %v5263, %v5262
      %v5337 = vpack.c.b16 %v5265, %v5264
      %5410 = vmatpush.bf16.msra.mxu0 %v5273
      %5411 = vmatpush.bf16.msra.mxu0 %v5272
      %5412 = vmatpush.bf16.msra.mxu0 %v5271
      %5413 = vmatpush.bf16.msra.mxu0 %v5270
      %5414 = vmatpush.bf16.msra.mxu0 %v5269
      %5415 = vmatpush.bf16.msra.mxu0 %v5268
      %5416 = vmatpush.bf16.msra.mxu0 %v5267
      %5417 = vmatpush.bf16.msra.mxu0 %v5266
      %5418 = vmatmul.bf16.gmra.mxu0 %v4834
      %v5419 = vpop.f32.mrf.mxu0
      %v5420 = vadd.f32 0.0, %v5419
      %v5421 = vpop.f32.mrf.mxu0
      %v5422 = vadd.f32 0.0, %v5421
      %5423 = vmatmul.bf16.gmra.mxu0 %v4843
      %v5424 = vpop.f32.mrf.mxu0
      %v5425 = vadd.f32 0.0, %v5424
      %v5426 = vpop.f32.mrf.mxu0
      %v5427 = vadd.f32 0.0, %v5426
      %5428 = vmatmul.bf16.gmra.mxu0 %v4852
      %v5429 = vpop.f32.mrf.mxu0
      %v5430 = vadd.f32 0.0, %v5429
      %v5431 = vpop.f32.mrf.mxu0
      %v5432 = vadd.f32 0.0, %v5431
      %5433 = vmatmul.bf16.gmra.mxu0 %v4861
      %v5434 = vpop.f32.mrf.mxu0
      %v5435 = vadd.f32 0.0, %v5434
      %v5436 = vpop.f32.mrf.mxu0
      %v5437 = vadd.f32 0.0, %v5436
      %5438 = vmatmul.bf16.gmra.mxu0 %v4870
      %v5439 = vpop.f32.mrf.mxu0
      %v5440 = vadd.f32 0.0, %v5439
      %v5441 = vpop.f32.mrf.mxu0
      %v5442 = vadd.f32 0.0, %v5441
      %5443 = vmatmul.bf16.gmra.mxu0 %v4879
      %v5444 = vpop.f32.mrf.mxu0
      %v5445 = vadd.f32 0.0, %v5444
      %v5446 = vpop.f32.mrf.mxu0
      %v5447 = vadd.f32 0.0, %v5446
      %5448 = vmatmul.bf16.gmra.mxu0 %v4888
      %v5449 = vpop.f32.mrf.mxu0
      %v5450 = vadd.f32 0.0, %v5449
      %v5451 = vpop.f32.mrf.mxu0
      %v5452 = vadd.f32 0.0, %v5451
      %5453 = vmatmul.bf16.gmra.mxu0 %v4897
      %v5454 = vpop.f32.mrf.mxu0
      %v5455 = vadd.f32 0.0, %v5454
      %v5456 = vpop.f32.mrf.mxu0
      %v5457 = vadd.f32 0.0, %v5456
      %5458 = vdwg.mxu0
      %5459 = vmatpush.bf16.msra.mxu0 %v5281
      %5460 = vmatpush.bf16.msra.mxu0 %v5280
      %5461 = vmatpush.bf16.msra.mxu0 %v5279
      %5462 = vmatpush.bf16.msra.mxu0 %v5278
      %5463 = vmatpush.bf16.msra.mxu0 %v5277
      %5464 = vmatpush.bf16.msra.mxu0 %v5276
      %5465 = vmatpush.bf16.msra.mxu0 %v5275
      %5466 = vmatpush.bf16.msra.mxu0 %v5274
      %5467 = vmatmul.bf16.gmra.mxu0 %v4835
      %v5468 = vpop.f32.mrf.mxu0
      %v5469 = vadd.f32 %v5420, %v5468
      %v5470 = vpop.f32.mrf.mxu0
      %v5471 = vadd.f32 %v5422, %v5470
      %5472 = vmatmul.bf16.gmra.mxu0 %v4844
      %v5473 = vpop.f32.mrf.mxu0
      %v5474 = vadd.f32 %v5425, %v5473
      %v5475 = vpop.f32.mrf.mxu0
      %v5476 = vadd.f32 %v5427, %v5475
      %5477 = vmatmul.bf16.gmra.mxu0 %v4853
      %v5478 = vpop.f32.mrf.mxu0
      %v5479 = vadd.f32 %v5430, %v5478
      %v5480 = vpop.f32.mrf.mxu0
      %v5481 = vadd.f32 %v5432, %v5480
      %5482 = vmatmul.bf16.gmra.mxu0 %v4862
      %v5483 = vpop.f32.mrf.mxu0
      %v5484 = vadd.f32 %v5435, %v5483
      %v5485 = vpop.f32.mrf.mxu0
      %v5486 = vadd.f32 %v5437, %v5485
      %5487 = vmatmul.bf16.gmra.mxu0 %v4871
      %v5488 = vpop.f32.mrf.mxu0
      %v5489 = vadd.f32 %v5440, %v5488
      %v5490 = vpop.f32.mrf.mxu0
      %v5491 = vadd.f32 %v5442, %v5490
      %5492 = vmatmul.bf16.gmra.mxu0 %v4880
      %v5493 = vpop.f32.mrf.mxu0
      %v5494 = vadd.f32 %v5445, %v5493
      %v5495 = vpop.f32.mrf.mxu0
      %v5496 = vadd.f32 %v5447, %v5495
      %5497 = vmatmul.bf16.gmra.mxu0 %v4889
      %v5498 = vpop.f32.mrf.mxu0
      %v5499 = vadd.f32 %v5450, %v5498
      %v5500 = vpop.f32.mrf.mxu0
      %v5501 = vadd.f32 %v5452, %v5500
      %5502 = vmatmul.bf16.gmra.mxu0 %v4898
      %v5503 = vpop.f32.mrf.mxu0
      %v5504 = vadd.f32 %v5455, %v5503
      %v5505 = vpop.f32.mrf.mxu0
      %v5506 = vadd.f32 %v5457, %v5505
      %5507 = vdwg.mxu0
      %5508 = vmatpush.bf16.msra.mxu0 %v5289
      %5509 = vmatpush.bf16.msra.mxu0 %v5288
      %5510 = vmatpush.bf16.msra.mxu0 %v5287
      %5511 = vmatpush.bf16.msra.mxu0 %v5286
      %5512 = vmatpush.bf16.msra.mxu0 %v5285
      %5513 = vmatpush.bf16.msra.mxu0 %v5284
      %5514 = vmatpush.bf16.msra.mxu0 %v5283
      %5515 = vmatpush.bf16.msra.mxu0 %v5282
      %5516 = vmatmul.bf16.gmra.mxu0 %v4836
      %v5517 = vpop.f32.mrf.mxu0
      %v5518 = vadd.f32 %v5469, %v5517
      %v5519 = vpop.f32.mrf.mxu0
      %v5520 = vadd.f32 %v5471, %v5519
      %5521 = vmatmul.bf16.gmra.mxu0 %v4845
      %v5522 = vpop.f32.mrf.mxu0
      %v5523 = vadd.f32 %v5474, %v5522
      %v5524 = vpop.f32.mrf.mxu0
      %v5525 = vadd.f32 %v5476, %v5524
      %5526 = vmatmul.bf16.gmra.mxu0 %v4854
      %v5527 = vpop.f32.mrf.mxu0
      %v5528 = vadd.f32 %v5479, %v5527
      %v5529 = vpop.f32.mrf.mxu0
      %v5530 = vadd.f32 %v5481, %v5529
      %5531 = vmatmul.bf16.gmra.mxu0 %v4863
      %v5532 = vpop.f32.mrf.mxu0
      %v5533 = vadd.f32 %v5484, %v5532
      %v5534 = vpop.f32.mrf.mxu0
      %v5535 = vadd.f32 %v5486, %v5534
      %5536 = vmatmul.bf16.gmra.mxu0 %v4872
      %v5537 = vpop.f32.mrf.mxu0
      %v5538 = vadd.f32 %v5489, %v5537
      %v5539 = vpop.f32.mrf.mxu0
      %v5540 = vadd.f32 %v5491, %v5539
      %5541 = vmatmul.bf16.gmra.mxu0 %v4881
      %v5542 = vpop.f32.mrf.mxu0
      %v5543 = vadd.f32 %v5494, %v5542
      %v5544 = vpop.f32.mrf.mxu0
      %v5545 = vadd.f32 %v5496, %v5544
      %5546 = vmatmul.bf16.gmra.mxu0 %v4890
      %v5547 = vpop.f32.mrf.mxu0
      %v5548 = vadd.f32 %v5499, %v5547
      %v5549 = vpop.f32.mrf.mxu0
      %v5550 = vadd.f32 %v5501, %v5549
      %5551 = vmatmul.bf16.gmra.mxu0 %v4899
      %v5552 = vpop.f32.mrf.mxu0
      %v5553 = vadd.f32 %v5504, %v5552
      %v5554 = vpop.f32.mrf.mxu0
      %v5555 = vadd.f32 %v5506, %v5554
      %5556 = vdwg.mxu0
      %5557 = vmatpush.bf16.msra.mxu0 %v5297
      %5558 = vmatpush.bf16.msra.mxu0 %v5296
      %5559 = vmatpush.bf16.msra.mxu0 %v5295
      %5560 = vmatpush.bf16.msra.mxu0 %v5294
      %5561 = vmatpush.bf16.msra.mxu0 %v5293
      %5562 = vmatpush.bf16.msra.mxu0 %v5292
      %5563 = vmatpush.bf16.msra.mxu0 %v5291
      %5564 = vmatpush.bf16.msra.mxu0 %v5290
      %5565 = vmatmul.bf16.gmra.mxu0 %v4837
      %v5566 = vpop.f32.mrf.mxu0
      %v5567 = vadd.f32 %v5518, %v5566
      %v5568 = vpop.f32.mrf.mxu0
      %v5569 = vadd.f32 %v5520, %v5568
      %5570 = vmatmul.bf16.gmra.mxu0 %v4846
      %v5571 = vpop.f32.mrf.mxu0
      %v5572 = vadd.f32 %v5523, %v5571
      %v5573 = vpop.f32.mrf.mxu0
      %v5574 = vadd.f32 %v5525, %v5573
      %5575 = vmatmul.bf16.gmra.mxu0 %v4855
      %v5576 = vpop.f32.mrf.mxu0
      %v5577 = vadd.f32 %v5528, %v5576
      %v5578 = vpop.f32.mrf.mxu0
      %v5579 = vadd.f32 %v5530, %v5578
      %5580 = vmatmul.bf16.gmra.mxu0 %v4864
      %v5581 = vpop.f32.mrf.mxu0
      %v5582 = vadd.f32 %v5533, %v5581
      %v5583 = vpop.f32.mrf.mxu0
      %v5584 = vadd.f32 %v5535, %v5583
      %5585 = vmatmul.bf16.gmra.mxu0 %v4873
      %v5586 = vpop.f32.mrf.mxu0
      %v5587 = vadd.f32 %v5538, %v5586
      %v5588 = vpop.f32.mrf.mxu0
      %v5589 = vadd.f32 %v5540, %v5588
      %5590 = vmatmul.bf16.gmra.mxu0 %v4882
      %v5591 = vpop.f32.mrf.mxu0
      %v5592 = vadd.f32 %v5543, %v5591
      %v5593 = vpop.f32.mrf.mxu0
      %v5594 = vadd.f32 %v5545, %v5593
      %5595 = vmatmul.bf16.gmra.mxu0 %v4891
      %v5596 = vpop.f32.mrf.mxu0
      %v5597 = vadd.f32 %v5548, %v5596
      %v5598 = vpop.f32.mrf.mxu0
      %v5599 = vadd.f32 %v5550, %v5598
      %5600 = vmatmul.bf16.gmra.mxu0 %v4900
      %v5601 = vpop.f32.mrf.mxu0
      %v5602 = vadd.f32 %v5553, %v5601
      %v5603 = vpop.f32.mrf.mxu0
      %v5604 = vadd.f32 %v5555, %v5603
      %5605 = vdwg.mxu0
      %5606 = vmatpush.bf16.msra.mxu0 %v5305
      %5607 = vmatpush.bf16.msra.mxu0 %v5304
      %5608 = vmatpush.bf16.msra.mxu0 %v5303
      %5609 = vmatpush.bf16.msra.mxu0 %v5302
      %5610 = vmatpush.bf16.msra.mxu0 %v5301
      %5611 = vmatpush.bf16.msra.mxu0 %v5300
      %5612 = vmatpush.bf16.msra.mxu0 %v5299
      %5613 = vmatpush.bf16.msra.mxu0 %v5298
      %5614 = vmatmul.bf16.gmra.mxu0 %v4838
      %v5615 = vpop.f32.mrf.mxu0
      %v5616 = vadd.f32 %v5567, %v5615
      %v5617 = vpop.f32.mrf.mxu0
      %v5618 = vadd.f32 %v5569, %v5617
      %5619 = vmatmul.bf16.gmra.mxu0 %v4847
      %v5620 = vpop.f32.mrf.mxu0
      %v5621 = vadd.f32 %v5572, %v5620
      %v5622 = vpop.f32.mrf.mxu0
      %v5623 = vadd.f32 %v5574, %v5622
      %5624 = vmatmul.bf16.gmra.mxu0 %v4856
      %v5625 = vpop.f32.mrf.mxu0
      %v5626 = vadd.f32 %v5577, %v5625
      %v5627 = vpop.f32.mrf.mxu0
      %v5628 = vadd.f32 %v5579, %v5627
      %5629 = vmatmul.bf16.gmra.mxu0 %v4865
      %v5630 = vpop.f32.mrf.mxu0
      %v5631 = vadd.f32 %v5582, %v5630
      %v5632 = vpop.f32.mrf.mxu0
      %v5633 = vadd.f32 %v5584, %v5632
      %5634 = vmatmul.bf16.gmra.mxu0 %v4874
      %v5635 = vpop.f32.mrf.mxu0
      %v5636 = vadd.f32 %v5587, %v5635
      %v5637 = vpop.f32.mrf.mxu0
      %v5638 = vadd.f32 %v5589, %v5637
      %5639 = vmatmul.bf16.gmra.mxu0 %v4883
      %v5640 = vpop.f32.mrf.mxu0
      %v5641 = vadd.f32 %v5592, %v5640
      %v5642 = vpop.f32.mrf.mxu0
      %v5643 = vadd.f32 %v5594, %v5642
      %5644 = vmatmul.bf16.gmra.mxu0 %v4892
      %v5645 = vpop.f32.mrf.mxu0
      %v5646 = vadd.f32 %v5597, %v5645
      %v5647 = vpop.f32.mrf.mxu0
      %v5648 = vadd.f32 %v5599, %v5647
      %5649 = vmatmul.bf16.gmra.mxu0 %v4901
      %v5650 = vpop.f32.mrf.mxu0
      %v5651 = vadd.f32 %v5602, %v5650
      %v5652 = vpop.f32.mrf.mxu0
      %v5653 = vadd.f32 %v5604, %v5652
      %5654 = vdwg.mxu0
      %5655 = vmatpush.bf16.msra.mxu0 %v5313
      %5656 = vmatpush.bf16.msra.mxu0 %v5312
      %5657 = vmatpush.bf16.msra.mxu0 %v5311
      %5658 = vmatpush.bf16.msra.mxu0 %v5310
      %5659 = vmatpush.bf16.msra.mxu0 %v5309
      %5660 = vmatpush.bf16.msra.mxu0 %v5308
      %5661 = vmatpush.bf16.msra.mxu0 %v5307
      %5662 = vmatpush.bf16.msra.mxu0 %v5306
      %5663 = vmatmul.bf16.gmra.mxu0 %v4839
      %v5664 = vpop.f32.mrf.mxu0
      %v5665 = vadd.f32 %v5616, %v5664
      %v5666 = vpop.f32.mrf.mxu0
      %v5667 = vadd.f32 %v5618, %v5666
      %5668 = vmatmul.bf16.gmra.mxu0 %v4848
      %v5669 = vpop.f32.mrf.mxu0
      %v5670 = vadd.f32 %v5621, %v5669
      %v5671 = vpop.f32.mrf.mxu0
      %v5672 = vadd.f32 %v5623, %v5671
      %5673 = vmatmul.bf16.gmra.mxu0 %v4857
      %v5674 = vpop.f32.mrf.mxu0
      %v5675 = vadd.f32 %v5626, %v5674
      %v5676 = vpop.f32.mrf.mxu0
      %v5677 = vadd.f32 %v5628, %v5676
      %5678 = vmatmul.bf16.gmra.mxu0 %v4866
      %v5679 = vpop.f32.mrf.mxu0
      %v5680 = vadd.f32 %v5631, %v5679
      %v5681 = vpop.f32.mrf.mxu0
      %v5682 = vadd.f32 %v5633, %v5681
      %5683 = vmatmul.bf16.gmra.mxu0 %v4875
      %v5684 = vpop.f32.mrf.mxu0
      %v5685 = vadd.f32 %v5636, %v5684
      %v5686 = vpop.f32.mrf.mxu0
      %v5687 = vadd.f32 %v5638, %v5686
      %5688 = vmatmul.bf16.gmra.mxu0 %v4884
      %v5689 = vpop.f32.mrf.mxu0
      %v5690 = vadd.f32 %v5641, %v5689
      %v5691 = vpop.f32.mrf.mxu0
      %v5692 = vadd.f32 %v5643, %v5691
      %5693 = vmatmul.bf16.gmra.mxu0 %v4893
      %v5694 = vpop.f32.mrf.mxu0
      %v5695 = vadd.f32 %v5646, %v5694
      %v5696 = vpop.f32.mrf.mxu0
      %v5697 = vadd.f32 %v5648, %v5696
      %5698 = vmatmul.bf16.gmra.mxu0 %v4902
      %v5699 = vpop.f32.mrf.mxu0
      %v5700 = vadd.f32 %v5651, %v5699
      %v5701 = vpop.f32.mrf.mxu0
      %v5702 = vadd.f32 %v5653, %v5701
      %5703 = vdwg.mxu0
      %5704 = vmatpush.bf16.msra.mxu0 %v5321
      %5705 = vmatpush.bf16.msra.mxu0 %v5320
      %5706 = vmatpush.bf16.msra.mxu0 %v5319
      %5707 = vmatpush.bf16.msra.mxu0 %v5318
      %5708 = vmatpush.bf16.msra.mxu0 %v5317
      %5709 = vmatpush.bf16.msra.mxu0 %v5316
      %5710 = vmatpush.bf16.msra.mxu0 %v5315
      %5711 = vmatpush.bf16.msra.mxu0 %v5314
      %5712 = vmatmul.bf16.gmra.mxu0 %v4840
      %v5713 = vpop.f32.mrf.mxu0
      %v5714 = vadd.f32 %v5665, %v5713
      %v5715 = vpop.f32.mrf.mxu0
      %v5716 = vadd.f32 %v5667, %v5715
      %5717 = vmatmul.bf16.gmra.mxu0 %v4849
      %v5718 = vpop.f32.mrf.mxu0
      %v5719 = vadd.f32 %v5670, %v5718
      %v5720 = vpop.f32.mrf.mxu0
      %v5721 = vadd.f32 %v5672, %v5720
      %5722 = vmatmul.bf16.gmra.mxu0 %v4858
      %v5723 = vpop.f32.mrf.mxu0
      %v5724 = vadd.f32 %v5675, %v5723
      %v5725 = vpop.f32.mrf.mxu0
      %v5726 = vadd.f32 %v5677, %v5725
      %5727 = vmatmul.bf16.gmra.mxu0 %v4867
      %v5728 = vpop.f32.mrf.mxu0
      %v5729 = vadd.f32 %v5680, %v5728
      %v5730 = vpop.f32.mrf.mxu0
      %v5731 = vadd.f32 %v5682, %v5730
      %5732 = vmatmul.bf16.gmra.mxu0 %v4876
      %v5733 = vpop.f32.mrf.mxu0
      %v5734 = vadd.f32 %v5685, %v5733
      %v5735 = vpop.f32.mrf.mxu0
      %v5736 = vadd.f32 %v5687, %v5735
      %5737 = vmatmul.bf16.gmra.mxu0 %v4885
      %v5738 = vpop.f32.mrf.mxu0
      %v5739 = vadd.f32 %v5690, %v5738
      %v5740 = vpop.f32.mrf.mxu0
      %v5741 = vadd.f32 %v5692, %v5740
      %5742 = vmatmul.bf16.gmra.mxu0 %v4894
      %v5743 = vpop.f32.mrf.mxu0
      %v5744 = vadd.f32 %v5695, %v5743
      %v5745 = vpop.f32.mrf.mxu0
      %v5746 = vadd.f32 %v5697, %v5745
      %5747 = vmatmul.bf16.gmra.mxu0 %v4903
      %v5748 = vpop.f32.mrf.mxu0
      %v5749 = vadd.f32 %v5700, %v5748
      %v5750 = vpop.f32.mrf.mxu0
      %v5751 = vadd.f32 %v5702, %v5750
      %5752 = vdwg.mxu0
      %5753 = vmatpush.bf16.msra.mxu0 %v5329
      %5754 = vmatpush.bf16.msra.mxu0 %v5328
      %5755 = vmatpush.bf16.msra.mxu0 %v5327
      %5756 = vmatpush.bf16.msra.mxu0 %v5326
      %5757 = vmatpush.bf16.msra.mxu0 %v5325
      %5758 = vmatpush.bf16.msra.mxu0 %v5324
      %5759 = vmatpush.bf16.msra.mxu0 %v5323
      %5760 = vmatpush.bf16.msra.mxu0 %v5322
      %5761 = vmatmul.bf16.gmra.mxu0 %v4841
      %v5762 = vpop.f32.mrf.mxu0
      %v5763 = vadd.f32 %v5714, %v5762
      %v5764 = vpop.f32.mrf.mxu0
      %v5765 = vadd.f32 %v5716, %v5764
      %5766 = vmatmul.bf16.gmra.mxu0 %v4850
      %v5767 = vpop.f32.mrf.mxu0
      %v5768 = vadd.f32 %v5719, %v5767
      %v5769 = vpop.f32.mrf.mxu0
      %v5770 = vadd.f32 %v5721, %v5769
      %5771 = vmatmul.bf16.gmra.mxu0 %v4859
      %v5772 = vpop.f32.mrf.mxu0
      %v5773 = vadd.f32 %v5724, %v5772
      %v5774 = vpop.f32.mrf.mxu0
      %v5775 = vadd.f32 %v5726, %v5774
      %5776 = vmatmul.bf16.gmra.mxu0 %v4868
      %v5777 = vpop.f32.mrf.mxu0
      %v5778 = vadd.f32 %v5729, %v5777
      %v5779 = vpop.f32.mrf.mxu0
      %v5780 = vadd.f32 %v5731, %v5779
      %5781 = vmatmul.bf16.gmra.mxu0 %v4877
      %v5782 = vpop.f32.mrf.mxu0
      %v5783 = vadd.f32 %v5734, %v5782
      %v5784 = vpop.f32.mrf.mxu0
      %v5785 = vadd.f32 %v5736, %v5784
      %5786 = vmatmul.bf16.gmra.mxu0 %v4886
      %v5787 = vpop.f32.mrf.mxu0
      %v5788 = vadd.f32 %v5739, %v5787
      %v5789 = vpop.f32.mrf.mxu0
      %v5790 = vadd.f32 %v5741, %v5789
      %5791 = vmatmul.bf16.gmra.mxu0 %v4895
      %v5792 = vpop.f32.mrf.mxu0
      %v5793 = vadd.f32 %v5744, %v5792
      %v5794 = vpop.f32.mrf.mxu0
      %v5795 = vadd.f32 %v5746, %v5794
      %5796 = vmatmul.bf16.gmra.mxu0 %v4904
      %v5797 = vpop.f32.mrf.mxu0
      %v5798 = vadd.f32 %v5749, %v5797
      %v5799 = vpop.f32.mrf.mxu0
      %v5800 = vadd.f32 %v5751, %v5799
      %5801 = vdwg.mxu0
      %5802 = vmatpush.bf16.msra.mxu0 %v5337
      %5803 = vmatpush.bf16.msra.mxu0 %v5336
      %5804 = vmatpush.bf16.msra.mxu0 %v5335
      %5805 = vmatpush.bf16.msra.mxu0 %v5334
      %5806 = vmatpush.bf16.msra.mxu0 %v5333
      %5807 = vmatpush.bf16.msra.mxu0 %v5332
      %5808 = vmatpush.bf16.msra.mxu0 %v5331
      %5809 = vmatpush.bf16.msra.mxu0 %v5330
      %5810 = vmatmul.bf16.gmra.mxu0 %v4842
      %v5811 = vpop.f32.mrf.mxu0
      %v5812 = vadd.f32 %v5763, %v5811
      %v5813 = vpop.f32.mrf.mxu0
      %v5814 = vadd.f32 %v5765, %v5813
      %5815 = vmatmul.bf16.gmra.mxu0 %v4851
      %v5816 = vpop.f32.mrf.mxu0
      %v5817 = vadd.f32 %v5768, %v5816
      %v5818 = vpop.f32.mrf.mxu0
      %v5819 = vadd.f32 %v5770, %v5818
      %5820 = vmatmul.bf16.gmra.mxu0 %v4860
      %v5821 = vpop.f32.mrf.mxu0
      %v5822 = vadd.f32 %v5773, %v5821
      %v5823 = vpop.f32.mrf.mxu0
      %v5824 = vadd.f32 %v5775, %v5823
      %5825 = vmatmul.bf16.gmra.mxu0 %v4869
      %v5826 = vpop.f32.mrf.mxu0
      %v5827 = vadd.f32 %v5778, %v5826
      %v5828 = vpop.f32.mrf.mxu0
      %v5829 = vadd.f32 %v5780, %v5828
      %5830 = vmatmul.bf16.gmra.mxu0 %v4878
      %v5831 = vpop.f32.mrf.mxu0
      %v5832 = vadd.f32 %v5783, %v5831
      %v5833 = vpop.f32.mrf.mxu0
      %v5834 = vadd.f32 %v5785, %v5833
      %5835 = vmatmul.bf16.gmra.mxu0 %v4887
      %v5836 = vpop.f32.mrf.mxu0
      %v5837 = vadd.f32 %v5788, %v5836
      %v5838 = vpop.f32.mrf.mxu0
      %v5839 = vadd.f32 %v5790, %v5838
      %5840 = vmatmul.bf16.gmra.mxu0 %v4896
      %v5841 = vpop.f32.mrf.mxu0
      %v5842 = vadd.f32 %v5793, %v5841
      %v5843 = vpop.f32.mrf.mxu0
      %v5844 = vadd.f32 %v5795, %v5843
      %5845 = vmatmul.bf16.gmra.mxu0 %v4905
      %v5846 = vpop.f32.mrf.mxu0
      %v5847 = vadd.f32 %v5798, %v5846
      %v5848 = vpop.f32.mrf.mxu0
      %v5849 = vadd.f32 %v5800, %v5848
      %5850 = vdwg.mxu0
      %v5851 = vld [vmem:[%s6] sm:$0x1]
      %v5853 = vperm.slane %v5851, 0
      %v5855 = vmul.f32 %v5812, %v5853
      %v5856 = vmul.f32 %v5814, %v5853
      %v5857 = vmul.f32 %v5817, %v5853
      %v5858 = vmul.f32 %v5819, %v5853
      %v5859 = vmul.f32 %v5822, %v5853
      %v5860 = vmul.f32 %v5824, %v5853
      %v5861 = vmul.f32 %v5827, %v5853
      %v5862 = vmul.f32 %v5829, %v5853
      %v5863 = vmul.f32 %v5832, %v5853
      %v5864 = vmul.f32 %v5834, %v5853
      %v5865 = vmul.f32 %v5837, %v5853
      %v5866 = vmul.f32 %v5839, %v5853
      %v5867 = vmul.f32 %v5842, %v5853
      %v5868 = vmul.f32 %v5844, %v5853
      %v5869 = vmul.f32 %v5847, %v5853
      %v5870 = vmul.f32 %v5849, %v5853
      %v5871 = vld [vmem:[%s7] sm:$0x1]
      %v5873 = vperm.slane %v5871, 0
      %v5875 = vadd.f32 %v5855, %v5873
      %v5876 = vadd.f32 %v5856, %v5873
      %v5877 = vadd.f32 %v5857, %v5873
      %v5878 = vadd.f32 %v5858, %v5873
      %v5879 = vadd.f32 %v5859, %v5873
      %v5880 = vadd.f32 %v5860, %v5873
      %v5881 = vadd.f32 %v5861, %v5873
      %v5882 = vadd.f32 %v5862, %v5873
      %v5883 = vadd.f32 %v5863, %v5873
      %v5884 = vadd.f32 %v5864, %v5873
      %v5885 = vadd.f32 %v5865, %v5873
      %v5886 = vadd.f32 %v5866, %v5873
      %v5887 = vadd.f32 %v5867, %v5873
      %v5888 = vadd.f32 %v5868, %v5873
      %v5889 = vadd.f32 %v5869, %v5873
      %v5890 = vadd.f32 %v5870, %v5873
      %v5891 = vmax.f32 %v5875, 0.0
      %v5892 = vmax.f32 %v5876, 0.0
      %v5893 = vmax.f32 %v5877, 0.0
      %v5894 = vmax.f32 %v5878, 0.0
      %v5895 = vmax.f32 %v5879, 0.0
      %v5896 = vmax.f32 %v5880, 0.0
      %v5897 = vmax.f32 %v5881, 0.0
      %v5898 = vmax.f32 %v5882, 0.0
      %v5899 = vmax.f32 %v5883, 0.0
      %v5900 = vmax.f32 %v5884, 0.0
      %v5901 = vmax.f32 %v5885, 0.0
      %v5902 = vmax.f32 %v5886, 0.0
      %v5903 = vmax.f32 %v5887, 0.0
      %v5904 = vmax.f32 %v5888, 0.0
      %v5905 = vmax.f32 %v5889, 0.0
      %v5906 = vmax.f32 %v5890, 0.0
      %5907 = vst [vmem:[%s401] sm:$0xff] %v5891
      %5908 = vst [vmem:[%s401 + $0x8] sm:$0xff] %v5892
      %5909 = vst [vmem:[%s401 + $0x10] sm:$0xff] %v5893
      %5910 = vst [vmem:[%s401 + $0x18] sm:$0xff] %v5894
      %5911 = vst [vmem:[%s401 + $0x20] sm:$0xff] %v5895
      %5912 = vst [vmem:[%s401 + $0x28] sm:$0xff] %v5896
      %5913 = vst [vmem:[%s401 + $0x30] sm:$0xff] %v5897
      %5914 = vst [vmem:[%s401 + $0x38] sm:$0xff] %v5898
      %5915 = vst [vmem:[%s401 + $0x40] sm:$0xff] %v5899
      %5916 = vst [vmem:[%s401 + $0x48] sm:$0xff] %v5900
      %5917 = vst [vmem:[%s401 + $0x50] sm:$0xff] %v5901
      %5918 = vst [vmem:[%s401 + $0x58] sm:$0xff] %v5902
      %5919 = vst [vmem:[%s401 + $0x60] sm:$0xff] %v5903
      %5920 = vst [vmem:[%s401 + $0x68] sm:$0xff] %v5904
      %5921 = vst [vmem:[%s401 + $0x70] sm:$0xff] %v5905
      %5922 = vst [vmem:[%s401 + $0x78] sm:$0xff] %v5906
      %s5923 = smul.u32 8, %s24
      %p5924 = scmp.lt.s32.totalorder %s23, 1
      %s5925 = scalar_select %p5924, %s23, 1
      %p5926 = scmp.lt.s32.totalorder %s5923, 15
      %s5927 = scalar_select %p5926, %s5923, 15
      %s5928 = smul.addr %s5927, 2
      %s5929 = smul.addr %s5925, 32
      %s5930 = sadd.s32 %s5928, %s5929
      %s5931 = smul.addr %s5930, 8
      %s5932 = scalar_lea.vmem %s8, %s5931
      // Predicated region
      $region61: #{double_conv_forward.1} parent=51 // pred_check
        %p5933 = pneg %p237
      $region62: #{double_conv_forward.1} parent=51 // pred_check_branch
        %5935 = sbr.rel (%p5933) target = $region64
      $region63: #{double_conv_forward.1} parent=51 // pred_region
        %s5936 = smul.u32 8, %s24
      $region64: #{double_conv_forward.1} parent=51 // pred_fallthru
        _
    $region52: #{double_conv_forward.1} parent=5 // pred_fallthru
      _
    %p5937 = scmp.le.s32.totalorder 2, %s14
    // Predicated region
    $region65: #{double_conv_forward.1} parent=5 // pred_check
      %p5938 = pneg %p5937
    $region66: #{double_conv_forward.1} parent=5 // pred_check_branch
      %5940 = sbr.rel (%p5938) target = $region68
    $region67: #{double_conv_forward.1} parent=5 // pred_region
      %s5941 = ssub.s32 %s14, 2
      // Predicated region
      $region69: #{double_conv_forward.1} parent=67 // pred_check
        %p5942 = pneg %p243
      $region70: #{double_conv_forward.1} parent=67 // pred_check_branch
        %5944 = sbr.rel (%p5942) target = $region72
      $region71: #{double_conv_forward.1} parent=67 // pred_region
        %s5945 = smul.u32 8, %s26
        %p5946 = scmp.lt.s32.totalorder %s25, 1
        %s5947 = scalar_select %p5946, %s25, 1
        %p5948 = scmp.lt.s32.totalorder %s5945, 15
        %s5949 = scalar_select %p5948, %s5945, 15
        %s5950 = smul.addr %s5949, 2
        %s5951 = smul.addr %s5947, 32
        %s5952 = sadd.s32 %s5950, %s5951
        %s5953 = smul.addr %s5952, 8
        %s5954 = scalar_lea.vmem %s8, %s5953
      $region72: #{double_conv_forward.1} parent=67 // pred_fallthru
        _
    $region68: #{double_conv_forward.1} parent=5 // pred_fallthru
      _
  $region6: #{double_conv_forward.1} parent=0 // loop_footer
    %s18 = sadd.s32 1, %s14
  $region7: #{double_conv_forward.1} parent=0 // loop_footer_branch
    %13 = sbr.rel target = $region3
  $region8: #{double_conv_forward.1} parent=0 // loop_exit
    _

</llo_original>
